<compile_context>
chip_gen: v7x
topology: tpu7x:2x2x1
jax: 0.10.0
libtpu: 0.0.40
codegen_flags: <defaults>
</compile_context>

<pallas_src>
import functools

import jax
import jax.numpy as jnp
from jax.experimental import pallas as pl
from jax.experimental.pallas import tpu as pltpu


# ----------------------------- kernel helpers -------------------------------

def _layernorm(x, w, b, eps=1e-5):
    """LayerNorm over the last axis (matches torch.nn.LayerNorm defaults)."""
    mu = jnp.mean(x, axis=-1, keepdims=True)
    var = jnp.mean((x - mu) ** 2, axis=-1, keepdims=True)
    return (x - mu) * jax.lax.rsqrt(var + eps) * w + b


# ------------------------------ fused kernel --------------------------------

def vit_encoder_kernel(patches_ref, patch_w_ref, patch_b_ref, pos_ref,
                       ln1w_ref, ln1b_ref, wqkv_ref, bqkv_ref, wo_ref, bo_ref,
                       ln2w_ref, ln2b_ref, w1_ref, b1_ref, w2_ref, b2_ref,
                       flnw_ref, flnb_ref,
                       o_ref, *, num_heads):
    """grid = (batch_blocks, num_layers); o_ref is the VMEM-resident activation."""
    layer = pl.program_id(1)
    num_layers = pl.num_programs(1)
    bt, n, d = o_ref.shape
    dh = d // num_heads
    scale = 1.0 / float(dh) ** 0.5

    # ---- layer 0: patch embedding (conv-as-matmul) + positional encoding ----
    @pl.when(layer == 0)
    def _():
        p = patches_ref[...].reshape(bt * n, -1).astype(jnp.bfloat16)
        y = jnp.dot(p, patch_w_ref[...], preferred_element_type=jnp.float32)
        y = y + patch_b_ref[...]
        o_ref[...] = (y.reshape(bt, n, d) + pos_ref[...]).astype(o_ref.dtype)

    # ---- pre-LN transformer block `layer` (activation resident in o_ref) ----
    h = o_ref[...].astype(jnp.float32).reshape(bt * n, d)

    # Multi-head self-attention branch: single fused QKV matmul, M = Bt*N.
    z = _layernorm(h, ln1w_ref[0], ln1b_ref[0]).astype(jnp.bfloat16)
    qkv = jnp.dot(z, wqkv_ref[0], preferred_element_type=jnp.float32) + bqkv_ref[0]

    attn = jnp.zeros((bt * n, d), jnp.float32)
    for hd in range(num_heads):            # static unroll; Bt-batched per head
        q = qkv[:, hd * dh:(hd + 1) * dh].reshape(bt, n, dh).astype(jnp.bfloat16)
        k = qkv[:, d + hd * dh:d + (hd + 1) * dh].reshape(bt, n, dh).astype(jnp.bfloat16)
        v = qkv[:, 2 * d + hd * dh:2 * d + (hd + 1) * dh].reshape(bt, n, dh).astype(jnp.bfloat16)
        s = jnp.einsum('bqd,bkd->bqk', q, k,
                       preferred_element_type=jnp.float32) * scale
        s = s - jnp.max(s, axis=-1, keepdims=True)
        e = jnp.exp(s)
        p = e * pl.reciprocal(jnp.sum(e, axis=-1, keepdims=True), approx=True)
        ctx = jnp.einsum('bqk,bkd->bqd', p.astype(jnp.bfloat16), v,
                         preferred_element_type=jnp.float32)
        # Fold per-head context straight through the output projection
        # (accumulate) instead of a lane-axis concatenate.
        attn = attn + jnp.dot(ctx.reshape(bt * n, dh).astype(jnp.bfloat16),
                              wo_ref[0, hd], preferred_element_type=jnp.float32)
    h = h + attn + bo_ref[0]

    # MLP branch.
    z2 = _layernorm(h, ln2w_ref[0], ln2b_ref[0]).astype(jnp.bfloat16)
    m = jnp.dot(z2, w1_ref[0], preferred_element_type=jnp.float32) + b1_ref[0]
    # TODO(synk): PyTorch nn.GELU default is the exact erf form; tanh-approx
    # GELU is used because an erf lowering is not guaranteed in Mosaic.
    m = jax.nn.gelu(m)
    m = jnp.dot(m.astype(jnp.bfloat16), w2_ref[0],
                preferred_element_type=jnp.float32) + b2_ref[0]
    h = h + m

    @pl.when(layer < num_layers - 1)
    def _():
        o_ref[...] = h.reshape(bt, n, d).astype(o_ref.dtype)

    # ---- last layer: apply the final LayerNorm before writeback ----
    @pl.when(layer == num_layers - 1)
    def _():
        o_ref[...] = _layernorm(h, flnw_ref[...], flnb_ref[...]
                                ).reshape(bt, n, d).astype(o_ref.dtype)


# ------------------------------ host-side glue -------------------------------

def sinusoidal_pos_encoding(length, dim, n=10000.0):
    """PositionalEncoder equivalent: PE[p,2i]=sin(p/n^(2i/d)), PE[p,2i+1]=cos."""
    pos = jnp.arange(length, dtype=jnp.float32)[:, None]
    i = jnp.arange(dim // 2, dtype=jnp.float32)[None, :]
    denom = jnp.power(n, 2.0 * i / dim)
    pe = jnp.zeros((length, dim), jnp.float32)
    pe = pe.at[:, 0::2].set(jnp.sin(pos / denom))
    pe = pe.at[:, 1::2].set(jnp.cos(pos / denom))
    return pe


def extract_patches(x, patch_size):
    """NCHW image -> [B, N, C*P*P] with (C, ph, pw) flatten order (== Conv2d)."""
    b, c, hh, ww = x.shape
    p = patch_size
    x = x.reshape(b, c, hh // p, p, ww // p, p)
    x = x.transpose(0, 2, 4, 1, 3, 5)                      # (B, H/P, W/P, C, P, P)
    return x.reshape(b, (hh // p) * (ww // p), c * p * p)


def init_params(key, *, image_depth, patch_size, embed_dim, num_layers,
                mlp_hidden, num_heads, init_std=0.02):
    """Deterministic synthetic init (trunc-normal ~ normal*std at std=0.02).

    Per-layer weights are stacked along a leading L axis; matmul weights are
    stored in bf16 (MXU operands / half the weight DMA), biases & LN params f32.
    """
    patch_dim = image_depth * patch_size ** 2
    D, L, H, NH = embed_dim, num_layers, mlp_hidden, num_heads
    dh = D // NH
    ks = jax.random.split(key, 5)

    def nrm(k, shape):
        return (init_std * jax.random.normal(k, shape, jnp.float32)).astype(jnp.bfloat16)

    return {
        "patch_w": nrm(ks[0], (patch_dim, D)),
        "patch_b": jnp.zeros((1, D), jnp.float32),
        "ln1_w": jnp.ones((L, 1, D), jnp.float32),
        "ln1_b": jnp.zeros((L, 1, D), jnp.float32),
        "wqkv": nrm(ks[1], (L, D, 3 * D)),                 # [Wq | Wk | Wv]
        "bqkv": jnp.zeros((L, 1, 3 * D), jnp.float32),
        "wo": nrm(ks[2], (L, D, D)).reshape(L, NH, dh, D),  # head-sliced rows
        "bo": jnp.zeros((L, 1, D), jnp.float32),
        "ln2_w": jnp.ones((L, 1, D), jnp.float32),
        "ln2_b": jnp.zeros((L, 1, D), jnp.float32),
        "w1": nrm(ks[3], (L, D, H)),
        "b1": jnp.zeros((L, 1, H), jnp.float32),
        "w2": nrm(ks[4], (L, H, D)),
        "b2": jnp.zeros((L, 1, D), jnp.float32),
        "final_ln_w": jnp.ones((1, D), jnp.float32),
        "final_ln_b": jnp.zeros((1, D), jnp.float32),
    }


def _pick_batch_block(batch, seq_len):
    """Fold enough sequences per grid step that the matmul M dim is ~>=128."""
    target = max(1, 128 // seq_len)
    bt = 1
    for c in range(1, min(batch, target) + 1):
        if batch % c == 0:
            bt = c
    return bt


def _layer_spec(a):
    """BlockSpec for a per-layer (L-stacked) parameter, indexed by the layer axis."""
    zeros = (0,) * (a.ndim - 1)
    return pl.BlockSpec((1,) + a.shape[1:], lambda b, l, _z=zeros: (l,) + _z)


def _const_spec(a):
    """BlockSpec for a parameter broadcast across the whole grid."""
    zeros = (0,) * a.ndim
    return pl.BlockSpec(a.shape, lambda b, l, _z=zeros: _z)


def vit_encoder_forward(x_nchw, params, *, patch_size, num_heads):
    """Full forward pass in ONE fused pallas_call."""
    patches = extract_patches(x_nchw, patch_size)          # (B, N, C*P*P)
    B, N, Pdim = patches.shape
    D = params["patch_w"].shape[1]
    L = params["wqkv"].shape[0]
    pos = sinusoidal_pos_encoding(N, D, n=10000.0)         # (N, D)

    bt = _pick_batch_block(B, N)
    grid = (B // bt, L)                                    # layer axis innermost

    args = (patches,
            params["patch_w"], params["patch_b"], pos,
            params["ln1_w"], params["ln1_b"],
            params["wqkv"], params["bqkv"], params["wo"], params["bo"],
            params["ln2_w"], params["ln2_b"],
            params["w1"], params["b1"], params["w2"], params["b2"],
            params["final_ln_w"], params["final_ln_b"])

    in_specs = [pl.BlockSpec((bt, N, Pdim), lambda b, l: (b, 0, 0))]
    in_specs += [_const_spec(a) for a in args[1:4]]        # patch_w, patch_b, pos
    in_specs += [_layer_spec(a) for a in args[4:16]]       # stacked layer weights
    in_specs += [_const_spec(a) for a in args[16:18]]      # final LayerNorm

    return pl.pallas_call(
        functools.partial(vit_encoder_kernel, num_heads=num_heads),
        out_shape=jax.ShapeDtypeStruct((B, N, D), jnp.float32),
        grid=grid,
        in_specs=in_specs,
        # Same output block for every layer -> activation resident in VMEM.
        out_specs=pl.BlockSpec((bt, N, D), lambda b, l: (b, 0, 0)),
        compiler_params=pltpu.CompilerParams(
            dimension_semantics=("parallel", "arbitrary"),
            vmem_limit_bytes=64 * 1024 * 1024),
    )(*args)


# ----------------------------------- main ------------------------------------

if __name__ == "__main__":
    batch = 2
    image_depth = 4
    image_size = 16
    patch_size = 4
    embed_dim = 128          # multiple of 128 -> lane-dense stores / MXU tiles
    num_heads = 4
    num_layers = 2
    mlp_hidden = 4 * embed_dim

    key = jax.random.PRNGKey(0)
    k_x, k_p = jax.random.split(key)
    x = jax.random.normal(k_x, (batch, image_depth, image_size, image_size),
                          dtype=jnp.float32)

    params = init_params(k_p, image_depth=image_depth, patch_size=patch_size,
                         embed_dim=embed_dim, num_layers=num_layers,
                         mlp_hidden=mlp_hidden, num_heads=num_heads,
                         init_std=0.02)

    out = vit_encoder_forward(x, params, patch_size=patch_size,
                              num_heads=num_heads)
    out = jax.block_until_ready(out)

    n_patches = (image_size // patch_size) ** 2
    assert out.shape == (batch, n_patches, embed_dim), out.shape
    assert bool(jnp.all(jnp.isfinite(out)))
    print("KERNEL_OK")
</pallas_src>

<mosaic_0001>
module attributes {stable_mosaic.version = 11 : i64} {
  func.func @vit_encoder_kernel(%arg0: i32, %arg1: i32, %arg2: memref<2x16x64xf32, #tpu.memory_space<vmem>>, %arg3: memref<64x128xbf16, #tpu.memory_space<vmem>>, %arg4: memref<1x128xf32, #tpu.memory_space<vmem>>, %arg5: memref<16x128xf32, #tpu.memory_space<vmem>>, %arg6: memref<1x1x128xf32, #tpu.memory_space<vmem>>, %arg7: memref<1x1x128xf32, #tpu.memory_space<vmem>>, %arg8: memref<1x128x384xbf16, #tpu.memory_space<vmem>>, %arg9: memref<1x1x384xf32, #tpu.memory_space<vmem>>, %arg10: memref<1x4x32x128xbf16, #tpu.memory_space<vmem>>, %arg11: memref<1x1x128xf32, #tpu.memory_space<vmem>>, %arg12: memref<1x1x128xf32, #tpu.memory_space<vmem>>, %arg13: memref<1x1x128xf32, #tpu.memory_space<vmem>>, %arg14: memref<1x128x512xbf16, #tpu.memory_space<vmem>>, %arg15: memref<1x1x512xf32, #tpu.memory_space<vmem>>, %arg16: memref<1x512x128xbf16, #tpu.memory_space<vmem>>, %arg17: memref<1x1x128xf32, #tpu.memory_space<vmem>>, %arg18: memref<1x128xf32, #tpu.memory_space<vmem>>, %arg19: memref<1x128xf32, #tpu.memory_space<vmem>>, %arg20: memref<2x16x128xf32, #tpu.memory_space<vmem>>) attributes {dimension_semantics = [#tpu.dimension_semantics<parallel>, #tpu.dimension_semantics<arbitrary>], iteration_bounds = array<i64: 1, 2>, scalar_prefetch = 0 : i64, scratch_operands = 0 : i64, tpu.core_type = #tpu.core_type<tc>, window_params = [{transform_indices = @transform_0, window_bounds = array<i64: 2, 16, 64>}, {pipeline_mode = #tpu.pipeline_mode<synchronous>, transform_indices = @transform_1, window_bounds = array<i64: 64, 128>}, {pipeline_mode = #tpu.pipeline_mode<synchronous>, transform_indices = @transform_2, window_bounds = array<i64: 1, 128>}, {pipeline_mode = #tpu.pipeline_mode<synchronous>, transform_indices = @transform_3, window_bounds = array<i64: 16, 128>}, {transform_indices = @transform_4, window_bounds = array<i64: 1, 1, 128>}, {transform_indices = @transform_5, window_bounds = array<i64: 1, 1, 128>}, {transform_indices = @transform_6, window_bounds = array<i64: 1, 128, 384>}, {transform_indices = @transform_7, window_bounds = array<i64: 1, 1, 384>}, {transform_indices = @transform_8, window_bounds = array<i64: 1, 4, 32, 128>}, {transform_indices = @transform_9, window_bounds = array<i64: 1, 1, 128>}, {transform_indices = @transform_10, window_bounds = array<i64: 1, 1, 128>}, {transform_indices = @transform_11, window_bounds = array<i64: 1, 1, 128>}, {transform_indices = @transform_12, window_bounds = array<i64: 1, 128, 512>}, {transform_indices = @transform_13, window_bounds = array<i64: 1, 1, 512>}, {transform_indices = @transform_14, window_bounds = array<i64: 1, 512, 128>}, {transform_indices = @transform_15, window_bounds = array<i64: 1, 1, 128>}, {pipeline_mode = #tpu.pipeline_mode<synchronous>, transform_indices = @transform_16, window_bounds = array<i64: 1, 128>}, {pipeline_mode = #tpu.pipeline_mode<synchronous>, transform_indices = @transform_17, window_bounds = array<i64: 1, 128>}, {transform_indices = @transform_18, window_bounds = array<i64: 2, 16, 128>}]} {
    %c0_i32 = arith.constant 0 : i32
    %0 = arith.cmpi eq, %arg1, %c0_i32 : i32
    %1 = arith.extui %0 : i1 to i32
    %c0_i32_0 = arith.constant 0 : i32
    %2 = arith.cmpi ne, %1, %c0_i32_0 : i32
    scf.if %2 {
      %c0_93 = arith.constant 0 : index
      %c0_94 = arith.constant 0 : index
      %c0_95 = arith.constant 0 : index
      %227 = vector.load %arg2[%c0_93, %c0_94, %c0_95] : memref<2x16x64xf32, #tpu.memory_space<vmem>>, vector<2x16x64xf32>
      %228 = vector.shape_cast %227 : vector<2x16x64xf32> to vector<32x64xf32>
      %229 = arith.truncf %228 : vector<32x64xf32> to vector<32x64xbf16>
      %c0_96 = arith.constant 0 : index
      %c0_97 = arith.constant 0 : index
      %230 = vector.load %arg3[%c0_96, %c0_97] : memref<64x128xbf16, #tpu.memory_space<vmem>>, vector<64x128xbf16>
      %cst_98 = arith.constant dense<0.000000e+00> : vector<32x128xf32>
      %231 = tpu.matmul %229, %230, %cst_98 {dimension_numbers = #tpu.dot_dimension_numbers<[1], [0], [0], [1], [0, 0, 1, 1], [], []>} : vector<32x64xbf16>, vector<64x128xbf16>, vector<32x128xf32> -> vector<32x128xf32>
      %c0_99 = arith.constant 0 : index
      %c0_100 = arith.constant 0 : index
      %232 = vector.load %arg4[%c0_99, %c0_100] : memref<1x128xf32, #tpu.memory_space<vmem>>, vector<1x128xf32>
      %233 = vector.broadcast %232 : vector<1x128xf32> to vector<32x128xf32>
      %234 = arith.addf %231, %233 : vector<32x128xf32>
      %235 = vector.shape_cast %234 : vector<32x128xf32> to vector<2x16x128xf32>
      %c0_101 = arith.constant 0 : index
      %c0_102 = arith.constant 0 : index
      %236 = vector.load %arg5[%c0_101, %c0_102] : memref<16x128xf32, #tpu.memory_space<vmem>>, vector<16x128xf32>
      %237 = vector.shape_cast %236 : vector<16x128xf32> to vector<1x16x128xf32>
      %238 = vector.broadcast %237 : vector<1x16x128xf32> to vector<2x16x128xf32>
      %239 = arith.addf %235, %238 : vector<2x16x128xf32>
      %c0_103 = arith.constant 0 : index
      %c0_104 = arith.constant 0 : index
      %c0_105 = arith.constant 0 : index
      %240 = vector.load %arg20[%c0_103, %c0_104, %c0_105] : memref<2x16x128xf32, #tpu.memory_space<vmem>>, vector<2x16x128xf32>
      tpu.vector_store %arg20[%c0_103, %c0_104, %c0_105], %239 {strides = array<i32>} : memref<2x16x128xf32, #tpu.memory_space<vmem>>, vector<2x16x128xf32>,
    } else {
    }
    %c0 = arith.constant 0 : index
    %c0_1 = arith.constant 0 : index
    %c0_2 = arith.constant 0 : index
    %3 = vector.load %arg20[%c0, %c0_1, %c0_2] : memref<2x16x128xf32, #tpu.memory_space<vmem>>, vector<2x16x128xf32>
    %4 = vector.shape_cast %3 : vector<2x16x128xf32> to vector<32x128xf32>
    %c0_3 = arith.constant 0 : index
    %c0_4 = arith.constant 0 : index
    %c0_5 = arith.constant 0 : index
    %5 = vector.load %arg6[%c0_3, %c0_4, %c0_5] : memref<1x1x128xf32, #tpu.memory_space<vmem>>, vector<1x1x128xf32>
    %6 = vector.shape_cast %5 : vector<1x1x128xf32> to vector<1x128xf32>
    %c0_6 = arith.constant 0 : index
    %c0_7 = arith.constant 0 : index
    %c0_8 = arith.constant 0 : index
    %7 = vector.load %arg7[%c0_6, %c0_7, %c0_8] : memref<1x1x128xf32, #tpu.memory_space<vmem>>, vector<1x1x128xf32>
    %8 = vector.shape_cast %7 : vector<1x1x128xf32> to vector<1x128xf32>
    %cst = arith.constant dense<0.000000e+00> : vector<32xf32>
    %9 = vector.multi_reduction <add>, %4, %cst [1] : vector<32x128xf32> to vector<32xf32>
    %10 = vector.shape_cast %9 : vector<32xf32> to vector<32x1xf32>
    %cst_9 = arith.constant 1.280000e+02 : f32
    %11 = vector.broadcast %cst_9 : f32 to vector<32x1xf32>
    %12 = arith.divf %10, %11 : vector<32x1xf32>
    %13 = vector.broadcast %12 : vector<32x1xf32> to vector<32x128xf32>
    %14 = arith.subf %4, %13 : vector<32x128xf32>
    %15 = arith.mulf %14, %14 : vector<32x128xf32>
    %cst_10 = arith.constant dense<0.000000e+00> : vector<32xf32>
    %16 = vector.multi_reduction <add>, %15, %cst_10 [1] : vector<32x128xf32> to vector<32xf32>
    %17 = vector.shape_cast %16 : vector<32xf32> to vector<32x1xf32>
    %cst_11 = arith.constant 1.280000e+02 : f32
    %18 = vector.broadcast %cst_11 : f32 to vector<32x1xf32>
    %19 = arith.divf %17, %18 : vector<32x1xf32>
    %20 = vector.broadcast %12 : vector<32x1xf32> to vector<32x128xf32>
    %21 = arith.subf %4, %20 : vector<32x128xf32>
    %cst_12 = arith.constant 9.99999974E-6 : f32
    %22 = vector.broadcast %cst_12 : f32 to vector<32x1xf32>
    %23 = arith.addf %19, %22 : vector<32x1xf32>
    %24 = math.rsqrt %23 : vector<32x1xf32>
    %25 = vector.broadcast %24 : vector<32x1xf32> to vector<32x128xf32>
    %26 = arith.mulf %21, %25 : vector<32x128xf32>
    %27 = vector.broadcast %6 : vector<1x128xf32> to vector<32x128xf32>
    %28 = arith.mulf %26, %27 : vector<32x128xf32>
    %29 = vector.broadcast %8 : vector<1x128xf32> to vector<32x128xf32>
    %30 = arith.addf %28, %29 : vector<32x128xf32>
    %31 = arith.truncf %30 : vector<32x128xf32> to vector<32x128xbf16>
    %c0_13 = arith.constant 0 : index
    %c0_14 = arith.constant 0 : index
    %c0_15 = arith.constant 0 : index
    %32 = vector.load %arg8[%c0_13, %c0_14, %c0_15] : memref<1x128x384xbf16, #tpu.memory_space<vmem>>, vector<1x128x384xbf16>
    %33 = vector.shape_cast %32 : vector<1x128x384xbf16> to vector<128x384xbf16>
    %cst_16 = arith.constant dense<0.000000e+00> : vector<32x384xf32>
    %34 = tpu.matmul %31, %33, %cst_16 {dimension_numbers = #tpu.dot_dimension_numbers<[1], [0], [0], [1], [0, 0, 1, 1], [], []>} : vector<32x128xbf16>, vector<128x384xbf16>, vector<32x384xf32> -> vector<32x384xf32>
    %c0_17 = arith.constant 0 : index
    %c0_18 = arith.constant 0 : index
    %c0_19 = arith.constant 0 : index
    %35 = vector.load %arg9[%c0_17, %c0_18, %c0_19] : memref<1x1x384xf32, #tpu.memory_space<vmem>>, vector<1x1x384xf32>
    %36 = vector.shape_cast %35 : vector<1x1x384xf32> to vector<1x384xf32>
    %37 = vector.broadcast %36 : vector<1x384xf32> to vector<32x384xf32>
    %38 = arith.addf %34, %37 : vector<32x384xf32>
    %cst_20 = arith.constant 0.000000e+00 : f32
    %39 = vector.broadcast %cst_20 : f32 to vector<32x128xf32>
    %40 = vector.extract_strided_slice %38 {offsets = [0, 0], sizes = [32, 32], strides = [1, 1]} : vector<32x384xf32> to vector<32x32xf32>
    %41 = vector.shape_cast %40 : vector<32x32xf32> to vector<2x16x32xf32>
    %42 = arith.truncf %41 : vector<2x16x32xf32> to vector<2x16x32xbf16>
    %43 = vector.extract_strided_slice %38 {offsets = [0, 128], sizes = [32, 32], strides = [1, 1]} : vector<32x384xf32> to vector<32x32xf32>
    %44 = vector.shape_cast %43 : vector<32x32xf32> to vector<2x16x32xf32>
    %45 = arith.truncf %44 : vector<2x16x32xf32> to vector<2x16x32xbf16>
    %46 = vector.extract_strided_slice %38 {offsets = [0, 256], sizes = [32, 32], strides = [1, 1]} : vector<32x384xf32> to vector<32x32xf32>
    %47 = vector.shape_cast %46 : vector<32x32xf32> to vector<2x16x32xf32>
    %48 = arith.truncf %47 : vector<2x16x32xf32> to vector<2x16x32xbf16>
    "tpu.trace_start"() <{level = 10 : i32, message = "bqd,bkd->bqk"}> : () -> ()
    %cst_21 = arith.constant dense<0.000000e+00> : vector<2x16x16xf32>
    %49 = tpu.matmul %42, %45, %cst_21 {dimension_numbers = #tpu.dot_dimension_numbers<[2], [2], [1], [1], [0, 0, 0, 1, 1, 1], [0], [0]>} : vector<2x16x32xbf16>, vector<2x16x32xbf16>, vector<2x16x16xf32> -> vector<2x16x16xf32>
    "tpu.trace_stop"() : () -> ()
    %cst_22 = arith.constant 0.176776692 : f32
    %50 = vector.broadcast %cst_22 : f32 to vector<2x16x16xf32>
    %51 = arith.mulf %49, %50 : vector<2x16x16xf32>
    %cst_23 = arith.constant dense<0xFF800000> : vector<2x16xf32>
    %52 = vector.multi_reduction <maximumf>, %51, %cst_23 [2] : vector<2x16x16xf32> to vector<2x16xf32>
    %53 = vector.shape_cast %52 : vector<2x16xf32> to vector<2x16x1xf32>
    %54 = vector.broadcast %53 : vector<2x16x1xf32> to vector<2x16x16xf32>
    %55 = arith.subf %51, %54 : vector<2x16x16xf32>
    %56 = math.exp %55 : vector<2x16x16xf32>
    %cst_24 = arith.constant dense<0.000000e+00> : vector<2x16xf32>
    %57 = vector.multi_reduction <add>, %56, %cst_24 [2] : vector<2x16x16xf32> to vector<2x16xf32>
    %58 = vector.shape_cast %57 : vector<2x16xf32> to vector<2x16x1xf32>
    %59 = tpu.reciprocal %58 {approx = true} : vector<2x16x1xf32> -> vector<2x16x1xf32>
    %60 = vector.broadcast %59 : vector<2x16x1xf32> to vector<2x16x16xf32>
    %61 = arith.mulf %56, %60 : vector<2x16x16xf32>
    %62 = arith.truncf %61 : vector<2x16x16xf32> to vector<2x16x16xbf16>
    "tpu.trace_start"() <{level = 10 : i32, message = "bqk,bkd->bqd"}> : () -> ()
    %cst_25 = arith.constant dense<0.000000e+00> : vector<2x16x32xf32>
    %63 = tpu.matmul %62, %48, %cst_25 {dimension_numbers = #tpu.dot_dimension_numbers<[2], [1], [1], [2], [0, 0, 0, 1, 1, 2], [0], [0]>} : vector<2x16x16xbf16>, vector<2x16x32xbf16>, vector<2x16x32xf32> -> vector<2x16x32xf32>
    "tpu.trace_stop"() : () -> ()
    %64 = vector.shape_cast %63 : vector<2x16x32xf32> to vector<32x32xf32>
    %65 = arith.truncf %64 : vector<32x32xf32> to vector<32x32xbf16>
    %c0_26 = arith.constant 0 : index
    %c0_27 = arith.constant 0 : index
    %c0_28 = arith.constant 0 : index
    %c0_29 = arith.constant 0 : index
    %66 = vector.load %arg10[%c0_26, %c0_27, %c0_28, %c0_29] : memref<1x4x32x128xbf16, #tpu.memory_space<vmem>>, vector<1x1x32x128xbf16>
    %67 = vector.shape_cast %66 : vector<1x1x32x128xbf16> to vector<32x128xbf16>
    %cst_30 = arith.constant dense<0.000000e+00> : vector<32x128xf32>
    %68 = tpu.matmul %65, %67, %cst_30 {dimension_numbers = #tpu.dot_dimension_numbers<[1], [0], [0], [1], [0, 0, 1, 1], [], []>} : vector<32x32xbf16>, vector<32x128xbf16>, vector<32x128xf32> -> vector<32x128xf32>
    %69 = arith.addf %39, %68 : vector<32x128xf32>
    %70 = vector.extract_strided_slice %38 {offsets = [0, 32], sizes = [32, 32], strides = [1, 1]} : vector<32x384xf32> to vector<32x32xf32>
    %71 = vector.shape_cast %70 : vector<32x32xf32> to vector<2x16x32xf32>
    %72 = arith.truncf %71 : vector<2x16x32xf32> to vector<2x16x32xbf16>
    %73 = vector.extract_strided_slice %38 {offsets = [0, 160], sizes = [32, 32], strides = [1, 1]} : vector<32x384xf32> to vector<32x32xf32>
    %74 = vector.shape_cast %73 : vector<32x32xf32> to vector<2x16x32xf32>
    %75 = arith.truncf %74 : vector<2x16x32xf32> to vector<2x16x32xbf16>
    %76 = vector.extract_strided_slice %38 {offsets = [0, 288], sizes = [32, 32], strides = [1, 1]} : vector<32x384xf32> to vector<32x32xf32>
    %77 = vector.shape_cast %76 : vector<32x32xf32> to vector<2x16x32xf32>
    %78 = arith.truncf %77 : vector<2x16x32xf32> to vector<2x16x32xbf16>
    "tpu.trace_start"() <{level = 10 : i32, message = "bqd,bkd->bqk"}> : () -> ()
    %cst_31 = arith.constant dense<0.000000e+00> : vector<2x16x16xf32>
    %79 = tpu.matmul %72, %75, %cst_31 {dimension_numbers = #tpu.dot_dimension_numbers<[2], [2], [1], [1], [0, 0, 0, 1, 1, 1], [0], [0]>} : vector<2x16x32xbf16>, vector<2x16x32xbf16>, vector<2x16x16xf32> -> vector<2x16x16xf32>
    "tpu.trace_stop"() : () -> ()
    %cst_32 = arith.constant 0.176776692 : f32
    %80 = vector.broadcast %cst_32 : f32 to vector<2x16x16xf32>
    %81 = arith.mulf %79, %80 : vector<2x16x16xf32>
    %cst_33 = arith.constant dense<0xFF800000> : vector<2x16xf32>
    %82 = vector.multi_reduction <maximumf>, %81, %cst_33 [2] : vector<2x16x16xf32> to vector<2x16xf32>
    %83 = vector.shape_cast %82 : vector<2x16xf32> to vector<2x16x1xf32>
    %84 = vector.broadcast %83 : vector<2x16x1xf32> to vector<2x16x16xf32>
    %85 = arith.subf %81, %84 : vector<2x16x16xf32>
    %86 = math.exp %85 : vector<2x16x16xf32>
    %cst_34 = arith.constant dense<0.000000e+00> : vector<2x16xf32>
    %87 = vector.multi_reduction <add>, %86, %cst_34 [2] : vector<2x16x16xf32> to vector<2x16xf32>
    %88 = vector.shape_cast %87 : vector<2x16xf32> to vector<2x16x1xf32>
    %89 = tpu.reciprocal %88 {approx = true} : vector<2x16x1xf32> -> vector<2x16x1xf32>
    %90 = vector.broadcast %89 : vector<2x16x1xf32> to vector<2x16x16xf32>
    %91 = arith.mulf %86, %90 : vector<2x16x16xf32>
    %92 = arith.truncf %91 : vector<2x16x16xf32> to vector<2x16x16xbf16>
    "tpu.trace_start"() <{level = 10 : i32, message = "bqk,bkd->bqd"}> : () -> ()
    %cst_35 = arith.constant dense<0.000000e+00> : vector<2x16x32xf32>
    %93 = tpu.matmul %92, %78, %cst_35 {dimension_numbers = #tpu.dot_dimension_numbers<[2], [1], [1], [2], [0, 0, 0, 1, 1, 2], [0], [0]>} : vector<2x16x16xbf16>, vector<2x16x32xbf16>, vector<2x16x32xf32> -> vector<2x16x32xf32>
    "tpu.trace_stop"() : () -> ()
    %94 = vector.shape_cast %93 : vector<2x16x32xf32> to vector<32x32xf32>
    %95 = arith.truncf %94 : vector<32x32xf32> to vector<32x32xbf16>
    %c0_36 = arith.constant 0 : index
    %c1 = arith.constant 1 : index
    %c0_37 = arith.constant 0 : index
    %c0_38 = arith.constant 0 : index
    %96 = vector.load %arg10[%c0_36, %c1, %c0_37, %c0_38] : memref<1x4x32x128xbf16, #tpu.memory_space<vmem>>, vector<1x1x32x128xbf16>
    %97 = vector.shape_cast %96 : vector<1x1x32x128xbf16> to vector<32x128xbf16>
    %cst_39 = arith.constant dense<0.000000e+00> : vector<32x128xf32>
    %98 = tpu.matmul %95, %97, %cst_39 {dimension_numbers = #tpu.dot_dimension_numbers<[1], [0], [0], [1], [0, 0, 1, 1], [], []>} : vector<32x32xbf16>, vector<32x128xbf16>, vector<32x128xf32> -> vector<32x128xf32>
    %99 = arith.addf %69, %98 : vector<32x128xf32>
    %100 = vector.extract_strided_slice %38 {offsets = [0, 64], sizes = [32, 32], strides = [1, 1]} : vector<32x384xf32> to vector<32x32xf32>
    %101 = vector.shape_cast %100 : vector<32x32xf32> to vector<2x16x32xf32>
    %102 = arith.truncf %101 : vector<2x16x32xf32> to vector<2x16x32xbf16>
    %103 = vector.extract_strided_slice %38 {offsets = [0, 192], sizes = [32, 32], strides = [1, 1]} : vector<32x384xf32> to vector<32x32xf32>
    %104 = vector.shape_cast %103 : vector<32x32xf32> to vector<2x16x32xf32>
    %105 = arith.truncf %104 : vector<2x16x32xf32> to vector<2x16x32xbf16>
    %106 = vector.extract_strided_slice %38 {offsets = [0, 320], sizes = [32, 32], strides = [1, 1]} : vector<32x384xf32> to vector<32x32xf32>
    %107 = vector.shape_cast %106 : vector<32x32xf32> to vector<2x16x32xf32>
    %108 = arith.truncf %107 : vector<2x16x32xf32> to vector<2x16x32xbf16>
    "tpu.trace_start"() <{level = 10 : i32, message = "bqd,bkd->bqk"}> : () -> ()
    %cst_40 = arith.constant dense<0.000000e+00> : vector<2x16x16xf32>
    %109 = tpu.matmul %102, %105, %cst_40 {dimension_numbers = #tpu.dot_dimension_numbers<[2], [2], [1], [1], [0, 0, 0, 1, 1, 1], [0], [0]>} : vector<2x16x32xbf16>, vector<2x16x32xbf16>, vector<2x16x16xf32> -> vector<2x16x16xf32>
    "tpu.trace_stop"() : () -> ()
    %cst_41 = arith.constant 0.176776692 : f32
    %110 = vector.broadcast %cst_41 : f32 to vector<2x16x16xf32>
    %111 = arith.mulf %109, %110 : vector<2x16x16xf32>
    %cst_42 = arith.constant dense<0xFF800000> : vector<2x16xf32>
    %112 = vector.multi_reduction <maximumf>, %111, %cst_42 [2] : vector<2x16x16xf32> to vector<2x16xf32>
    %113 = vector.shape_cast %112 : vector<2x16xf32> to vector<2x16x1xf32>
    %114 = vector.broadcast %113 : vector<2x16x1xf32> to vector<2x16x16xf32>
    %115 = arith.subf %111, %114 : vector<2x16x16xf32>
    %116 = math.exp %115 : vector<2x16x16xf32>
    %cst_43 = arith.constant dense<0.000000e+00> : vector<2x16xf32>
    %117 = vector.multi_reduction <add>, %116, %cst_43 [2] : vector<2x16x16xf32> to vector<2x16xf32>
    %118 = vector.shape_cast %117 : vector<2x16xf32> to vector<2x16x1xf32>
    %119 = tpu.reciprocal %118 {approx = true} : vector<2x16x1xf32> -> vector<2x16x1xf32>
    %120 = vector.broadcast %119 : vector<2x16x1xf32> to vector<2x16x16xf32>
    %121 = arith.mulf %116, %120 : vector<2x16x16xf32>
    %122 = arith.truncf %121 : vector<2x16x16xf32> to vector<2x16x16xbf16>
    "tpu.trace_start"() <{level = 10 : i32, message = "bqk,bkd->bqd"}> : () -> ()
    %cst_44 = arith.constant dense<0.000000e+00> : vector<2x16x32xf32>
    %123 = tpu.matmul %122, %108, %cst_44 {dimension_numbers = #tpu.dot_dimension_numbers<[2], [1], [1], [2], [0, 0, 0, 1, 1, 2], [0], [0]>} : vector<2x16x16xbf16>, vector<2x16x32xbf16>, vector<2x16x32xf32> -> vector<2x16x32xf32>
    "tpu.trace_stop"() : () -> ()
    %124 = vector.shape_cast %123 : vector<2x16x32xf32> to vector<32x32xf32>
    %125 = arith.truncf %124 : vector<32x32xf32> to vector<32x32xbf16>
    %c0_45 = arith.constant 0 : index
    %c2 = arith.constant 2 : index
    %c0_46 = arith.constant 0 : index
    %c0_47 = arith.constant 0 : index
    %126 = vector.load %arg10[%c0_45, %c2, %c0_46, %c0_47] : memref<1x4x32x128xbf16, #tpu.memory_space<vmem>>, vector<1x1x32x128xbf16>
    %127 = vector.shape_cast %126 : vector<1x1x32x128xbf16> to vector<32x128xbf16>
    %cst_48 = arith.constant dense<0.000000e+00> : vector<32x128xf32>
    %128 = tpu.matmul %125, %127, %cst_48 {dimension_numbers = #tpu.dot_dimension_numbers<[1], [0], [0], [1], [0, 0, 1, 1], [], []>} : vector<32x32xbf16>, vector<32x128xbf16>, vector<32x128xf32> -> vector<32x128xf32>
    %129 = arith.addf %99, %128 : vector<32x128xf32>
    %130 = vector.extract_strided_slice %38 {offsets = [0, 96], sizes = [32, 32], strides = [1, 1]} : vector<32x384xf32> to vector<32x32xf32>
    %131 = vector.shape_cast %130 : vector<32x32xf32> to vector<2x16x32xf32>
    %132 = arith.truncf %131 : vector<2x16x32xf32> to vector<2x16x32xbf16>
    %133 = vector.extract_strided_slice %38 {offsets = [0, 224], sizes = [32, 32], strides = [1, 1]} : vector<32x384xf32> to vector<32x32xf32>
    %134 = vector.shape_cast %133 : vector<32x32xf32> to vector<2x16x32xf32>
    %135 = arith.truncf %134 : vector<2x16x32xf32> to vector<2x16x32xbf16>
    %136 = vector.extract_strided_slice %38 {offsets = [0, 352], sizes = [32, 32], strides = [1, 1]} : vector<32x384xf32> to vector<32x32xf32>
    %137 = vector.shape_cast %136 : vector<32x32xf32> to vector<2x16x32xf32>
    %138 = arith.truncf %137 : vector<2x16x32xf32> to vector<2x16x32xbf16>
    "tpu.trace_start"() <{level = 10 : i32, message = "bqd,bkd->bqk"}> : () -> ()
    %cst_49 = arith.constant dense<0.000000e+00> : vector<2x16x16xf32>
    %139 = tpu.matmul %132, %135, %cst_49 {dimension_numbers = #tpu.dot_dimension_numbers<[2], [2], [1], [1], [0, 0, 0, 1, 1, 1], [0], [0]>} : vector<2x16x32xbf16>, vector<2x16x32xbf16>, vector<2x16x16xf32> -> vector<2x16x16xf32>
    "tpu.trace_stop"() : () -> ()
    %cst_50 = arith.constant 0.176776692 : f32
    %140 = vector.broadcast %cst_50 : f32 to vector<2x16x16xf32>
    %141 = arith.mulf %139, %140 : vector<2x16x16xf32>
    %cst_51 = arith.constant dense<0xFF800000> : vector<2x16xf32>
    %142 = vector.multi_reduction <maximumf>, %141, %cst_51 [2] : vector<2x16x16xf32> to vector<2x16xf32>
    %143 = vector.shape_cast %142 : vector<2x16xf32> to vector<2x16x1xf32>
    %144 = vector.broadcast %143 : vector<2x16x1xf32> to vector<2x16x16xf32>
    %145 = arith.subf %141, %144 : vector<2x16x16xf32>
    %146 = math.exp %145 : vector<2x16x16xf32>
    %cst_52 = arith.constant dense<0.000000e+00> : vector<2x16xf32>
    %147 = vector.multi_reduction <add>, %146, %cst_52 [2] : vector<2x16x16xf32> to vector<2x16xf32>
    %148 = vector.shape_cast %147 : vector<2x16xf32> to vector<2x16x1xf32>
    %149 = tpu.reciprocal %148 {approx = true} : vector<2x16x1xf32> -> vector<2x16x1xf32>
    %150 = vector.broadcast %149 : vector<2x16x1xf32> to vector<2x16x16xf32>
    %151 = arith.mulf %146, %150 : vector<2x16x16xf32>
    %152 = arith.truncf %151 : vector<2x16x16xf32> to vector<2x16x16xbf16>
    "tpu.trace_start"() <{level = 10 : i32, message = "bqk,bkd->bqd"}> : () -> ()
    %cst_53 = arith.constant dense<0.000000e+00> : vector<2x16x32xf32>
    %153 = tpu.matmul %152, %138, %cst_53 {dimension_numbers = #tpu.dot_dimension_numbers<[2], [1], [1], [2], [0, 0, 0, 1, 1, 2], [0], [0]>} : vector<2x16x16xbf16>, vector<2x16x32xbf16>, vector<2x16x32xf32> -> vector<2x16x32xf32>
    "tpu.trace_stop"() : () -> ()
    %154 = vector.shape_cast %153 : vector<2x16x32xf32> to vector<32x32xf32>
    %155 = arith.truncf %154 : vector<32x32xf32> to vector<32x32xbf16>
    %c0_54 = arith.constant 0 : index
    %c3 = arith.constant 3 : index
    %c0_55 = arith.constant 0 : index
    %c0_56 = arith.constant 0 : index
    %156 = vector.load %arg10[%c0_54, %c3, %c0_55, %c0_56] : memref<1x4x32x128xbf16, #tpu.memory_space<vmem>>, vector<1x1x32x128xbf16>
    %157 = vector.shape_cast %156 : vector<1x1x32x128xbf16> to vector<32x128xbf16>
    %cst_57 = arith.constant dense<0.000000e+00> : vector<32x128xf32>
    %158 = tpu.matmul %155, %157, %cst_57 {dimension_numbers = #tpu.dot_dimension_numbers<[1], [0], [0], [1], [0, 0, 1, 1], [], []>} : vector<32x32xbf16>, vector<32x128xbf16>, vector<32x128xf32> -> vector<32x128xf32>
    %159 = arith.addf %129, %158 : vector<32x128xf32>
    %160 = arith.addf %4, %159 : vector<32x128xf32>
    %c0_58 = arith.constant 0 : index
    %c0_59 = arith.constant 0 : index
    %c0_60 = arith.constant 0 : index
    %161 = vector.load %arg11[%c0_58, %c0_59, %c0_60] : memref<1x1x128xf32, #tpu.memory_space<vmem>>, vector<1x1x128xf32>
    %162 = vector.shape_cast %161 : vector<1x1x128xf32> to vector<1x128xf32>
    %163 = vector.broadcast %162 : vector<1x128xf32> to vector<32x128xf32>
    %164 = arith.addf %160, %163 : vector<32x128xf32>
    %c0_61 = arith.constant 0 : index
    %c0_62 = arith.constant 0 : index
    %c0_63 = arith.constant 0 : index
    %165 = vector.load %arg12[%c0_61, %c0_62, %c0_63] : memref<1x1x128xf32, #tpu.memory_space<vmem>>, vector<1x1x128xf32>
    %166 = vector.shape_cast %165 : vector<1x1x128xf32> to vector<1x128xf32>
    %c0_64 = arith.constant 0 : index
    %c0_65 = arith.constant 0 : index
    %c0_66 = arith.constant 0 : index
    %167 = vector.load %arg13[%c0_64, %c0_65, %c0_66] : memref<1x1x128xf32, #tpu.memory_space<vmem>>, vector<1x1x128xf32>
    %168 = vector.shape_cast %167 : vector<1x1x128xf32> to vector<1x128xf32>
    %cst_67 = arith.constant dense<0.000000e+00> : vector<32xf32>
    %169 = vector.multi_reduction <add>, %164, %cst_67 [1] : vector<32x128xf32> to vector<32xf32>
    %170 = vector.shape_cast %169 : vector<32xf32> to vector<32x1xf32>
    %cst_68 = arith.constant 1.280000e+02 : f32
    %171 = vector.broadcast %cst_68 : f32 to vector<32x1xf32>
    %172 = arith.divf %170, %171 : vector<32x1xf32>
    %173 = vector.broadcast %172 : vector<32x1xf32> to vector<32x128xf32>
    %174 = arith.subf %164, %173 : vector<32x128xf32>
    %175 = arith.mulf %174, %174 : vector<32x128xf32>
    %cst_69 = arith.constant dense<0.000000e+00> : vector<32xf32>
    %176 = vector.multi_reduction <add>, %175, %cst_69 [1] : vector<32x128xf32> to vector<32xf32>
    %177 = vector.shape_cast %176 : vector<32xf32> to vector<32x1xf32>
    %cst_70 = arith.constant 1.280000e+02 : f32
    %178 = vector.broadcast %cst_70 : f32 to vector<32x1xf32>
    %179 = arith.divf %177, %178 : vector<32x1xf32>
    %180 = vector.broadcast %172 : vector<32x1xf32> to vector<32x128xf32>
    %181 = arith.subf %164, %180 : vector<32x128xf32>
    %cst_71 = arith.constant 9.99999974E-6 : f32
    %182 = vector.broadcast %cst_71 : f32 to vector<32x1xf32>
    %183 = arith.addf %179, %182 : vector<32x1xf32>
    %184 = math.rsqrt %183 : vector<32x1xf32>
    %185 = vector.broadcast %184 : vector<32x1xf32> to vector<32x128xf32>
    %186 = arith.mulf %181, %185 : vector<32x128xf32>
    %187 = vector.broadcast %166 : vector<1x128xf32> to vector<32x128xf32>
    %188 = arith.mulf %186, %187 : vector<32x128xf32>
    %189 = vector.broadcast %168 : vector<1x128xf32> to vector<32x128xf32>
    %190 = arith.addf %188, %189 : vector<32x128xf32>
    %191 = arith.truncf %190 : vector<32x128xf32> to vector<32x128xbf16>
    %c0_72 = arith.constant 0 : index
    %c0_73 = arith.constant 0 : index
    %c0_74 = arith.constant 0 : index
    %192 = vector.load %arg14[%c0_72, %c0_73, %c0_74] : memref<1x128x512xbf16, #tpu.memory_space<vmem>>, vector<1x128x512xbf16>
    %193 = vector.shape_cast %192 : vector<1x128x512xbf16> to vector<128x512xbf16>
    %cst_75 = arith.constant dense<0.000000e+00> : vector<32x512xf32>
    %194 = tpu.matmul %191, %193, %cst_75 {dimension_numbers = #tpu.dot_dimension_numbers<[1], [0], [0], [1], [0, 0, 1, 1], [], []>} : vector<32x128xbf16>, vector<128x512xbf16>, vector<32x512xf32> -> vector<32x512xf32>
    %c0_76 = arith.constant 0 : index
    %c0_77 = arith.constant 0 : index
    %c0_78 = arith.constant 0 : index
    %195 = vector.load %arg15[%c0_76, %c0_77, %c0_78] : memref<1x1x512xf32, #tpu.memory_space<vmem>>, vector<1x1x512xf32>
    %196 = vector.shape_cast %195 : vector<1x1x512xf32> to vector<1x512xf32>
    %197 = vector.broadcast %196 : vector<1x512xf32> to vector<32x512xf32>
    %198 = arith.addf %194, %197 : vector<32x512xf32>
    %199 = arith.mulf %198, %198 : vector<32x512xf32>
    %200 = arith.mulf %198, %199 : vector<32x512xf32>
    %cst_79 = arith.constant 4.471500e-02 : f32
    %201 = vector.broadcast %cst_79 : f32 to vector<32x512xf32>
    %202 = arith.mulf %201, %200 : vector<32x512xf32>
    %203 = arith.addf %198, %202 : vector<32x512xf32>
    %cst_80 = arith.constant 0.797884583 : f32
    %204 = vector.broadcast %cst_80 : f32 to vector<32x512xf32>
    %205 = arith.mulf %204, %203 : vector<32x512xf32>
    %206 = math.tanh %205 : vector<32x512xf32>
    %cst_81 = arith.constant 1.000000e+00 : f32
    %207 = vector.broadcast %cst_81 : f32 to vector<32x512xf32>
    %208 = arith.addf %207, %206 : vector<32x512xf32>
    %cst_82 = arith.constant 5.000000e-01 : f32
    %209 = vector.broadcast %cst_82 : f32 to vector<32x512xf32>
    %210 = arith.mulf %209, %208 : vector<32x512xf32>
    %211 = arith.mulf %198, %210 : vector<32x512xf32>
    %212 = arith.truncf %211 : vector<32x512xf32> to vector<32x512xbf16>
    %c0_83 = arith.constant 0 : index
    %c0_84 = arith.constant 0 : index
    %c0_85 = arith.constant 0 : index
    %213 = vector.load %arg16[%c0_83, %c0_84, %c0_85] : memref<1x512x128xbf16, #tpu.memory_space<vmem>>, vector<1x512x128xbf16>
    %214 = vector.shape_cast %213 : vector<1x512x128xbf16> to vector<512x128xbf16>
    %cst_86 = arith.constant dense<0.000000e+00> : vector<32x128xf32>
    %215 = tpu.matmul %212, %214, %cst_86 {dimension_numbers = #tpu.dot_dimension_numbers<[1], [0], [0], [1], [0, 0, 1, 1], [], []>} : vector<32x512xbf16>, vector<512x128xbf16>, vector<32x128xf32> -> vector<32x128xf32>
    %c0_87 = arith.constant 0 : index
    %c0_88 = arith.constant 0 : index
    %c0_89 = arith.constant 0 : index
    %216 = vector.load %arg17[%c0_87, %c0_88, %c0_89] : memref<1x1x128xf32, #tpu.memory_space<vmem>>, vector<1x1x128xf32>
    %217 = vector.shape_cast %216 : vector<1x1x128xf32> to vector<1x128xf32>
    %218 = vector.broadcast %217 : vector<1x128xf32> to vector<32x128xf32>
    %219 = arith.addf %215, %218 : vector<32x128xf32>
    %220 = arith.addf %164, %219 : vector<32x128xf32>
    %c1_i32 = arith.constant 1 : i32
    %221 = arith.cmpi slt, %arg1, %c1_i32 : i32
    %222 = arith.extui %221 : i1 to i32
    %c0_i32_90 = arith.constant 0 : i32
    %223 = arith.cmpi ne, %222, %c0_i32_90 : i32
    scf.if %223 {
      %227 = vector.shape_cast %220 : vector<32x128xf32> to vector<2x16x128xf32>
      %c0_93 = arith.constant 0 : index
      %c0_94 = arith.constant 0 : index
      %c0_95 = arith.constant 0 : index
      %228 = vector.load %arg20[%c0_93, %c0_94, %c0_95] : memref<2x16x128xf32, #tpu.memory_space<vmem>>, vector<2x16x128xf32>
      tpu.vector_store %arg20[%c0_93, %c0_94, %c0_95], %227 {strides = array<i32>} : memref<2x16x128xf32, #tpu.memory_space<vmem>>, vector<2x16x128xf32>,
    } else {
    }
    %c1_i32_91 = arith.constant 1 : i32
    %224 = arith.cmpi eq, %arg1, %c1_i32_91 : i32
    %225 = arith.extui %224 : i1 to i32
    %c0_i32_92 = arith.constant 0 : i32
    %226 = arith.cmpi ne, %225, %c0_i32_92 : i32
    scf.if %226 {
      %c0_93 = arith.constant 0 : index
      %c0_94 = arith.constant 0 : index
      %227 = vector.load %arg18[%c0_93, %c0_94] : memref<1x128xf32, #tpu.memory_space<vmem>>, vector<1x128xf32>
      %c0_95 = arith.constant 0 : index
      %c0_96 = arith.constant 0 : index
      %228 = vector.load %arg19[%c0_95, %c0_96] : memref<1x128xf32, #tpu.memory_space<vmem>>, vector<1x128xf32>
      %cst_97 = arith.constant dense<0.000000e+00> : vector<32xf32>
      %229 = vector.multi_reduction <add>, %220, %cst_97 [1] : vector<32x128xf32> to vector<32xf32>
      %230 = vector.shape_cast %229 : vector<32xf32> to vector<32x1xf32>
      %cst_98 = arith.constant 1.280000e+02 : f32
      %231 = vector.broadcast %cst_98 : f32 to vector<32x1xf32>
      %232 = arith.divf %230, %231 : vector<32x1xf32>
      %233 = vector.broadcast %232 : vector<32x1xf32> to vector<32x128xf32>
      %234 = arith.subf %220, %233 : vector<32x128xf32>
      %235 = arith.mulf %234, %234 : vector<32x128xf32>
      %cst_99 = arith.constant dense<0.000000e+00> : vector<32xf32>
      %236 = vector.multi_reduction <add>, %235, %cst_99 [1] : vector<32x128xf32> to vector<32xf32>
      %237 = vector.shape_cast %236 : vector<32xf32> to vector<32x1xf32>
      %cst_100 = arith.constant 1.280000e+02 : f32
      %238 = vector.broadcast %cst_100 : f32 to vector<32x1xf32>
      %239 = arith.divf %237, %238 : vector<32x1xf32>
      %240 = vector.broadcast %232 : vector<32x1xf32> to vector<32x128xf32>
      %241 = arith.subf %220, %240 : vector<32x128xf32>
      %cst_101 = arith.constant 9.99999974E-6 : f32
      %242 = vector.broadcast %cst_101 : f32 to vector<32x1xf32>
      %243 = arith.addf %239, %242 : vector<32x1xf32>
      %244 = math.rsqrt %243 : vector<32x1xf32>
      %245 = vector.broadcast %244 : vector<32x1xf32> to vector<32x128xf32>
      %246 = arith.mulf %241, %245 : vector<32x128xf32>
      %247 = vector.broadcast %227 : vector<1x128xf32> to vector<32x128xf32>
      %248 = arith.mulf %246, %247 : vector<32x128xf32>
      %249 = vector.broadcast %228 : vector<1x128xf32> to vector<32x128xf32>
      %250 = arith.addf %248, %249 : vector<32x128xf32>
      %251 = vector.shape_cast %250 : vector<32x128xf32> to vector<2x16x128xf32>
      %c0_102 = arith.constant 0 : index
      %c0_103 = arith.constant 0 : index
      %c0_104 = arith.constant 0 : index
      %252 = vector.load %arg20[%c0_102, %c0_103, %c0_104] : memref<2x16x128xf32, #tpu.memory_space<vmem>>, vector<2x16x128xf32>
      tpu.vector_store %arg20[%c0_102, %c0_103, %c0_104], %251 {strides = array<i32>} : memref<2x16x128xf32, #tpu.memory_space<vmem>>, vector<2x16x128xf32>,
    } else {
    }
    return
  }
  func.func @transform_0(%arg0: i32, %arg1: i32) -> (i32, i32, i32) {
    %c0_i32 = arith.constant 0 : i32
    %c0_i32_0 = arith.constant 0 : i32
    %c0_i32_1 = arith.constant 0 : i32
    return %arg0, %c0_i32, %c0_i32_0 : i32, i32, i32
  }
  func.func @transform_1(%arg0: i32, %arg1: i32) -> (i32, i32) {
    %c0_i32 = arith.constant 0 : i32
    %c0_i32_0 = arith.constant 0 : i32
    %c0_i32_1 = arith.constant 0 : i32
    return %c0_i32, %c0_i32_0 : i32, i32
  }
  func.func @transform_2(%arg0: i32, %arg1: i32) -> (i32, i32) {
    %c0_i32 = arith.constant 0 : i32
    %c0_i32_0 = arith.constant 0 : i32
    %c0_i32_1 = arith.constant 0 : i32
    return %c0_i32, %c0_i32_0 : i32, i32
  }
  func.func @transform_3(%arg0: i32, %arg1: i32) -> (i32, i32) {
    %c0_i32 = arith.constant 0 : i32
    %c0_i32_0 = arith.constant 0 : i32
    %c0_i32_1 = arith.constant 0 : i32
    return %c0_i32, %c0_i32_0 : i32, i32
  }
  func.func @transform_4(%arg0: i32, %arg1: i32) -> (i32, i32, i32) {
    %c0_i32 = arith.constant 0 : i32
    %c0_i32_0 = arith.constant 0 : i32
    %c0_i32_1 = arith.constant 0 : i32
    return %arg1, %c0_i32, %c0_i32_0 : i32, i32, i32
  }
  func.func @transform_5(%arg0: i32, %arg1: i32) -> (i32, i32, i32) {
    %c0_i32 = arith.constant 0 : i32
    %c0_i32_0 = arith.constant 0 : i32
    %c0_i32_1 = arith.constant 0 : i32
    return %arg1, %c0_i32, %c0_i32_0 : i32, i32, i32
  }
  func.func @transform_6(%arg0: i32, %arg1: i32) -> (i32, i32, i32) {
    %c0_i32 = arith.constant 0 : i32
    %c0_i32_0 = arith.constant 0 : i32
    %c0_i32_1 = arith.constant 0 : i32
    return %arg1, %c0_i32, %c0_i32_0 : i32, i32, i32
  }
  func.func @transform_7(%arg0: i32, %arg1: i32) -> (i32, i32, i32) {
    %c0_i32 = arith.constant 0 : i32
    %c0_i32_0 = arith.constant 0 : i32
    %c0_i32_1 = arith.constant 0 : i32
    return %arg1, %c0_i32, %c0_i32_0 : i32, i32, i32
  }
  func.func @transform_8(%arg0: i32, %arg1: i32) -> (i32, i32, i32, i32) {
    %c0_i32 = arith.constant 0 : i32
    %c0_i32_0 = arith.constant 0 : i32
    %c0_i32_1 = arith.constant 0 : i32
    %c0_i32_2 = arith.constant 0 : i32
    return %arg1, %c0_i32, %c0_i32_0, %c0_i32_1 : i32, i32, i32, i32
  }
  func.func @transform_9(%arg0: i32, %arg1: i32) -> (i32, i32, i32) {
    %c0_i32 = arith.constant 0 : i32
    %c0_i32_0 = arith.constant 0 : i32
    %c0_i32_1 = arith.constant 0 : i32
    return %arg1, %c0_i32, %c0_i32_0 : i32, i32, i32
  }
  func.func @transform_10(%arg0: i32, %arg1: i32) -> (i32, i32, i32) {
    %c0_i32 = arith.constant 0 : i32
    %c0_i32_0 = arith.constant 0 : i32
    %c0_i32_1 = arith.constant 0 : i32
    return %arg1, %c0_i32, %c0_i32_0 : i32, i32, i32
  }
  func.func @transform_11(%arg0: i32, %arg1: i32) -> (i32, i32, i32) {
    %c0_i32 = arith.constant 0 : i32
    %c0_i32_0 = arith.constant 0 : i32
    %c0_i32_1 = arith.constant 0 : i32
    return %arg1, %c0_i32, %c0_i32_0 : i32, i32, i32
  }
  func.func @transform_12(%arg0: i32, %arg1: i32) -> (i32, i32, i32) {
    %c0_i32 = arith.constant 0 : i32
    %c0_i32_0 = arith.constant 0 : i32
    %c0_i32_1 = arith.constant 0 : i32
    return %arg1, %c0_i32, %c0_i32_0 : i32, i32, i32
  }
  func.func @transform_13(%arg0: i32, %arg1: i32) -> (i32, i32, i32) {
    %c0_i32 = arith.constant 0 : i32
    %c0_i32_0 = arith.constant 0 : i32
    %c0_i32_1 = arith.constant 0 : i32
    return %arg1, %c0_i32, %c0_i32_0 : i32, i32, i32
  }
  func.func @transform_14(%arg0: i32, %arg1: i32) -> (i32, i32, i32) {
    %c0_i32 = arith.constant 0 : i32
    %c0_i32_0 = arith.constant 0 : i32
    %c0_i32_1 = arith.constant 0 : i32
    return %arg1, %c0_i32, %c0_i32_0 : i32, i32, i32
  }
  func.func @transform_15(%arg0: i32, %arg1: i32) -> (i32, i32, i32) {
    %c0_i32 = arith.constant 0 : i32
    %c0_i32_0 = arith.constant 0 : i32
    %c0_i32_1 = arith.constant 0 : i32
    return %arg1, %c0_i32, %c0_i32_0 : i32, i32, i32
  }
  func.func @transform_16(%arg0: i32, %arg1: i32) -> (i32, i32) {
    %c0_i32 = arith.constant 0 : i32
    %c0_i32_0 = arith.constant 0 : i32
    %c0_i32_1 = arith.constant 0 : i32
    return %c0_i32, %c0_i32_0 : i32, i32
  }
  func.func @transform_17(%arg0: i32, %arg1: i32) -> (i32, i32) {
    %c0_i32 = arith.constant 0 : i32
    %c0_i32_0 = arith.constant 0 : i32
    %c0_i32_1 = arith.constant 0 : i32
    return %c0_i32, %c0_i32_0 : i32, i32
  }
  func.func @transform_18(%arg0: i32, %arg1: i32) -> (i32, i32, i32) {
    %c0_i32 = arith.constant 0 : i32
    %c0_i32_0 = arith.constant 0 : i32
    %c0_i32_1 = arith.constant 0 : i32
    return %arg0, %c0_i32, %c0_i32_0 : i32, i32, i32
  }
}

</mosaic_0001>

<llo_original>
// kernel: tpu_custom_call.1
$region0: #{tpu_custom_call.1}
  #allocation0 [shape = 'u32[]', space=smem, size = 0x4, offset = 0x4, fixed_abs, tag = 'smem constant byte address 0x4 - core index']
  #allocation1 [shape = 'u32[144,128]{1,0:T(1,128)}', space=vmem, size = 0x12000, scoped, tag = 'internal scratch']
  %s0 = inlined_call_operand.hbm [shape: f32[2,16,64], index: 0, kind: input, shape index: {}]
  %s1 = inlined_call_operand.hbm [shape: bf16[64,128], index: 1, kind: input, shape index: {}]
  %s2 = inlined_call_operand.hbm [shape: f32[1,128], index: 2, kind: input, shape index: {}]
  %s3 = inlined_call_operand.hbm [shape: f32[16,128], index: 3, kind: input, shape index: {}]
  %s4 = inlined_call_operand.hbm [shape: f32[2,1,128], index: 4, kind: input, shape index: {}]
  %s5 = inlined_call_operand.hbm [shape: f32[2,1,128], index: 5, kind: input, shape index: {}]
  %s6 = inlined_call_operand.hbm [shape: bf16[2,128,384], index: 6, kind: input, shape index: {}]
  %s7 = inlined_call_operand.hbm [shape: f32[2,1,384], index: 7, kind: input, shape index: {}]
  %s8 = inlined_call_operand.hbm [shape: bf16[2,4,32,128], index: 8, kind: input, shape index: {}]
  %s9 = inlined_call_operand.hbm [shape: f32[2,1,128], index: 9, kind: input, shape index: {}]
  %s10 = inlined_call_operand.hbm [shape: f32[2,1,128], index: 10, kind: input, shape index: {}]
  %s11 = inlined_call_operand.hbm [shape: f32[2,1,128], index: 11, kind: input, shape index: {}]
  %s12 = inlined_call_operand.hbm [shape: bf16[2,128,512], index: 12, kind: input, shape index: {}]
  %s13 = inlined_call_operand.hbm [shape: f32[2,1,512], index: 13, kind: input, shape index: {}]
  %s14 = inlined_call_operand.hbm [shape: bf16[2,512,128], index: 14, kind: input, shape index: {}]
  %s15 = inlined_call_operand.hbm [shape: f32[2,1,128], index: 15, kind: input, shape index: {}]
  %s16 = inlined_call_operand.hbm [shape: f32[1,128], index: 16, kind: input, shape index: {}]
  %s17 = inlined_call_operand.hbm [shape: f32[1,128], index: 17, kind: input, shape index: {}]
  %s18 = inlined_call_operand.hbm [shape: f32[2,16,128], index: 18, kind: output, shape index: {}]
  %s19 = sld [smem:[#allocation0]]
  $region189: #{tpu_custom_call.1} parent=0
    _
  %s21 = ssub.s32 1, %s19
  %s22 = scalar_select 0, %s21, %s19
  $region1: #{tpu_custom_call.1} parent=0
    #allocation2 [shape = 'u8[16384]{0}', space=vmem, size = 0x4000, scoped, tag = 'input window, operand 0, single buffered']
    #allocation3 [shape = 's32[2]{0}', space=sflag, size = 0x8, scoped, tag = 'scoped memory for tpu_custom_call.1']
    #allocation4 [shape = 's32[2]{0}', space=sflag, size = 0x8, scoped, tag = 'scoped memory for tpu_custom_call.1']
    #allocation5 [shape = 'u8[16384]{0}', space=vmem, size = 0x4000, scoped, tag = 'input window, operand 1, single buffered']
    #allocation6 [shape = 's32[1]{0}', space=sflag, size = 0x4, scoped, tag = 'scoped memory for tpu_custom_call.1']
    #allocation7 [shape = 'u8[512]{0}', space=vmem, size = 0x400, scoped, tag = 'input window, operand 2, single buffered']
    #allocation8 [shape = 'u8[8192]{0}', space=vmem, size = 0x2000, scoped, tag = 'input window, operand 3, single buffered']
    #allocation9 [shape = 's32[1]{0}', space=sflag, size = 0x4, scoped, tag = 'scoped memory for tpu_custom_call.1']
    #allocation10 [shape = 'u8[1024]{0}', space=vmem, size = 0x400, scoped, tag = 'input window, operand 4']
    #allocation11 [shape = 'u8[1024]{0}', space=vmem, size = 0x400, scoped, tag = 'input window, operand 5']
    #allocation12 [shape = 'u8[196608]{0}', space=vmem, size = 0x30000, scoped, tag = 'input window, operand 6']
    #allocation13 [shape = 'u8[3072]{0}', space=vmem, size = 0xc00, scoped, tag = 'input window, operand 7']
    #allocation14 [shape = 'u8[65536]{0}', space=vmem, size = 0x10000, scoped, tag = 'input window, operand 8']
    #allocation15 [shape = 'u8[1024]{0}', space=vmem, size = 0x400, scoped, tag = 'input window, operand 9']
    #allocation16 [shape = 'u8[1024]{0}', space=vmem, size = 0x400, scoped, tag = 'input window, operand 10']
    #allocation17 [shape = 'u8[1024]{0}', space=vmem, size = 0x400, scoped, tag = 'input window, operand 11']
    #allocation18 [shape = 'u8[262144]{0}', space=vmem, size = 0x40000, scoped, tag = 'input window, operand 12']
    #allocation19 [shape = 'u8[4096]{0}', space=vmem, size = 0x1000, scoped, tag = 'input window, operand 13']
    #allocation20 [shape = 'u8[262144]{0}', space=vmem, size = 0x40000, scoped, tag = 'input window, operand 14']
    #allocation21 [shape = 'u8[1024]{0}', space=vmem, size = 0x400, scoped, tag = 'input window, operand 15']
    #allocation22 [shape = 'u8[512]{0}', space=vmem, size = 0x400, scoped, tag = 'input window, operand 16, single buffered']
    #allocation23 [shape = 'u8[512]{0}', space=vmem, size = 0x400, scoped, tag = 'input window, operand 17, single buffered']
    #allocation24 [shape = 'u8[16384]{0}', space=vmem, size = 0x4000, scoped, tag = 'output window, operand 0, single buffered']
    %23 = vsyncpa [#allocation3], 0
    %24 = vsyncpa [#allocation6], 0
    %25 = vsyncpa [#allocation9], 0
    %26 = vsyncpa [#allocation4], 0
    loop: start=0, step=1, limit=4
    $region2: #{tpu_custom_call.1} parent=1 // loop_pre_header
      _
    $region3: #{tpu_custom_call.1} parent=1 // loop_header
      %s28 = sphi 0, %s32
      %p29 = scmp.ge.s32.totalorder %s28, 4
      %s35 = sphi 0, %s47
      %s36 = sphi 0, %s43
      %s37 = sphi 0, %s35
      %s38 = sphi 0, %s36
      %s39 = sphi 0, %s37
      %s40 = sphi 0, %s38
      %s50 = sphi 0, %s52
      %s53 = sphi 0, %s50
      %s54 = sphi 0, %s53
      %s70 = sphi 0, %s54
      %s74 = sphi 0, %s74
      %s76 = sphi 0, %s74
      %s77 = sphi 0, %s76
      %s91 = sphi 0, %s77
      %s95 = sphi 0, %s95
      %s97 = sphi 0, %s95
      %s98 = sphi 0, %s97
      %s112 = sphi 0, %s98
      %s116 = sphi 0, %s116
      %s118 = sphi 0, %s116
      %s119 = sphi 0, %s118
      %s133 = sphi 0, %s119
      %s139 = sphi 0, %s141
      %s142 = sphi 0, %s139
      %s143 = sphi 0, %s142
      %s159 = sphi 0, %s143
      %s165 = sphi 0, %s167
      %s168 = sphi 0, %s165
      %s169 = sphi 0, %s168
      %s185 = sphi 0, %s169
      %s191 = sphi 0, %s193
      %s194 = sphi 0, %s191
      %s195 = sphi 0, %s194
      %s211 = sphi 0, %s195
      %s217 = sphi 0, %s219
      %s220 = sphi 0, %s217
      %s221 = sphi 0, %s220
      %s237 = sphi 0, %s221
      %s243 = sphi 0, %s245
      %s246 = sphi 0, %s243
      %s247 = sphi 0, %s246
      %s263 = sphi 0, %s247
      %s269 = sphi 0, %s271
      %s272 = sphi 0, %s269
      %s273 = sphi 0, %s272
      %s289 = sphi 0, %s273
      %s295 = sphi 0, %s297
      %s298 = sphi 0, %s295
      %s299 = sphi 0, %s298
      %s315 = sphi 0, %s299
      %s321 = sphi 0, %s323
      %s324 = sphi 0, %s321
      %s325 = sphi 0, %s324
      %s341 = sphi 0, %s325
      %s347 = sphi 0, %s349
      %s350 = sphi 0, %s347
      %s351 = sphi 0, %s350
      %s367 = sphi 0, %s351
      %s373 = sphi 0, %s375
      %s376 = sphi 0, %s373
      %s377 = sphi 0, %s376
      %s393 = sphi 0, %s377
      %s399 = sphi 0, %s401
      %s402 = sphi 0, %s399
      %s403 = sphi 0, %s402
      %s419 = sphi 0, %s403
      %s425 = sphi 0, %s427
      %s428 = sphi 0, %s425
      %s429 = sphi 0, %s428
      %s445 = sphi 0, %s429
      %s449 = sphi 0, %s449
      %s451 = sphi 0, %s449
      %s452 = sphi 0, %s451
      %s466 = sphi 0, %s452
      %s470 = sphi 0, %s470
      %s472 = sphi 0, %s470
      %s473 = sphi 0, %s472
      %s487 = sphi 0, %s473
      %s493 = sphi 0, %s495
      %s496 = sphi 0, %s493
      %s497 = sphi 0, %s496
      %s513 = sphi 0, %s497
    $region4: #{tpu_custom_call.1} parent=1 // loop_header_branch
      %31 = sbr.rel (%p29) target = $region8
    $region5: #{tpu_custom_call.1} parent=1 // loop_body
      %s33 = ssub.s32 %s28, 1
      %s34 = ssub.s32 %s28, 2
      %s41 = sadd.s32 1, %s36
      %p42 = scmp.ge.s32.totalorder %s41, 2
      %s43 = scalar_select %p42, 0, %s41
      %s44 = sadd.s32 1, %s35
      %s45 = scalar_select %p42, %s44, %s35
      %p46 = scmp.ge.s32.totalorder %s45, 1
      %s47 = scalar_select %p46, 0, %s45
      %s48 = ssub.s32 %s35, %s47
      %p49 = scmp.eq.s32.totalorder %s48, 0
      %s51 = sadd.s32 %s50, 1
      %s52 = scalar_select %p49, %s50, %s51
      %p55 = pneg %p49
      %p56 = scmp.eq.s32.totalorder %s28, 1
      %p57 = por %p55, %p56
      %p58 = scmp.ne.s32.totalorder %s50, %s53
      %p59 = scmp.eq.s32.totalorder %s28, 0
      %p60 = por %p58, %p59
      %p61 = scmp.ne.s32.totalorder %s50, %s53
      %p62 = scmp.eq.s32.totalorder %s33, 1
      %p63 = por %p61, %p62
      %p64 = scmp.ne.s32.totalorder %s53, %s54
      %p65 = scmp.eq.s32.totalorder %s33, 0
      %p66 = por %p64, %p65
      %p67 = scmp.ne.s32.totalorder %s53, %s54
      %p68 = scmp.eq.s32.totalorder %s34, 1
      %p69 = por %p67, %p68
      %p71 = scmp.ne.s32.totalorder %s54, %s70
      %p72 = scmp.eq.s32.totalorder %s34, 0
      %p73 = por %p71, %p72
      %s75 = sadd.s32 %s74, 1
      %p78 = scmp.eq.s32.totalorder %s28, 1
      %p79 = scmp.ne.s32.totalorder %s74, %s76
      %p80 = scmp.eq.s32.totalorder %s28, 0
      %p81 = por %p79, %p80
      %p82 = scmp.ne.s32.totalorder %s74, %s76
      %p83 = scmp.eq.s32.totalorder %s33, 1
      %p84 = por %p82, %p83
      %p85 = scmp.ne.s32.totalorder %s76, %s77
      %p86 = scmp.eq.s32.totalorder %s33, 0
      %p87 = por %p85, %p86
      %p88 = scmp.ne.s32.totalorder %s76, %s77
      %p89 = scmp.eq.s32.totalorder %s34, 1
      %p90 = por %p88, %p89
      %p92 = scmp.ne.s32.totalorder %s77, %s91
      %p93 = scmp.eq.s32.totalorder %s34, 0
      %p94 = por %p92, %p93
      %s96 = sadd.s32 %s95, 1
      %p99 = scmp.eq.s32.totalorder %s28, 1
      %p100 = scmp.ne.s32.totalorder %s95, %s97
      %p101 = scmp.eq.s32.totalorder %s28, 0
      %p102 = por %p100, %p101
      %p103 = scmp.ne.s32.totalorder %s95, %s97
      %p104 = scmp.eq.s32.totalorder %s33, 1
      %p105 = por %p103, %p104
      %p106 = scmp.ne.s32.totalorder %s97, %s98
      %p107 = scmp.eq.s32.totalorder %s33, 0
      %p108 = por %p106, %p107
      %p109 = scmp.ne.s32.totalorder %s97, %s98
      %p110 = scmp.eq.s32.totalorder %s34, 1
      %p111 = por %p109, %p110
      %p113 = scmp.ne.s32.totalorder %s98, %s112
      %p114 = scmp.eq.s32.totalorder %s34, 0
      %p115 = por %p113, %p114
      %s117 = sadd.s32 %s116, 1
      %p120 = scmp.eq.s32.totalorder %s28, 1
      %p121 = scmp.ne.s32.totalorder %s116, %s118
      %p122 = scmp.eq.s32.totalorder %s28, 0
      %p123 = por %p121, %p122
      %p124 = scmp.ne.s32.totalorder %s116, %s118
      %p125 = scmp.eq.s32.totalorder %s33, 1
      %p126 = por %p124, %p125
      %p127 = scmp.ne.s32.totalorder %s118, %s119
      %p128 = scmp.eq.s32.totalorder %s33, 0
      %p129 = por %p127, %p128
      %p130 = scmp.ne.s32.totalorder %s118, %s119
      %p131 = scmp.eq.s32.totalorder %s34, 1
      %p132 = por %p130, %p131
      %p134 = scmp.ne.s32.totalorder %s119, %s133
      %p135 = scmp.eq.s32.totalorder %s34, 0
      %p136 = por %p134, %p135
      %s137 = ssub.s32 %s36, %s43
      %p138 = scmp.eq.s32.totalorder %s137, 0
      %s140 = sadd.s32 %s139, 1
      %s141 = scalar_select %p138, %s139, %s140
      %p144 = pneg %p138
      %p145 = scmp.eq.s32.totalorder %s28, 1
      %p146 = por %p144, %p145
      %p147 = scmp.ne.s32.totalorder %s139, %s142
      %p148 = scmp.eq.s32.totalorder %s28, 0
      %p149 = por %p147, %p148
      %p150 = scmp.ne.s32.totalorder %s139, %s142
      %p151 = scmp.eq.s32.totalorder %s33, 1
      %p152 = por %p150, %p151
      %p153 = scmp.ne.s32.totalorder %s142, %s143
      %p154 = scmp.eq.s32.totalorder %s33, 0
      %p155 = por %p153, %p154
      %p156 = scmp.ne.s32.totalorder %s142, %s143
      %p157 = scmp.eq.s32.totalorder %s34, 1
      %p158 = por %p156, %p157
      %p160 = scmp.ne.s32.totalorder %s143, %s159
      %p161 = scmp.eq.s32.totalorder %s34, 0
      %p162 = por %p160, %p161
      %s163 = ssub.s32 %s36, %s43
      %p164 = scmp.eq.s32.totalorder %s163, 0
      %s166 = sadd.s32 %s165, 1
      %s167 = scalar_select %p164, %s165, %s166
      %p170 = pneg %p164
      %p171 = scmp.eq.s32.totalorder %s28, 1
      %p172 = por %p170, %p171
      %p173 = scmp.ne.s32.totalorder %s165, %s168
      %p174 = scmp.eq.s32.totalorder %s28, 0
      %p175 = por %p173, %p174
      %p176 = scmp.ne.s32.totalorder %s165, %s168
      %p177 = scmp.eq.s32.totalorder %s33, 1
      %p178 = por %p176, %p177
      %p179 = scmp.ne.s32.totalorder %s168, %s169
      %p180 = scmp.eq.s32.totalorder %s33, 0
      %p181 = por %p179, %p180
      %p182 = scmp.ne.s32.totalorder %s168, %s169
      %p183 = scmp.eq.s32.totalorder %s34, 1
      %p184 = por %p182, %p183
      %p186 = scmp.ne.s32.totalorder %s169, %s185
      %p187 = scmp.eq.s32.totalorder %s34, 0
      %p188 = por %p186, %p187
      %s189 = ssub.s32 %s36, %s43
      %p190 = scmp.eq.s32.totalorder %s189, 0
      %s192 = sadd.s32 %s191, 1
      %s193 = scalar_select %p190, %s191, %s192
      %p196 = pneg %p190
      %p197 = scmp.eq.s32.totalorder %s28, 1
      %p198 = por %p196, %p197
      %p199 = scmp.ne.s32.totalorder %s191, %s194
      %p200 = scmp.eq.s32.totalorder %s28, 0
      %p201 = por %p199, %p200
      %p202 = scmp.ne.s32.totalorder %s191, %s194
      %p203 = scmp.eq.s32.totalorder %s33, 1
      %p204 = por %p202, %p203
      %p205 = scmp.ne.s32.totalorder %s194, %s195
      %p206 = scmp.eq.s32.totalorder %s33, 0
      %p207 = por %p205, %p206
      %p208 = scmp.ne.s32.totalorder %s194, %s195
      %p209 = scmp.eq.s32.totalorder %s34, 1
      %p210 = por %p208, %p209
      %p212 = scmp.ne.s32.totalorder %s195, %s211
      %p213 = scmp.eq.s32.totalorder %s34, 0
      %p214 = por %p212, %p213
      %s215 = ssub.s32 %s36, %s43
      %p216 = scmp.eq.s32.totalorder %s215, 0
      %s218 = sadd.s32 %s217, 1
      %s219 = scalar_select %p216, %s217, %s218
      %p222 = pneg %p216
      %p223 = scmp.eq.s32.totalorder %s28, 1
      %p224 = por %p222, %p223
      %p225 = scmp.ne.s32.totalorder %s217, %s220
      %p226 = scmp.eq.s32.totalorder %s28, 0
      %p227 = por %p225, %p226
      %p228 = scmp.ne.s32.totalorder %s217, %s220
      %p229 = scmp.eq.s32.totalorder %s33, 1
      %p230 = por %p228, %p229
      %p231 = scmp.ne.s32.totalorder %s220, %s221
      %p232 = scmp.eq.s32.totalorder %s33, 0
      %p233 = por %p231, %p232
      %p234 = scmp.ne.s32.totalorder %s220, %s221
      %p235 = scmp.eq.s32.totalorder %s34, 1
      %p236 = por %p234, %p235
      %p238 = scmp.ne.s32.totalorder %s221, %s237
      %p239 = scmp.eq.s32.totalorder %s34, 0
      %p240 = por %p238, %p239
      %s241 = ssub.s32 %s36, %s43
      %p242 = scmp.eq.s32.totalorder %s241, 0
      %s244 = sadd.s32 %s243, 1
      %s245 = scalar_select %p242, %s243, %s244
      %p248 = pneg %p242
      %p249 = scmp.eq.s32.totalorder %s28, 1
      %p250 = por %p248, %p249
      %p251 = scmp.ne.s32.totalorder %s243, %s246
      %p252 = scmp.eq.s32.totalorder %s28, 0
      %p253 = por %p251, %p252
      %p254 = scmp.ne.s32.totalorder %s243, %s246
      %p255 = scmp.eq.s32.totalorder %s33, 1
      %p256 = por %p254, %p255
      %p257 = scmp.ne.s32.totalorder %s246, %s247
      %p258 = scmp.eq.s32.totalorder %s33, 0
      %p259 = por %p257, %p258
      %p260 = scmp.ne.s32.totalorder %s246, %s247
      %p261 = scmp.eq.s32.totalorder %s34, 1
      %p262 = por %p260, %p261
      %p264 = scmp.ne.s32.totalorder %s247, %s263
      %p265 = scmp.eq.s32.totalorder %s34, 0
      %p266 = por %p264, %p265
      %s267 = ssub.s32 %s36, %s43
      %p268 = scmp.eq.s32.totalorder %s267, 0
      %s270 = sadd.s32 %s269, 1
      %s271 = scalar_select %p268, %s269, %s270
      %p274 = pneg %p268
      %p275 = scmp.eq.s32.totalorder %s28, 1
      %p276 = por %p274, %p275
      %p277 = scmp.ne.s32.totalorder %s269, %s272
      %p278 = scmp.eq.s32.totalorder %s28, 0
      %p279 = por %p277, %p278
      %p280 = scmp.ne.s32.totalorder %s269, %s272
      %p281 = scmp.eq.s32.totalorder %s33, 1
      %p282 = por %p280, %p281
      %p283 = scmp.ne.s32.totalorder %s272, %s273
      %p284 = scmp.eq.s32.totalorder %s33, 0
      %p285 = por %p283, %p284
      %p286 = scmp.ne.s32.totalorder %s272, %s273
      %p287 = scmp.eq.s32.totalorder %s34, 1
      %p288 = por %p286, %p287
      %p290 = scmp.ne.s32.totalorder %s273, %s289
      %p291 = scmp.eq.s32.totalorder %s34, 0
      %p292 = por %p290, %p291
      %s293 = ssub.s32 %s36, %s43
      %p294 = scmp.eq.s32.totalorder %s293, 0
      %s296 = sadd.s32 %s295, 1
      %s297 = scalar_select %p294, %s295, %s296
      %p300 = pneg %p294
      %p301 = scmp.eq.s32.totalorder %s28, 1
      %p302 = por %p300, %p301
      %p303 = scmp.ne.s32.totalorder %s295, %s298
      %p304 = scmp.eq.s32.totalorder %s28, 0
      %p305 = por %p303, %p304
      %p306 = scmp.ne.s32.totalorder %s295, %s298
      %p307 = scmp.eq.s32.totalorder %s33, 1
      %p308 = por %p306, %p307
      %p309 = scmp.ne.s32.totalorder %s298, %s299
      %p310 = scmp.eq.s32.totalorder %s33, 0
      %p311 = por %p309, %p310
      %p312 = scmp.ne.s32.totalorder %s298, %s299
      %p313 = scmp.eq.s32.totalorder %s34, 1
      %p314 = por %p312, %p313
      %p316 = scmp.ne.s32.totalorder %s299, %s315
      %p317 = scmp.eq.s32.totalorder %s34, 0
      %p318 = por %p316, %p317
      %s319 = ssub.s32 %s36, %s43
      %p320 = scmp.eq.s32.totalorder %s319, 0
      %s322 = sadd.s32 %s321, 1
      %s323 = scalar_select %p320, %s321, %s322
      %p326 = pneg %p320
      %p327 = scmp.eq.s32.totalorder %s28, 1
      %p328 = por %p326, %p327
      %p329 = scmp.ne.s32.totalorder %s321, %s324
      %p330 = scmp.eq.s32.totalorder %s28, 0
      %p331 = por %p329, %p330
      %p332 = scmp.ne.s32.totalorder %s321, %s324
      %p333 = scmp.eq.s32.totalorder %s33, 1
      %p334 = por %p332, %p333
      %p335 = scmp.ne.s32.totalorder %s324, %s325
      %p336 = scmp.eq.s32.totalorder %s33, 0
      %p337 = por %p335, %p336
      %p338 = scmp.ne.s32.totalorder %s324, %s325
      %p339 = scmp.eq.s32.totalorder %s34, 1
      %p340 = por %p338, %p339
      %p342 = scmp.ne.s32.totalorder %s325, %s341
      %p343 = scmp.eq.s32.totalorder %s34, 0
      %p344 = por %p342, %p343
      %s345 = ssub.s32 %s36, %s43
      %p346 = scmp.eq.s32.totalorder %s345, 0
      %s348 = sadd.s32 %s347, 1
      %s349 = scalar_select %p346, %s347, %s348
      %p352 = pneg %p346
      %p353 = scmp.eq.s32.totalorder %s28, 1
      %p354 = por %p352, %p353
      %p355 = scmp.ne.s32.totalorder %s347, %s350
      %p356 = scmp.eq.s32.totalorder %s28, 0
      %p357 = por %p355, %p356
      %p358 = scmp.ne.s32.totalorder %s347, %s350
      %p359 = scmp.eq.s32.totalorder %s33, 1
      %p360 = por %p358, %p359
      %p361 = scmp.ne.s32.totalorder %s350, %s351
      %p362 = scmp.eq.s32.totalorder %s33, 0
      %p363 = por %p361, %p362
      %p364 = scmp.ne.s32.totalorder %s350, %s351
      %p365 = scmp.eq.s32.totalorder %s34, 1
      %p366 = por %p364, %p365
      %p368 = scmp.ne.s32.totalorder %s351, %s367
      %p369 = scmp.eq.s32.totalorder %s34, 0
      %p370 = por %p368, %p369
      %s371 = ssub.s32 %s36, %s43
      %p372 = scmp.eq.s32.totalorder %s371, 0
      %s374 = sadd.s32 %s373, 1
      %s375 = scalar_select %p372, %s373, %s374
      %p378 = pneg %p372
      %p379 = scmp.eq.s32.totalorder %s28, 1
      %p380 = por %p378, %p379
      %p381 = scmp.ne.s32.totalorder %s373, %s376
      %p382 = scmp.eq.s32.totalorder %s28, 0
      %p383 = por %p381, %p382
      %p384 = scmp.ne.s32.totalorder %s373, %s376
      %p385 = scmp.eq.s32.totalorder %s33, 1
      %p386 = por %p384, %p385
      %p387 = scmp.ne.s32.totalorder %s376, %s377
      %p388 = scmp.eq.s32.totalorder %s33, 0
      %p389 = por %p387, %p388
      %p390 = scmp.ne.s32.totalorder %s376, %s377
      %p391 = scmp.eq.s32.totalorder %s34, 1
      %p392 = por %p390, %p391
      %p394 = scmp.ne.s32.totalorder %s377, %s393
      %p395 = scmp.eq.s32.totalorder %s34, 0
      %p396 = por %p394, %p395
      %s397 = ssub.s32 %s36, %s43
      %p398 = scmp.eq.s32.totalorder %s397, 0
      %s400 = sadd.s32 %s399, 1
      %s401 = scalar_select %p398, %s399, %s400
      %p404 = pneg %p398
      %p405 = scmp.eq.s32.totalorder %s28, 1
      %p406 = por %p404, %p405
      %p407 = scmp.ne.s32.totalorder %s399, %s402
      %p408 = scmp.eq.s32.totalorder %s28, 0
      %p409 = por %p407, %p408
      %p410 = scmp.ne.s32.totalorder %s399, %s402
      %p411 = scmp.eq.s32.totalorder %s33, 1
      %p412 = por %p410, %p411
      %p413 = scmp.ne.s32.totalorder %s402, %s403
      %p414 = scmp.eq.s32.totalorder %s33, 0
      %p415 = por %p413, %p414
      %p416 = scmp.ne.s32.totalorder %s402, %s403
      %p417 = scmp.eq.s32.totalorder %s34, 1
      %p418 = por %p416, %p417
      %p420 = scmp.ne.s32.totalorder %s403, %s419
      %p421 = scmp.eq.s32.totalorder %s34, 0
      %p422 = por %p420, %p421
      %s423 = ssub.s32 %s36, %s43
      %p424 = scmp.eq.s32.totalorder %s423, 0
      %s426 = sadd.s32 %s425, 1
      %s427 = scalar_select %p424, %s425, %s426
      %p430 = pneg %p424
      %p431 = scmp.eq.s32.totalorder %s28, 1
      %p432 = por %p430, %p431
      %p433 = scmp.ne.s32.totalorder %s425, %s428
      %p434 = scmp.eq.s32.totalorder %s28, 0
      %p435 = por %p433, %p434
      %p436 = scmp.ne.s32.totalorder %s425, %s428
      %p437 = scmp.eq.s32.totalorder %s33, 1
      %p438 = por %p436, %p437
      %p439 = scmp.ne.s32.totalorder %s428, %s429
      %p440 = scmp.eq.s32.totalorder %s33, 0
      %p441 = por %p439, %p440
      %p442 = scmp.ne.s32.totalorder %s428, %s429
      %p443 = scmp.eq.s32.totalorder %s34, 1
      %p444 = por %p442, %p443
      %p446 = scmp.ne.s32.totalorder %s429, %s445
      %p447 = scmp.eq.s32.totalorder %s34, 0
      %p448 = por %p446, %p447
      %s450 = sadd.s32 %s449, 1
      %p453 = scmp.eq.s32.totalorder %s28, 1
      %p454 = scmp.ne.s32.totalorder %s449, %s451
      %p455 = scmp.eq.s32.totalorder %s28, 0
      %p456 = por %p454, %p455
      %p457 = scmp.ne.s32.totalorder %s449, %s451
      %p458 = scmp.eq.s32.totalorder %s33, 1
      %p459 = por %p457, %p458
      %p460 = scmp.ne.s32.totalorder %s451, %s452
      %p461 = scmp.eq.s32.totalorder %s33, 0
      %p462 = por %p460, %p461
      %p463 = scmp.ne.s32.totalorder %s451, %s452
      %p464 = scmp.eq.s32.totalorder %s34, 1
      %p465 = por %p463, %p464
      %p467 = scmp.ne.s32.totalorder %s452, %s466
      %p468 = scmp.eq.s32.totalorder %s34, 0
      %p469 = por %p467, %p468
      %s471 = sadd.s32 %s470, 1
      %p474 = scmp.eq.s32.totalorder %s28, 1
      %p475 = scmp.ne.s32.totalorder %s470, %s472
      %p476 = scmp.eq.s32.totalorder %s28, 0
      %p477 = por %p475, %p476
      %p478 = scmp.ne.s32.totalorder %s470, %s472
      %p479 = scmp.eq.s32.totalorder %s33, 1
      %p480 = por %p478, %p479
      %p481 = scmp.ne.s32.totalorder %s472, %s473
      %p482 = scmp.eq.s32.totalorder %s33, 0
      %p483 = por %p481, %p482
      %p484 = scmp.ne.s32.totalorder %s472, %s473
      %p485 = scmp.eq.s32.totalorder %s34, 1
      %p486 = por %p484, %p485
      %p488 = scmp.ne.s32.totalorder %s473, %s487
      %p489 = scmp.eq.s32.totalorder %s34, 0
      %p490 = por %p488, %p489
      %s491 = ssub.s32 %s35, %s47
      %p492 = scmp.eq.s32.totalorder %s491, 0
      %s494 = sadd.s32 %s493, 1
      %s495 = scalar_select %p492, %s493, %s494
      %p498 = pneg %p492
      %p499 = scmp.eq.s32.totalorder %s28, 1
      %p500 = por %p498, %p499
      %p501 = scmp.ne.s32.totalorder %s493, %s496
      %p502 = scmp.eq.s32.totalorder %s28, 0
      %p503 = por %p501, %p502
      %p504 = scmp.ne.s32.totalorder %s493, %s496
      %p505 = scmp.eq.s32.totalorder %s33, 1
      %p506 = por %p504, %p505
      %p507 = scmp.ne.s32.totalorder %s496, %s497
      %p508 = scmp.eq.s32.totalorder %s33, 0
      %p509 = por %p507, %p508
      %p510 = scmp.ne.s32.totalorder %s496, %s497
      %p511 = scmp.eq.s32.totalorder %s34, 1
      %p512 = por %p510, %p511
      %p514 = scmp.ne.s32.totalorder %s497, %s513
      %p515 = scmp.eq.s32.totalorder %s34, 0
      %p516 = por %p514, %p515
      %p517 = scmp.le.s32.totalorder 1, %s28
      %p518 = scmp.lt.s32.totalorder %s28, 3
      %p519 = pnand %p517, %p518
      %p520 = pneg %p519
      // Predicated region
      $region9: #{tpu_custom_call.1} parent=5 // pred_check
        _
      $region10: #{tpu_custom_call.1} parent=5 // pred_check_branch
        %522 = sbr.rel (%p519) target = $region12
      $region11: #{tpu_custom_call.1} parent=5 // pred_region
        %s523 = ssub.s32 %s28, 1
        // Predicated region
        $region13: #{tpu_custom_call.1} parent=11 // pred_check
          %p524 = pneg %p66
        $region14: #{tpu_custom_call.1} parent=11 // pred_check_branch
          %526 = sbr.rel (%p524) target = $region16
        $region15: #{tpu_custom_call.1} parent=11 // pred_region
          %s527 = smul.u32 2, %s37
          %s529 = ssub.s32 512, 512
          %530 = vsyncadd [#allocation3], %s529
          %s531 = smul.addr %s527, 2
          %s532 = smul.addr %s531, 128
          %s533 = scalar_lea.hbm %s0, %s532
          %s534 = sshll.u32 [#allocation2], 4
          %s535 = int_to_ptr.vmem [resolvable:$true] %s534
          %540 = dma.hbm_to_vmem [thread:$0]  %s533, 512, %s535, [#allocation3], 128, 128, 8
        $region16: #{tpu_custom_call.1} parent=11 // pred_fallthru
          _
        // Predicated region
        $region17: #{tpu_custom_call.1} parent=11 // pred_check
          %p541 = pneg %p87
        $region18: #{tpu_custom_call.1} parent=11 // pred_check_branch
          %543 = sbr.rel (%p541) target = $region20
        $region19: #{tpu_custom_call.1} parent=11 // pred_region
          %s545 = ssub.s32 512, 512
          %546 = vsyncadd [#allocation6], %s545
          %s547 = sshll.u32 [#allocation5], 4
          %s548 = int_to_ptr.vmem [resolvable:$true] %s547
          %553 = dma.hbm_to_vmem [thread:$0]  %s1, 512, %s548, [#allocation6], 64, 64, 4
        $region20: #{tpu_custom_call.1} parent=11 // pred_fallthru
          _
        // Predicated region
        $region21: #{tpu_custom_call.1} parent=11 // pred_check
          %p554 = pneg %p108
        $region22: #{tpu_custom_call.1} parent=11 // pred_check_branch
          %556 = sbr.rel (%p554) target = $region24
        $region23: #{tpu_custom_call.1} parent=11 // pred_region
          %s558 = ssub.s32 16, 16
          %559 = vsyncadd [#allocation6], %s558
          %s561 = sshll.u32 [#allocation7], 4
          %s562 = int_to_ptr.vmem [resolvable:$true] %s561
          %564 = dma.hbm_to_vmem [thread:$0]  %s2, 16, %s562, [#allocation6]
        $region24: #{tpu_custom_call.1} parent=11 // pred_fallthru
          _
        // Predicated region
        $region25: #{tpu_custom_call.1} parent=11 // pred_check
          %p565 = pneg %p129
        $region26: #{tpu_custom_call.1} parent=11 // pred_check_branch
          %567 = sbr.rel (%p565) target = $region28
        $region27: #{tpu_custom_call.1} parent=11 // pred_region
          %s569 = ssub.s32 256, 256
          %570 = vsyncadd [#allocation9], %s569
          %s571 = sshll.u32 [#allocation8], 4
          %s572 = int_to_ptr.vmem [resolvable:$true] %s571
          %577 = dma.hbm_to_vmem [thread:$0]  %s3, 256, %s572, [#allocation9], 128, 128, 8
        $region28: #{tpu_custom_call.1} parent=11 // pred_fallthru
          _
        // Predicated region
        $region29: #{tpu_custom_call.1} parent=11 // pred_check
          %p578 = pneg %p462
        $region30: #{tpu_custom_call.1} parent=11 // pred_check_branch
          %580 = sbr.rel (%p578) target = $region32
        $region31: #{tpu_custom_call.1} parent=11 // pred_region
          %s582 = ssub.s32 16, 16
          %583 = vsyncadd [#allocation6], %s582
          %s585 = sshll.u32 [#allocation22], 4
          %s586 = int_to_ptr.vmem [resolvable:$true] %s585
          %588 = dma.hbm_to_vmem [thread:$0]  %s16, 16, %s586, [#allocation6]
        $region32: #{tpu_custom_call.1} parent=11 // pred_fallthru
          _
        // Predicated region
        $region33: #{tpu_custom_call.1} parent=11 // pred_check
          %p589 = pneg %p483
        $region34: #{tpu_custom_call.1} parent=11 // pred_check_branch
          %591 = sbr.rel (%p589) target = $region36
        $region35: #{tpu_custom_call.1} parent=11 // pred_region
          %s593 = ssub.s32 16, 16
          %594 = vsyncadd [#allocation9], %s593
          %s596 = sshll.u32 [#allocation23], 4
          %s597 = int_to_ptr.vmem [resolvable:$true] %s596
          %599 = dma.hbm_to_vmem [thread:$0]  %s17, 16, %s597, [#allocation9]
        $region36: #{tpu_custom_call.1} parent=11 // pred_fallthru
          _
      $region12: #{tpu_custom_call.1} parent=5 // pred_fallthru
        _
      %p600 = scmp.lt.s32.totalorder %s28, 2
      // Predicated region
      $region37: #{tpu_custom_call.1} parent=5 // pred_check
        %p601 = pneg %p600
      $region38: #{tpu_custom_call.1} parent=5 // pred_check_branch
        %603 = sbr.rel (%p601) target = $region40
      $region39: #{tpu_custom_call.1} parent=5 // pred_region
        // Predicated region
        $region41: #{tpu_custom_call.1} parent=39 // pred_check
          %p604 = pneg %p149
        $region42: #{tpu_custom_call.1} parent=39 // pred_check_branch
          %606 = sbr.rel (%p604) target = $region44
        $region43: #{tpu_custom_call.1} parent=39 // pred_region
          %s607 = sand.u32 %s28, 1
          %s608 = scalar_lea.sflag [#allocation3], %s607
          %s609 = sand.u32 %s139, 1
          %s610 = scalar_lea.vmem [#allocation10], %s609
          %s612 = ssub.s32 16, 16
          %613 = vsyncadd %s608, %s612
          %s614 = smul.addr %s36, 16
          %s615 = scalar_lea.hbm %s4, %s614
          %s617 = sshll.u32 %s610, 4
          %s618 = int_to_ptr.vmem [resolvable:$true] %s617
          %620 = dma.hbm_to_vmem [thread:$0]  %s615, 16, %s618, %s608
        $region44: #{tpu_custom_call.1} parent=39 // pred_fallthru
          _
        // Predicated region
        $region45: #{tpu_custom_call.1} parent=39 // pred_check
          %p621 = pneg %p175
        $region46: #{tpu_custom_call.1} parent=39 // pred_check_branch
          %623 = sbr.rel (%p621) target = $region48
        $region47: #{tpu_custom_call.1} parent=39 // pred_region
          %s624 = sand.u32 %s28, 1
          %s625 = scalar_lea.sflag [#allocation3], %s624
          %s626 = sand.u32 %s165, 1
          %s627 = scalar_lea.vmem [#allocation11], %s626
          %s629 = ssub.s32 16, 16
          %630 = vsyncadd %s625, %s629
          %s631 = smul.addr %s36, 16
          %s632 = scalar_lea.hbm %s5, %s631
          %s634 = sshll.u32 %s627, 4
          %s635 = int_to_ptr.vmem [resolvable:$true] %s634
          %637 = dma.hbm_to_vmem [thread:$0]  %s632, 16, %s635, %s625
        $region48: #{tpu_custom_call.1} parent=39 // pred_fallthru
          _
        // Predicated region
        $region49: #{tpu_custom_call.1} parent=39 // pred_check
          %p638 = pneg %p201
        $region50: #{tpu_custom_call.1} parent=39 // pred_check_branch
          %640 = sbr.rel (%p638) target = $region52
        $region51: #{tpu_custom_call.1} parent=39 // pred_region
          %s641 = sand.u32 %s28, 1
          %s642 = scalar_lea.sflag [#allocation3], %s641
          %s643 = sand.u32 %s191, 1
          %s644 = smul.addr %s643, 192
          %s645 = scalar_lea.vmem [#allocation12], %s644
          %s647 = ssub.s32 3072, 3072
          %648 = vsyncadd %s642, %s647
          %s649 = smul.addr %s36, 48
          %s650 = smul.addr %s649, 64
          %s651 = scalar_lea.hbm %s6, %s650
          %s652 = sshll.u32 %s645, 4
          %s653 = int_to_ptr.vmem [resolvable:$true] %s652
          %658 = dma.hbm_to_vmem [thread:$0]  %s651, 3072, %s653, %s642, 192, 192, 12
        $region52: #{tpu_custom_call.1} parent=39 // pred_fallthru
          _
        // Predicated region
        $region53: #{tpu_custom_call.1} parent=39 // pred_check
          %p659 = pneg %p227
        $region54: #{tpu_custom_call.1} parent=39 // pred_check_branch
          %661 = sbr.rel (%p659) target = $region56
        $region55: #{tpu_custom_call.1} parent=39 // pred_region
          %s662 = sand.u32 %s28, 1
          %s663 = scalar_lea.sflag [#allocation3], %s662
          %s664 = sand.u32 %s217, 1
          %s665 = smul.addr %s664, 3
          %s666 = scalar_lea.vmem [#allocation13], %s665
          %s668 = ssub.s32 48, 48
          %669 = vsyncadd %s663, %s668
          %s670 = smul.addr %s36, 3
          %s671 = smul.addr %s670, 16
          %s672 = scalar_lea.hbm %s7, %s671
          %s674 = sshll.u32 %s666, 4
          %s675 = int_to_ptr.vmem [resolvable:$true] %s674
          %677 = dma.hbm_to_vmem [thread:$0]  %s672, 48, %s675, %s663
        $region56: #{tpu_custom_call.1} parent=39 // pred_fallthru
          _
        // Predicated region
        $region57: #{tpu_custom_call.1} parent=39 // pred_check
          %p678 = pneg %p253
        $region58: #{tpu_custom_call.1} parent=39 // pred_check_branch
          %680 = sbr.rel (%p678) target = $region60
        $region59: #{tpu_custom_call.1} parent=39 // pred_region
          %s681 = sand.u32 %s28, 1
          %s682 = scalar_lea.sflag [#allocation3], %s681
          %s683 = sand.u32 %s243, 1
          %s684 = smul.addr %s683, 64
          %s685 = scalar_lea.vmem [#allocation14], %s684
          %s687 = ssub.s32 1024, 1024
          %688 = vsyncadd %s682, %s687
          %s689 = smul.addr %s36, 16
          %s690 = smul.addr %s689, 64
          %s691 = scalar_lea.hbm %s8, %s690
          %s692 = sshll.u32 %s685, 4
          %s693 = int_to_ptr.vmem [resolvable:$true] %s692
          %698 = dma.hbm_to_vmem [thread:$0]  %s691, 1024, %s693, %s682, 64, 64, 4
        $region60: #{tpu_custom_call.1} parent=39 // pred_fallthru
          _
        // Predicated region
        $region61: #{tpu_custom_call.1} parent=39 // pred_check
          %p699 = pneg %p279
        $region62: #{tpu_custom_call.1} parent=39 // pred_check_branch
          %701 = sbr.rel (%p699) target = $region64
        $region63: #{tpu_custom_call.1} parent=39 // pred_region
          %s702 = sand.u32 %s28, 1
          %s703 = scalar_lea.sflag [#allocation3], %s702
          %s704 = sand.u32 %s269, 1
          %s705 = scalar_lea.vmem [#allocation15], %s704
          %s707 = ssub.s32 16, 16
          %708 = vsyncadd %s703, %s707
          %s709 = smul.addr %s36, 16
          %s710 = scalar_lea.hbm %s9, %s709
          %s712 = sshll.u32 %s705, 4
          %s713 = int_to_ptr.vmem [resolvable:$true] %s712
          %715 = dma.hbm_to_vmem [thread:$0]  %s710, 16, %s713, %s703
        $region64: #{tpu_custom_call.1} parent=39 // pred_fallthru
          _
        // Predicated region
        $region65: #{tpu_custom_call.1} parent=39 // pred_check
          %p716 = pneg %p305
        $region66: #{tpu_custom_call.1} parent=39 // pred_check_branch
          %718 = sbr.rel (%p716) target = $region68
        $region67: #{tpu_custom_call.1} parent=39 // pred_region
          %s719 = sand.u32 %s28, 1
          %s720 = scalar_lea.sflag [#allocation3], %s719
          %s721 = sand.u32 %s295, 1
          %s722 = scalar_lea.vmem [#allocation16], %s721
          %s724 = ssub.s32 16, 16
          %725 = vsyncadd %s720, %s724
          %s726 = smul.addr %s36, 16
          %s727 = scalar_lea.hbm %s10, %s726
          %s729 = sshll.u32 %s722, 4
          %s730 = int_to_ptr.vmem [resolvable:$true] %s729
          %732 = dma.hbm_to_vmem [thread:$0]  %s727, 16, %s730, %s720
        $region68: #{tpu_custom_call.1} parent=39 // pred_fallthru
          _
        // Predicated region
        $region69: #{tpu_custom_call.1} parent=39 // pred_check
          %p733 = pneg %p331
        $region70: #{tpu_custom_call.1} parent=39 // pred_check_branch
          %735 = sbr.rel (%p733) target = $region72
        $region71: #{tpu_custom_call.1} parent=39 // pred_region
          %s736 = sand.u32 %s28, 1
          %s737 = scalar_lea.sflag [#allocation3], %s736
          %s738 = sand.u32 %s321, 1
          %s739 = scalar_lea.vmem [#allocation17], %s738
          %s741 = ssub.s32 16, 16
          %742 = vsyncadd %s737, %s741
          %s743 = smul.addr %s36, 16
          %s744 = scalar_lea.hbm %s11, %s743
          %s746 = sshll.u32 %s739, 4
          %s747 = int_to_ptr.vmem [resolvable:$true] %s746
          %749 = dma.hbm_to_vmem [thread:$0]  %s744, 16, %s747, %s737
        $region72: #{tpu_custom_call.1} parent=39 // pred_fallthru
          _
        // Predicated region
        $region73: #{tpu_custom_call.1} parent=39 // pred_check
          %p750 = pneg %p357
        $region74: #{tpu_custom_call.1} parent=39 // pred_check_branch
          %752 = sbr.rel (%p750) target = $region76
        $region75: #{tpu_custom_call.1} parent=39 // pred_region
          %s753 = sand.u32 %s28, 1
          %s754 = scalar_lea.sflag [#allocation3], %s753
          %s755 = sand.u32 %s347, 1
          %s756 = smul.addr %s755, 256
          %s757 = scalar_lea.vmem [#allocation18], %s756
          %s759 = ssub.s32 4096, 4096
          %760 = vsyncadd %s754, %s759
          %s761 = smul.addr %s36, 64
          %s762 = smul.addr %s761, 64
          %s763 = scalar_lea.hbm %s12, %s762
          %s764 = sshll.u32 %s757, 4
          %s765 = int_to_ptr.vmem [resolvable:$true] %s764
          %770 = dma.hbm_to_vmem [thread:$0]  %s763, 4096, %s765, %s754, 256, 256, 16
        $region76: #{tpu_custom_call.1} parent=39 // pred_fallthru
          _
        // Predicated region
        $region77: #{tpu_custom_call.1} parent=39 // pred_check
          %p771 = pneg %p383
        $region78: #{tpu_custom_call.1} parent=39 // pred_check_branch
          %773 = sbr.rel (%p771) target = $region80
        $region79: #{tpu_custom_call.1} parent=39 // pred_region
          %s774 = sand.u32 %s28, 1
          %s775 = scalar_lea.sflag [#allocation3], %s774
          %s776 = sand.u32 %s373, 1
          %s777 = smul.addr %s776, 4
          %s778 = scalar_lea.vmem [#allocation19], %s777
          %s780 = ssub.s32 64, 64
          %781 = vsyncadd %s775, %s780
          %s782 = smul.addr %s36, 4
          %s783 = smul.addr %s782, 16
          %s784 = scalar_lea.hbm %s13, %s783
          %s786 = sshll.u32 %s778, 4
          %s787 = int_to_ptr.vmem [resolvable:$true] %s786
          %789 = dma.hbm_to_vmem [thread:$0]  %s784, 64, %s787, %s775
        $region80: #{tpu_custom_call.1} parent=39 // pred_fallthru
          _
        // Predicated region
        $region81: #{tpu_custom_call.1} parent=39 // pred_check
          %p790 = pneg %p409
        $region82: #{tpu_custom_call.1} parent=39 // pred_check_branch
          %792 = sbr.rel (%p790) target = $region84
        $region83: #{tpu_custom_call.1} parent=39 // pred_region
          %s793 = sand.u32 %s28, 1
          %s794 = scalar_lea.sflag [#allocation3], %s793
          %s795 = sand.u32 %s399, 1
          %s796 = smul.addr %s795, 256
          %s797 = scalar_lea.vmem [#allocation20], %s796
          %s799 = ssub.s32 4096, 4096
          %800 = vsyncadd %s794, %s799
          %s801 = smul.addr %s36, 64
          %s802 = smul.addr %s801, 64
          %s803 = scalar_lea.hbm %s14, %s802
          %s804 = sshll.u32 %s797, 4
          %s805 = int_to_ptr.vmem [resolvable:$true] %s804
          %810 = dma.hbm_to_vmem [thread:$0]  %s803, 4096, %s805, %s794, 64, 64, 4
        $region84: #{tpu_custom_call.1} parent=39 // pred_fallthru
          _
        // Predicated region
        $region85: #{tpu_custom_call.1} parent=39 // pred_check
          %p811 = pneg %p435
        $region86: #{tpu_custom_call.1} parent=39 // pred_check_branch
          %813 = sbr.rel (%p811) target = $region88
        $region87: #{tpu_custom_call.1} parent=39 // pred_region
          %s814 = sand.u32 %s28, 1
          %s815 = scalar_lea.sflag [#allocation3], %s814
          %s816 = sand.u32 %s425, 1
          %s817 = scalar_lea.vmem [#allocation21], %s816
          %s819 = ssub.s32 16, 16
          %820 = vsyncadd %s815, %s819
          %s821 = smul.addr %s36, 16
          %s822 = scalar_lea.hbm %s15, %s821
          %s824 = sshll.u32 %s817, 4
          %s825 = int_to_ptr.vmem [resolvable:$true] %s824
          %827 = dma.hbm_to_vmem [thread:$0]  %s822, 16, %s825, %s815
        $region88: #{tpu_custom_call.1} parent=39 // pred_fallthru
          _
      $region40: #{tpu_custom_call.1} parent=5 // pred_fallthru
        _
      %p828 = scmp.le.s32.totalorder 1, %s28
      %p829 = scmp.lt.s32.totalorder %s28, 3
      %p830 = pnand %p828, %p829
      %p831 = pneg %p830
      // Predicated region
      $region89: #{tpu_custom_call.1} parent=5 // pred_check
        _
      $region90: #{tpu_custom_call.1} parent=5 // pred_check_branch
        %833 = sbr.rel (%p830) target = $region92
      $region91: #{tpu_custom_call.1} parent=5 // pred_region
        %s834 = ssub.s32 %s28, 1
        // Predicated region
        $region93: #{tpu_custom_call.1} parent=91 // pred_check
          %p835 = pneg %p66
        $region94: #{tpu_custom_call.1} parent=91 // pred_check_branch
          %837 = sbr.rel (%p835) target = $region96
        $region95: #{tpu_custom_call.1} parent=91 // pred_region
          %838 = dma.done [#allocation3], 512
        $region96: #{tpu_custom_call.1} parent=91 // pred_fallthru
          _
        // Predicated region
        $region97: #{tpu_custom_call.1} parent=91 // pred_check
          %p839 = pneg %p87
        $region98: #{tpu_custom_call.1} parent=91 // pred_check_branch
          %841 = sbr.rel (%p839) target = $region100
        $region99: #{tpu_custom_call.1} parent=91 // pred_region
          %842 = dma.done [#allocation6], 512
        $region100: #{tpu_custom_call.1} parent=91 // pred_fallthru
          _
        // Predicated region
        $region101: #{tpu_custom_call.1} parent=91 // pred_check
          %p843 = pneg %p108
        $region102: #{tpu_custom_call.1} parent=91 // pred_check_branch
          %845 = sbr.rel (%p843) target = $region104
        $region103: #{tpu_custom_call.1} parent=91 // pred_region
          %846 = dma.done [#allocation6], 16
        $region104: #{tpu_custom_call.1} parent=91 // pred_fallthru
          _
        // Predicated region
        $region105: #{tpu_custom_call.1} parent=91 // pred_check
          %p847 = pneg %p129
        $region106: #{tpu_custom_call.1} parent=91 // pred_check_branch
          %849 = sbr.rel (%p847) target = $region108
        $region107: #{tpu_custom_call.1} parent=91 // pred_region
          %850 = dma.done [#allocation9], 256
        $region108: #{tpu_custom_call.1} parent=91 // pred_fallthru
          _
        %s851 = sand.u32 %s33, 1
        %s852 = scalar_lea.sflag [#allocation3], %s851
        %s853 = sand.u32 %s142, 1
        %s854 = scalar_lea.vmem [#allocation10], %s853
        // Predicated region
        $region109: #{tpu_custom_call.1} parent=91 // pred_check
          %p855 = pneg %p155
        $region110: #{tpu_custom_call.1} parent=91 // pred_check_branch
          %857 = sbr.rel (%p855) target = $region112
        $region111: #{tpu_custom_call.1} parent=91 // pred_region
          %858 = dma.done %s852, 16
        $region112: #{tpu_custom_call.1} parent=91 // pred_fallthru
          _
        %s859 = sand.u32 %s33, 1
        %s860 = scalar_lea.sflag [#allocation3], %s859
        %s861 = sand.u32 %s168, 1
        %s862 = scalar_lea.vmem [#allocation11], %s861
        // Predicated region
        $region113: #{tpu_custom_call.1} parent=91 // pred_check
          %p863 = pneg %p181
        $region114: #{tpu_custom_call.1} parent=91 // pred_check_branch
          %865 = sbr.rel (%p863) target = $region116
        $region115: #{tpu_custom_call.1} parent=91 // pred_region
          %866 = dma.done %s860, 16
        $region116: #{tpu_custom_call.1} parent=91 // pred_fallthru
          _
        %s867 = sand.u32 %s33, 1
        %s868 = scalar_lea.sflag [#allocation3], %s867
        %s869 = sand.u32 %s194, 1
        %s870 = smul.addr %s869, 192
        %s871 = scalar_lea.vmem [#allocation12], %s870
        // Predicated region
        $region117: #{tpu_custom_call.1} parent=91 // pred_check
          %p872 = pneg %p207
        $region118: #{tpu_custom_call.1} parent=91 // pred_check_branch
          %874 = sbr.rel (%p872) target = $region120
        $region119: #{tpu_custom_call.1} parent=91 // pred_region
          %875 = dma.done %s868, 3072
        $region120: #{tpu_custom_call.1} parent=91 // pred_fallthru
          _
        %s876 = sand.u32 %s33, 1
        %s877 = scalar_lea.sflag [#allocation3], %s876
        %s878 = sand.u32 %s220, 1
        %s879 = smul.addr %s878, 3
        %s880 = scalar_lea.vmem [#allocation13], %s879
        // Predicated region
        $region121: #{tpu_custom_call.1} parent=91 // pred_check
          %p881 = pneg %p233
        $region122: #{tpu_custom_call.1} parent=91 // pred_check_branch
          %883 = sbr.rel (%p881) target = $region124
        $region123: #{tpu_custom_call.1} parent=91 // pred_region
          %884 = dma.done %s877, 48
        $region124: #{tpu_custom_call.1} parent=91 // pred_fallthru
          _
        %s885 = sand.u32 %s33, 1
        %s886 = scalar_lea.sflag [#allocation3], %s885
        %s887 = sand.u32 %s246, 1
        %s888 = smul.addr %s887, 64
        %s889 = scalar_lea.vmem [#allocation14], %s888
        // Predicated region
        $region125: #{tpu_custom_call.1} parent=91 // pred_check
          %p890 = pneg %p259
        $region126: #{tpu_custom_call.1} parent=91 // pred_check_branch
          %892 = sbr.rel (%p890) target = $region128
        $region127: #{tpu_custom_call.1} parent=91 // pred_region
          %893 = dma.done %s886, 1024
        $region128: #{tpu_custom_call.1} parent=91 // pred_fallthru
          _
        %s894 = sand.u32 %s33, 1
        %s895 = scalar_lea.sflag [#allocation3], %s894
        %s896 = sand.u32 %s272, 1
        %s897 = scalar_lea.vmem [#allocation15], %s896
        // Predicated region
        $region129: #{tpu_custom_call.1} parent=91 // pred_check
          %p898 = pneg %p285
        $region130: #{tpu_custom_call.1} parent=91 // pred_check_branch
          %900 = sbr.rel (%p898) target = $region132
        $region131: #{tpu_custom_call.1} parent=91 // pred_region
          %901 = dma.done %s895, 16
        $region132: #{tpu_custom_call.1} parent=91 // pred_fallthru
          _
        %s902 = sand.u32 %s33, 1
        %s903 = scalar_lea.sflag [#allocation3], %s902
        %s904 = sand.u32 %s298, 1
        %s905 = scalar_lea.vmem [#allocation16], %s904
        // Predicated region
        $region133: #{tpu_custom_call.1} parent=91 // pred_check
          %p906 = pneg %p311
        $region134: #{tpu_custom_call.1} parent=91 // pred_check_branch
          %908 = sbr.rel (%p906) target = $region136
        $region135: #{tpu_custom_call.1} parent=91 // pred_region
          %909 = dma.done %s903, 16
        $region136: #{tpu_custom_call.1} parent=91 // pred_fallthru
          _
        %s910 = sand.u32 %s33, 1
        %s911 = scalar_lea.sflag [#allocation3], %s910
        %s912 = sand.u32 %s324, 1
        %s913 = scalar_lea.vmem [#allocation17], %s912
        // Predicated region
        $region137: #{tpu_custom_call.1} parent=91 // pred_check
          %p914 = pneg %p337
        $region138: #{tpu_custom_call.1} parent=91 // pred_check_branch
          %916 = sbr.rel (%p914) target = $region140
        $region139: #{tpu_custom_call.1} parent=91 // pred_region
          %917 = dma.done %s911, 16
        $region140: #{tpu_custom_call.1} parent=91 // pred_fallthru
          _
        %s918 = sand.u32 %s33, 1
        %s919 = scalar_lea.sflag [#allocation3], %s918
        %s920 = sand.u32 %s350, 1
        %s921 = smul.addr %s920, 256
        %s922 = scalar_lea.vmem [#allocation18], %s921
        // Predicated region
        $region141: #{tpu_custom_call.1} parent=91 // pred_check
          %p923 = pneg %p363
        $region142: #{tpu_custom_call.1} parent=91 // pred_check_branch
          %925 = sbr.rel (%p923) target = $region144
        $region143: #{tpu_custom_call.1} parent=91 // pred_region
          %926 = dma.done %s919, 4096
        $region144: #{tpu_custom_call.1} parent=91 // pred_fallthru
          _
        %s927 = sand.u32 %s33, 1
        %s928 = scalar_lea.sflag [#allocation3], %s927
        %s929 = sand.u32 %s376, 1
        %s930 = smul.addr %s929, 4
        %s931 = scalar_lea.vmem [#allocation19], %s930
        // Predicated region
        $region145: #{tpu_custom_call.1} parent=91 // pred_check
          %p932 = pneg %p389
        $region146: #{tpu_custom_call.1} parent=91 // pred_check_branch
          %934 = sbr.rel (%p932) target = $region148
        $region147: #{tpu_custom_call.1} parent=91 // pred_region
          %935 = dma.done %s928, 64
        $region148: #{tpu_custom_call.1} parent=91 // pred_fallthru
          _
        %s936 = sand.u32 %s33, 1
        %s937 = scalar_lea.sflag [#allocation3], %s936
        %s938 = sand.u32 %s402, 1
        %s939 = smul.addr %s938, 256
        %s940 = scalar_lea.vmem [#allocation20], %s939
        // Predicated region
        $region149: #{tpu_custom_call.1} parent=91 // pred_check
          %p941 = pneg %p415
        $region150: #{tpu_custom_call.1} parent=91 // pred_check_branch
          %943 = sbr.rel (%p941) target = $region152
        $region151: #{tpu_custom_call.1} parent=91 // pred_region
          %944 = dma.done %s937, 4096
        $region152: #{tpu_custom_call.1} parent=91 // pred_fallthru
          _
        %s945 = sand.u32 %s33, 1
        %s946 = scalar_lea.sflag [#allocation3], %s945
        %s947 = sand.u32 %s428, 1
        %s948 = scalar_lea.vmem [#allocation21], %s947
        // Predicated region
        $region153: #{tpu_custom_call.1} parent=91 // pred_check
          %p949 = pneg %p441
        $region154: #{tpu_custom_call.1} parent=91 // pred_check_branch
          %951 = sbr.rel (%p949) target = $region156
        $region155: #{tpu_custom_call.1} parent=91 // pred_region
          %952 = dma.done %s946, 16
        $region156: #{tpu_custom_call.1} parent=91 // pred_fallthru
          _
        // Predicated region
        $region157: #{tpu_custom_call.1} parent=91 // pred_check
          %p953 = pneg %p462
        $region158: #{tpu_custom_call.1} parent=91 // pred_check_branch
          %955 = sbr.rel (%p953) target = $region160
        $region159: #{tpu_custom_call.1} parent=91 // pred_region
          %956 = dma.done [#allocation6], 16
        $region160: #{tpu_custom_call.1} parent=91 // pred_fallthru
          _
        // Predicated region
        $region161: #{tpu_custom_call.1} parent=91 // pred_check
          %p957 = pneg %p483
        $region162: #{tpu_custom_call.1} parent=91 // pred_check_branch
          %959 = sbr.rel (%p957) target = $region164
        $region163: #{tpu_custom_call.1} parent=91 // pred_region
          %960 = dma.done [#allocation9], 16
        $region164: #{tpu_custom_call.1} parent=91 // pred_fallthru
          _
        %p961 = pneg %p66
        %p962 = pneg %p63
        %p963 = pneg %p87
        %p964 = pneg %p84
        %p965 = pneg %p108
        %p966 = pneg %p105
        %p967 = pneg %p129
        %p968 = pneg %p126
        %s969 = sand.u32 %s33, 1
        %s970 = scalar_lea.sflag [#allocation3], %s969
        %s971 = sand.u32 %s142, 1
        %s972 = scalar_lea.vmem [#allocation10], %s971
        %p973 = pneg %p155
        %p974 = pneg %p152
        %s975 = sand.u32 %s33, 1
        %s976 = scalar_lea.sflag [#allocation3], %s975
        %s977 = sand.u32 %s168, 1
        %s978 = scalar_lea.vmem [#allocation11], %s977
        %p979 = pneg %p181
        %p980 = pneg %p178
        %s981 = sand.u32 %s33, 1
        %s982 = scalar_lea.sflag [#allocation3], %s981
        %s983 = sand.u32 %s194, 1
        %s984 = smul.addr %s983, 192
        %s985 = scalar_lea.vmem [#allocation12], %s984
        %p986 = pneg %p207
        %p987 = pneg %p204
        %s988 = sand.u32 %s33, 1
        %s989 = scalar_lea.sflag [#allocation3], %s988
        %s990 = sand.u32 %s220, 1
        %s991 = smul.addr %s990, 3
        %s992 = scalar_lea.vmem [#allocation13], %s991
        %p993 = pneg %p233
        %p994 = pneg %p230
        %s995 = sand.u32 %s33, 1
        %s996 = scalar_lea.sflag [#allocation3], %s995
        %s997 = sand.u32 %s246, 1
        %s998 = smul.addr %s997, 64
        %s999 = scalar_lea.vmem [#allocation14], %s998
        %p1000 = pneg %p259
        %p1001 = pneg %p256
        %s1002 = sand.u32 %s33, 1
        %s1003 = scalar_lea.sflag [#allocation3], %s1002
        %s1004 = sand.u32 %s272, 1
        %s1005 = scalar_lea.vmem [#allocation15], %s1004
        %p1006 = pneg %p285
        %p1007 = pneg %p282
        %s1008 = sand.u32 %s33, 1
        %s1009 = scalar_lea.sflag [#allocation3], %s1008
        %s1010 = sand.u32 %s298, 1
        %s1011 = scalar_lea.vmem [#allocation16], %s1010
        %p1012 = pneg %p311
        %p1013 = pneg %p308
        %s1014 = sand.u32 %s33, 1
        %s1015 = scalar_lea.sflag [#allocation3], %s1014
        %s1016 = sand.u32 %s324, 1
        %s1017 = scalar_lea.vmem [#allocation17], %s1016
        %p1018 = pneg %p337
        %p1019 = pneg %p334
        %s1020 = sand.u32 %s33, 1
        %s1021 = scalar_lea.sflag [#allocation3], %s1020
        %s1022 = sand.u32 %s350, 1
        %s1023 = smul.addr %s1022, 256
        %s1024 = scalar_lea.vmem [#allocation18], %s1023
        %p1025 = pneg %p363
        %p1026 = pneg %p360
        %s1027 = sand.u32 %s33, 1
        %s1028 = scalar_lea.sflag [#allocation3], %s1027
        %s1029 = sand.u32 %s376, 1
        %s1030 = smul.addr %s1029, 4
        %s1031 = scalar_lea.vmem [#allocation19], %s1030
        %p1032 = pneg %p389
        %p1033 = pneg %p386
        %s1034 = sand.u32 %s33, 1
        %s1035 = scalar_lea.sflag [#allocation3], %s1034
        %s1036 = sand.u32 %s402, 1
        %s1037 = smul.addr %s1036, 256
        %s1038 = scalar_lea.vmem [#allocation20], %s1037
        %p1039 = pneg %p415
        %p1040 = pneg %p412
        %s1041 = sand.u32 %s33, 1
        %s1042 = scalar_lea.sflag [#allocation3], %s1041
        %s1043 = sand.u32 %s428, 1
        %s1044 = scalar_lea.vmem [#allocation21], %s1043
        %p1045 = pneg %p441
        %p1046 = pneg %p438
        %p1047 = pneg %p462
        %p1048 = pneg %p459
        %p1049 = pneg %p483
        %p1050 = pneg %p480
        %p1051 = pneg %p509
        %p1052 = pneg %p506
        %s1053 = smul.u32 2, %s37
        %s1054 = smul.u32 2, %s37
        %p1056 = scmp.eq.s32.totalorder %s38, 0
        // Predicated region
        $region165: #{tpu_custom_call.1} parent=91 // pred_check
          %p1057 = pneg %p1056
        $region166: #{tpu_custom_call.1} parent=91 // pred_check_branch
          %1059 = sbr.rel (%p1057) target = $region168
        $region167: #{tpu_custom_call.1} parent=91 // pred_region
          %v1060 = vld [vmem:[#allocation2] sm:$0xff]
          %v1061 = vld [vmem:[#allocation2 + $0x8] sm:$0xff]
          %v1062 = vld [vmem:[#allocation2 + $0x10] sm:$0xff]
          %v1063 = vld [vmem:[#allocation2 + $0x18] sm:$0xff]
          %v1064 = vpack.c.bf16 %v1061, %v1060
          %v1065 = vpack.c.bf16 %v1063, %v1062
          %v1066 = vld [vmem:[#allocation5] sm:$0xf]
          %v1067 = vld [vmem:[#allocation5 + $0x4] sm:$0xf]
          %v1068 = vld [vmem:[#allocation5 + $0x8] sm:$0xf]
          %v1069 = vld [vmem:[#allocation5 + $0xc] sm:$0xf]
          %v1070 = vld [vmem:[#allocation5 + $0x10] sm:$0xf]
          %v1071 = vld [vmem:[#allocation5 + $0x14] sm:$0xf]
          %v1072 = vld [vmem:[#allocation5 + $0x18] sm:$0xf]
          %v1073 = vld [vmem:[#allocation5 + $0x1c] sm:$0xf]
          %v1074 = vld [vmem:[#allocation7] sm:$0x1]
          %v1076 = vlaneseq
          %v1077 = vshrl.u32 %v1076, 7
          %v1078 = vsub.s32 0, %v1077
          %v1079 = vrot.slane %v1074, %v1078
          %v1089 = vunpack.c.l.b16 %v1066
          %v1090 = vunpack.c.l.b16 %v1067
          %v1091 = vunpack.c.l.b16 %v1068
          %v1092 = vunpack.c.l.b16 %v1069
          %v1093 = vunpack.c.l.b16 %v1070
          %v1094 = vunpack.c.l.b16 %v1071
          %v1095 = vunpack.c.l.b16 %v1072
          %v1096 = vunpack.c.l.b16 %v1073
          %v1097 = vpack.c.b16 %v1090, %v1089
          %v1098 = vpack.c.b16 %v1092, %v1091
          %v1099 = vpack.c.b16 %v1094, %v1093
          %v1100 = vpack.c.b16 %v1096, %v1095
          %vm1105 = vcmask 523264
          %v1107 = vsel %vm1105, %v1064, 0
          %v1110 = vsel %vm1105, %v1065, 0
          %1112 = vmatprep.subr.bf16.mxu0 0
          %1113 = vmatpush1.bf16.msra.mxu0 %v1097
          %1114 = vmatprep.subr.bf16.mxu0 0
          %1115 = vmatpush1.bf16.msra.mxu0 %v1098
          %1116 = vmatprep.subr.bf16.mxu0 0
          %1117 = vmatpush1.bf16.msra.mxu0 %v1099
          %1118 = vmatprep.subr.bf16.mxu0 0
          %1119 = vmatpush1.bf16.msra.mxu0 %v1100
          %1120 = vmatprep.subr.bf16.mxu0 0
          %1121 = vmatpush1.bf16.msra.mxu0 0
          %1122 = vmatprep.subr.bf16.mxu0 0
          %1123 = vmatpush1.bf16.msra.mxu0 0
          %1124 = vmatprep.subr.bf16.mxu0 0
          %1125 = vmatpush1.bf16.msra.mxu0 0
          %1126 = vmatprep.subr.bf16.mxu0 0
          %1127 = vmatpush1.bf16.msra.mxu0 0
          %1128 = vmatprep.subr.bf16.mxu0 0
          %1129 = vmatpush1.bf16.msra.mxu0 0
          %1130 = vmatprep.subr.bf16.mxu0 0
          %1131 = vmatpush1.bf16.msra.mxu0 0
          %1132 = vmatprep.subr.bf16.mxu0 0
          %1133 = vmatpush1.bf16.msra.mxu0 0
          %1134 = vmatprep.subr.bf16.mxu0 0
          %1135 = vmatpush1.bf16.msra.mxu0 0
          %1136 = vmatprep.subr.bf16.mxu0 0
          %1137 = vmatpush1.bf16.msra.mxu0 0
          %1138 = vmatprep.subr.bf16.mxu0 0
          %1139 = vmatpush1.bf16.msra.mxu0 0
          %1140 = vmatprep.subr.bf16.mxu0 0
          %1141 = vmatpush1.bf16.msra.mxu0 0
          %1142 = vmatprep.subr.bf16.mxu0 0
          %1143 = vmatpush1.bf16.msra.mxu0 0
          %1144 = vmatprep.mubr.bf16.mxu0 0
          %1145 = vmatmul.mubr.bf16.gmra.mrb[0].mxu0 %v1107
          %v1146 = vpop.f32.mrb[0].mxu0
          %v1147 = vadd.f32 %v1079, %v1146
          %v1148 = vpop.f32.mrb[0].mxu0
          %v1149 = vpop.f32.mrb[0].mxu0
          %v1150 = vadd.f32 %v1079, %v1149
          %v1151 = vpop.f32.mrb[0].mxu0
          %1152 = vmatprep.mubr.bf16.mxu0 0
          %1153 = vmatmul.mubr.bf16.gmra.mrb[0].mxu0 %v1110
          %v1154 = vpop.f32.mrb[0].mxu0
          %v1155 = vadd.f32 %v1079, %v1154
          %v1156 = vpop.f32.mrb[0].mxu0
          %v1157 = vpop.f32.mrb[0].mxu0
          %v1158 = vadd.f32 %v1079, %v1157
          %v1159 = vpop.f32.mrb[0].mxu0
          %1160 = vdwg.mxu0
          %v1161 = vld [vmem:[#allocation8] sm:$0xff]
          %v1162 = vld [vmem:[#allocation8 + $0x8] sm:$0xff]
          %v1163 = vadd.f32 %v1147, %v1161
          %v1164 = vadd.f32 %v1150, %v1162
          %v1165 = vadd.f32 %v1155, %v1161
          %v1166 = vadd.f32 %v1158, %v1162
          %1167 = vst [vmem:[#allocation24] sm:$0xff] %v1163
          %1168 = vst [vmem:[#allocation24 + $0x8] sm:$0xff] %v1164
          %1169 = vst [vmem:[#allocation24 + $0x10] sm:$0xff] %v1165
          %1170 = vst [vmem:[#allocation24 + $0x18] sm:$0xff] %v1166
        $region168: #{tpu_custom_call.1} parent=91 // pred_fallthru
          _
        %v1171 = vld [vmem:[#allocation24] sm:$0xff]
        %v1172 = vld [vmem:[#allocation24 + $0x8] sm:$0xff]
        %v1173 = vld [vmem:[#allocation24 + $0x10] sm:$0xff]
        %v1174 = vld [vmem:[#allocation24 + $0x18] sm:$0xff]
        %v1175 = vld [vmem:[%s854] sm:$0x1]
        %v1176 = vld [vmem:[%s862] sm:$0x1]
        %1177 = vadd.xlane.f32.xlu0 %v1171
        %v1178 = vpop.xlane.xlu0 %1177
        %1179 = vadd.xlane.f32.xlu0 %v1172
        %v1180 = vpop.xlane.xlu0 %1179
        %1181 = vadd.xlane.f32.xlu0 %v1173
        %v1182 = vpop.xlane.xlu0 %1181
        %1183 = vadd.xlane.f32.xlu0 %v1174
        %v1184 = vpop.xlane.xlu0 %1183
        %v1185 = vrcp.pop 128.0
        %v1186 = vmul.f32 %v1178, %v1185
        %v1187 = vmul.f32 %v1180, %v1185
        %v1188 = vmul.f32 %v1182, %v1185
        %v1189 = vmul.f32 %v1184, %v1185
        %v1190 = vsub.f32 %v1171, %v1186
        %v1191 = vsub.f32 %v1172, %v1187
        %v1192 = vsub.f32 %v1173, %v1188
        %v1193 = vsub.f32 %v1174, %v1189
        %v1194 = vmul.f32 %v1190, %v1190
        %v1195 = vmul.f32 %v1191, %v1191
        %v1196 = vmul.f32 %v1192, %v1192
        %v1197 = vmul.f32 %v1193, %v1193
        %1198 = vadd.xlane.f32.xlu0 %v1194
        %v1199 = vpop.xlane.xlu0 %1198
        %1200 = vadd.xlane.f32.xlu0 %v1195
        %v1201 = vpop.xlane.xlu0 %1200
        %1202 = vadd.xlane.f32.xlu0 %v1196
        %v1203 = vpop.xlane.xlu0 %1202
        %1204 = vadd.xlane.f32.xlu0 %v1197
        %v1205 = vpop.xlane.xlu0 %1204
        %v1206 = vmul.f32 %v1199, %v1185
        %v1207 = vmul.f32 %v1201, %v1185
        %v1208 = vmul.f32 %v1203, %v1185
        %v1209 = vmul.f32 %v1205, %v1185
        %v1210 = vadd.f32 %v1206, 1e-05
        %v1211 = vadd.f32 %v1207, 1e-05
        %v1212 = vadd.f32 %v1208, 1e-05
        %v1213 = vadd.f32 %v1209, 1e-05
        %v1214 = vrsqrt.pop %v1210
        %v1215 = vrsqrt.pop %v1211
        %v1216 = vrsqrt.pop %v1212
        %v1217 = vrsqrt.pop %v1213
        %v1218 = vmul.f32 %v1190, %v1214
        %v1219 = vmul.f32 %v1191, %v1215
        %v1220 = vmul.f32 %v1192, %v1216
        %v1221 = vmul.f32 %v1193, %v1217
        %v1223 = vlaneseq
        %v1224 = vshrl.u32 %v1223, 7
        %v1225 = vsub.s32 0, %v1224
        %v1226 = vrot.slane %v1175, %v1225
        %v1228 = vmul.f32 %v1218, %v1226
        %v1229 = vmul.f32 %v1219, %v1226
        %v1230 = vmul.f32 %v1220, %v1226
        %v1231 = vmul.f32 %v1221, %v1226
        %v1233 = vlaneseq
        %v1234 = vshrl.u32 %v1233, 7
        %v1235 = vsub.s32 0, %v1234
        %v1236 = vrot.slane %v1176, %v1235
        %v1238 = vadd.f32 %v1228, %v1236
        %v1239 = vadd.f32 %v1229, %v1236
        %v1240 = vadd.f32 %v1230, %v1236
        %v1241 = vadd.f32 %v1231, %v1236
        %v1242 = vpack.c.bf16 %v1239, %v1238
        %v1243 = vpack.c.bf16 %v1241, %v1240
        %v1244 = vld [vmem:[%s871] sm:$0xff]
        %v1245 = vld [vmem:[%s871 + $0x8] sm:$0xf]
        %v1246 = vld [vmem:[%s871 + $0xc] sm:$0xff]
        %v1247 = vld [vmem:[%s871 + $0x14] sm:$0xf]
        %v1248 = vld [vmem:[%s871 + $0x18] sm:$0xff]
        %v1249 = vld [vmem:[%s871 + $0x20] sm:$0xf]
        %v1250 = vld [vmem:[%s871 + $0x24] sm:$0xff]
        %v1251 = vld [vmem:[%s871 + $0x2c] sm:$0xf]
        %v1252 = vld [vmem:[%s871 + $0x30] sm:$0xff]
        %v1253 = vld [vmem:[%s871 + $0x38] sm:$0xf]
        %v1254 = vld [vmem:[%s871 + $0x3c] sm:$0xff]
        %v1255 = vld [vmem:[%s871 + $0x44] sm:$0xf]
        %v1256 = vld [vmem:[%s871 + $0x48] sm:$0xff]
        %v1257 = vld [vmem:[%s871 + $0x50] sm:$0xf]
        %v1258 = vld [vmem:[%s871 + $0x54] sm:$0xff]
        %v1259 = vld [vmem:[%s871 + $0x5c] sm:$0xf]
        %v1260 = vld [vmem:[%s871 + $0x60] sm:$0xff]
        %v1261 = vld [vmem:[%s871 + $0x68] sm:$0xf]
        %v1262 = vld [vmem:[%s871 + $0x6c] sm:$0xff]
        %v1263 = vld [vmem:[%s871 + $0x74] sm:$0xf]
        %v1264 = vld [vmem:[%s871 + $0x78] sm:$0xff]
        %v1265 = vld [vmem:[%s871 + $0x80] sm:$0xf]
        %v1266 = vld [vmem:[%s871 + $0x84] sm:$0xff]
        %v1267 = vld [vmem:[%s871 + $0x8c] sm:$0xf]
        %v1268 = vld [vmem:[%s871 + $0x90] sm:$0xff]
        %v1269 = vld [vmem:[%s871 + $0x98] sm:$0xf]
        %v1270 = vld [vmem:[%s871 + $0x9c] sm:$0xff]
        %v1271 = vld [vmem:[%s871 + $0xa4] sm:$0xf]
        %v1272 = vld [vmem:[%s871 + $0xa8] sm:$0xff]
        %v1273 = vld [vmem:[%s871 + $0xb0] sm:$0xf]
        %v1274 = vld [vmem:[%s871 + $0xb4] sm:$0xff]
        %v1275 = vld [vmem:[%s871 + $0xbc] sm:$0xf]
        %v1276 = vld [vmem:[%s880] sm:$0x7]
        %v1278 = vlaneseq
        %v1279 = vshrl.u32 %v1278, 7
        %v1280 = vsub.s32 0, %v1279
        %v1281 = vrot.slane %v1276, %v1280
        %v1282 = vlaneseq
        %v1283 = vshrl.u32 %v1282, 7
        %v1284 = vsub.s32 1, %v1283
        %v1285 = vrot.slane %v1276, %v1284
        %v1286 = vlaneseq
        %v1287 = vshrl.u32 %v1286, 7
        %v1288 = vsub.s32 2, %v1287
        %v1289 = vrot.slane %v1276, %v1288
        %v1325 = vunpack.c.l.b16 %v1244
        %v1326 = vunpack.c.h.b16 %v1244
        %v1327 = vunpack.c.l.b16 %v1245
        %v1328 = vunpack.c.l.b16 %v1246
        %v1329 = vunpack.c.h.b16 %v1246
        %v1330 = vunpack.c.l.b16 %v1247
        %v1331 = vunpack.c.l.b16 %v1248
        %v1332 = vunpack.c.h.b16 %v1248
        %v1333 = vunpack.c.l.b16 %v1249
        %v1334 = vunpack.c.l.b16 %v1250
        %v1335 = vunpack.c.h.b16 %v1250
        %v1336 = vunpack.c.l.b16 %v1251
        %v1337 = vunpack.c.l.b16 %v1252
        %v1338 = vunpack.c.h.b16 %v1252
        %v1339 = vunpack.c.l.b16 %v1253
        %v1340 = vunpack.c.l.b16 %v1254
        %v1341 = vunpack.c.h.b16 %v1254
        %v1342 = vunpack.c.l.b16 %v1255
        %v1343 = vunpack.c.l.b16 %v1256
        %v1344 = vunpack.c.h.b16 %v1256
        %v1345 = vunpack.c.l.b16 %v1257
        %v1346 = vunpack.c.l.b16 %v1258
        %v1347 = vunpack.c.h.b16 %v1258
        %v1348 = vunpack.c.l.b16 %v1259
        %v1349 = vunpack.c.l.b16 %v1260
        %v1350 = vunpack.c.h.b16 %v1260
        %v1351 = vunpack.c.l.b16 %v1261
        %v1352 = vunpack.c.l.b16 %v1262
        %v1353 = vunpack.c.h.b16 %v1262
        %v1354 = vunpack.c.l.b16 %v1263
        %v1355 = vunpack.c.l.b16 %v1264
        %v1356 = vunpack.c.h.b16 %v1264
        %v1357 = vunpack.c.l.b16 %v1265
        %v1358 = vunpack.c.l.b16 %v1266
        %v1359 = vunpack.c.h.b16 %v1266
        %v1360 = vunpack.c.l.b16 %v1267
        %v1361 = vunpack.c.l.b16 %v1268
        %v1362 = vunpack.c.h.b16 %v1268
        %v1363 = vunpack.c.l.b16 %v1269
        %v1364 = vunpack.c.l.b16 %v1270
        %v1365 = vunpack.c.h.b16 %v1270
        %v1366 = vunpack.c.l.b16 %v1271
        %v1367 = vunpack.c.l.b16 %v1272
        %v1368 = vunpack.c.h.b16 %v1272
        %v1369 = vunpack.c.l.b16 %v1273
        %v1370 = vunpack.c.l.b16 %v1274
        %v1371 = vunpack.c.h.b16 %v1274
        %v1372 = vunpack.c.l.b16 %v1275
        %v1373 = vpack.c.b16 %v1328, %v1325
        %v1374 = vpack.c.b16 %v1329, %v1326
        %v1375 = vpack.c.b16 %v1330, %v1327
        %v1376 = vpack.c.b16 %v1334, %v1331
        %v1377 = vpack.c.b16 %v1335, %v1332
        %v1378 = vpack.c.b16 %v1336, %v1333
        %v1379 = vpack.c.b16 %v1340, %v1337
        %v1380 = vpack.c.b16 %v1341, %v1338
        %v1381 = vpack.c.b16 %v1342, %v1339
        %v1382 = vpack.c.b16 %v1346, %v1343
        %v1383 = vpack.c.b16 %v1347, %v1344
        %v1384 = vpack.c.b16 %v1348, %v1345
        %v1385 = vpack.c.b16 %v1352, %v1349
        %v1386 = vpack.c.b16 %v1353, %v1350
        %v1387 = vpack.c.b16 %v1354, %v1351
        %v1388 = vpack.c.b16 %v1358, %v1355
        %v1389 = vpack.c.b16 %v1359, %v1356
        %v1390 = vpack.c.b16 %v1360, %v1357
        %v1391 = vpack.c.b16 %v1364, %v1361
        %v1392 = vpack.c.b16 %v1365, %v1362
        %v1393 = vpack.c.b16 %v1366, %v1363
        %v1394 = vpack.c.b16 %v1370, %v1367
        %v1395 = vpack.c.b16 %v1371, %v1368
        %v1396 = vpack.c.b16 %v1372, %v1369
        %1421 = vmatprep.subr.bf16.mxu0 %v1374
        %1422 = vmatpush1.bf16.msra.mxu0 %v1373
        %1423 = vmatprep.subr.bf16.mxu0 %v1377
        %1424 = vmatpush1.bf16.msra.mxu0 %v1376
        %1425 = vmatprep.subr.bf16.mxu0 %v1380
        %1426 = vmatpush1.bf16.msra.mxu0 %v1379
        %1427 = vmatprep.subr.bf16.mxu0 %v1383
        %1428 = vmatpush1.bf16.msra.mxu0 %v1382
        %1429 = vmatprep.subr.bf16.mxu0 %v1386
        %1430 = vmatpush1.bf16.msra.mxu0 %v1385
        %1431 = vmatprep.subr.bf16.mxu0 %v1389
        %1432 = vmatpush1.bf16.msra.mxu0 %v1388
        %1433 = vmatprep.subr.bf16.mxu0 %v1392
        %1434 = vmatpush1.bf16.msra.mxu0 %v1391
        %1435 = vmatprep.subr.bf16.mxu0 %v1395
        %1436 = vmatpush1.bf16.msra.mxu0 %v1394
        %1437 = vmatprep.subr.bf16.mxu0 0
        %1438 = vmatpush1.bf16.msra.mxu0 0
        %1439 = vmatprep.subr.bf16.mxu0 0
        %1440 = vmatpush1.bf16.msra.mxu0 0
        %1441 = vmatprep.subr.bf16.mxu0 0
        %1442 = vmatpush1.bf16.msra.mxu0 0
        %1443 = vmatprep.subr.bf16.mxu0 0
        %1444 = vmatpush1.bf16.msra.mxu0 0
        %1445 = vmatprep.subr.bf16.mxu0 0
        %1446 = vmatpush1.bf16.msra.mxu0 0
        %1447 = vmatprep.subr.bf16.mxu0 0
        %1448 = vmatpush1.bf16.msra.mxu0 0
        %1449 = vmatprep.subr.bf16.mxu0 0
        %1450 = vmatpush1.bf16.msra.mxu0 0
        %1451 = vmatprep.subr.bf16.mxu0 0
        %1452 = vmatpush1.bf16.msra.mxu0 0
        %1453 = vmatprep.mubr.bf16.mxu0 0
        %1454 = vmatmul.mubr.bf16.gmra.mrb[0].mxu0 %v1242
        %v1455 = vpop.f32.mrb[0].mxu0
        %v1456 = vadd.f32 %v1281, %v1455
        %v1457 = vpop.f32.mrb[0].mxu0
        %v1458 = vadd.f32 %v1285, %v1457
        %v1459 = vpop.f32.mrb[0].mxu0
        %v1460 = vadd.f32 %v1281, %v1459
        %v1461 = vpop.f32.mrb[0].mxu0
        %v1462 = vadd.f32 %v1285, %v1461
        %1463 = vmatprep.mubr.bf16.mxu0 0
        %1464 = vmatmul.mubr.bf16.gmra.mrb[0].mxu0 %v1243
        %v1465 = vpop.f32.mrb[0].mxu0
        %v1466 = vadd.f32 %v1281, %v1465
        %v1467 = vpop.f32.mrb[0].mxu0
        %v1468 = vadd.f32 %v1285, %v1467
        %v1469 = vpop.f32.mrb[0].mxu0
        %v1470 = vadd.f32 %v1281, %v1469
        %v1471 = vpop.f32.mrb[0].mxu0
        %v1472 = vadd.f32 %v1285, %v1471
        %1473 = vdwg.mxu0
        %1474 = vmatprep.subr.bf16.mxu0 0
        %1475 = vmatpush1.bf16.msra.mxu0 %v1375
        %1476 = vmatprep.subr.bf16.mxu0 0
        %1477 = vmatpush1.bf16.msra.mxu0 %v1378
        %1478 = vmatprep.subr.bf16.mxu0 0
        %1479 = vmatpush1.bf16.msra.mxu0 %v1381
        %1480 = vmatprep.subr.bf16.mxu0 0
        %1481 = vmatpush1.bf16.msra.mxu0 %v1384
        %1482 = vmatprep.subr.bf16.mxu0 0
        %1483 = vmatpush1.bf16.msra.mxu0 %v1387
        %1484 = vmatprep.subr.bf16.mxu0 0
        %1485 = vmatpush1.bf16.msra.mxu0 %v1390
        %1486 = vmatprep.subr.bf16.mxu0 0
        %1487 = vmatpush1.bf16.msra.mxu0 %v1393
        %1488 = vmatprep.subr.bf16.mxu0 0
        %1489 = vmatpush1.bf16.msra.mxu0 %v1396
        %1490 = vmatprep.subr.bf16.mxu0 0
        %1491 = vmatpush1.bf16.msra.mxu0 0
        %1492 = vmatprep.subr.bf16.mxu0 0
        %1493 = vmatpush1.bf16.msra.mxu0 0
        %1494 = vmatprep.subr.bf16.mxu0 0
        %1495 = vmatpush1.bf16.msra.mxu0 0
        %1496 = vmatprep.subr.bf16.mxu0 0
        %1497 = vmatpush1.bf16.msra.mxu0 0
        %1498 = vmatprep.subr.bf16.mxu0 0
        %1499 = vmatpush1.bf16.msra.mxu0 0
        %1500 = vmatprep.subr.bf16.mxu0 0
        %1501 = vmatpush1.bf16.msra.mxu0 0
        %1502 = vmatprep.subr.bf16.mxu0 0
        %1503 = vmatpush1.bf16.msra.mxu0 0
        %1504 = vmatprep.subr.bf16.mxu0 0
        %1505 = vmatpush1.bf16.msra.mxu0 0
        %1506 = vmatprep.mubr.bf16.mxu0 0
        %1507 = vmatmul.mubr.bf16.gmra.mrb[0].mxu0 %v1242
        %v1508 = vpop.f32.mrb[0].mxu0
        %v1509 = vadd.f32 %v1289, %v1508
        %v1510 = vpop.f32.mrb[0].mxu0
        %v1511 = vpop.f32.mrb[0].mxu0
        %v1512 = vadd.f32 %v1289, %v1511
        %v1513 = vpop.f32.mrb[0].mxu0
        %1514 = vmatprep.mubr.bf16.mxu0 0
        %1515 = vmatmul.mubr.bf16.gmra.mrb[0].mxu0 %v1243
        %v1516 = vpop.f32.mrb[0].mxu0
        %v1517 = vadd.f32 %v1289, %v1516
        %v1518 = vpop.f32.mrb[0].mxu0
        %v1519 = vpop.f32.mrb[0].mxu0
        %v1520 = vadd.f32 %v1289, %v1519
        %v1521 = vpop.f32.mrb[0].mxu0
        %1522 = vdwg.mxu0
        %v1523 = vpack.c.bf16 %v1460, %v1456
        %v1524 = vpack.c.bf16 %v1470, %v1466
        %v1525 = vpack.c.bf16 %v1462, %v1458
        %v1526 = vpack.c.bf16 %v1472, %v1468
        %v1527 = vpack.c.bf16 %v1512, %v1509
        %v1528 = vpack.c.bf16 %v1520, %v1517
        %vm1529 = vcmask 261120
        %v1531 = vsel %vm1529, %v1523, 0
        %v1534 = vsel %vm1529, %v1525, 0
        %1536 = vmatprep.subr.bf16.mxu0 0
        %1537 = vmatpush1.bf16.xpose.msra.mxu0 %v1534
        %1538 = vmatprep.subr.bf16.mxu0 0
        %1539 = vmatpush1.bf16.xpose.msra.mxu0 0
        %1540 = vmatprep.subr.bf16.mxu0 0
        %1541 = vmatpush1.bf16.xpose.msra.mxu0 0
        %1542 = vmatprep.subr.bf16.mxu0 0
        %1543 = vmatpush1.bf16.xpose.msra.mxu0 0
        %1544 = vmatprep.subr.bf16.mxu0 0
        %1545 = vmatpush1.bf16.xpose.msra.mxu0 0
        %1546 = vmatprep.subr.bf16.mxu0 0
        %1547 = vmatpush1.bf16.xpose.msra.mxu0 0
        %1548 = vmatprep.subr.bf16.mxu0 0
        %1549 = vmatpush1.bf16.xpose.msra.mxu0 0
        %1550 = vmatprep.subr.bf16.mxu0 0
        %1551 = vmatpush1.bf16.xpose.msra.mxu0 0
        %1552 = vmatprep.subr.bf16.mxu0 0
        %1553 = vmatpush1.bf16.xpose.msra.mxu0 0
        %1554 = vmatprep.subr.bf16.mxu0 0
        %1555 = vmatpush1.bf16.xpose.msra.mxu0 0
        %1556 = vmatprep.subr.bf16.mxu0 0
        %1557 = vmatpush1.bf16.xpose.msra.mxu0 0
        %1558 = vmatprep.subr.bf16.mxu0 0
        %1559 = vmatpush1.bf16.xpose.msra.mxu0 0
        %1560 = vmatprep.subr.bf16.mxu0 0
        %1561 = vmatpush1.bf16.xpose.msra.mxu0 0
        %1562 = vmatprep.subr.bf16.mxu0 0
        %1563 = vmatpush1.bf16.xpose.msra.mxu0 0
        %1564 = vmatprep.subr.bf16.mxu0 0
        %1565 = vmatpush1.bf16.xpose.msra.mxu0 0
        %1566 = vmatprep.subr.bf16.mxu0 0
        %1567 = vmatpush1.bf16.xpose.msra.mxu0 0
        %1568 = vmatprep.mubr.bf16.mxu0 0
        %1569 = vmatmul.mubr.bf16.gmra.mrb[0].mxu0 %v1531
        %v1570 = vpop.f32.mrb[0].mxu0
        %v1571 = vadd.f32 0.0, %v1570
        %v1572 = vpop.f32.mrb[0].mxu0
        %v1573 = vpop.f32.mrb[0].mxu0
        %v1574 = vadd.f32 0.0, %v1573
        %v1575 = vpop.f32.mrb[0].mxu0
        %1576 = vdwg.mxu0
        %v1578 = vsel %vm1529, %v1524, 0
        %v1581 = vsel %vm1529, %v1526, 0
        %1583 = vmatprep.subr.bf16.mxu0 0
        %1584 = vmatpush1.bf16.xpose.msra.mxu0 %v1581
        %1585 = vmatprep.subr.bf16.mxu0 0
        %1586 = vmatpush1.bf16.xpose.msra.mxu0 0
        %1587 = vmatprep.subr.bf16.mxu0 0
        %1588 = vmatpush1.bf16.xpose.msra.mxu0 0
        %1589 = vmatprep.subr.bf16.mxu0 0
        %1590 = vmatpush1.bf16.xpose.msra.mxu0 0
        %1591 = vmatprep.subr.bf16.mxu0 0
        %1592 = vmatpush1.bf16.xpose.msra.mxu0 0
        %1593 = vmatprep.subr.bf16.mxu0 0
        %1594 = vmatpush1.bf16.xpose.msra.mxu0 0
        %1595 = vmatprep.subr.bf16.mxu0 0
        %1596 = vmatpush1.bf16.xpose.msra.mxu0 0
        %1597 = vmatprep.subr.bf16.mxu0 0
        %1598 = vmatpush1.bf16.xpose.msra.mxu0 0
        %1599 = vmatprep.subr.bf16.mxu0 0
        %1600 = vmatpush1.bf16.xpose.msra.mxu0 0
        %1601 = vmatprep.subr.bf16.mxu0 0
        %1602 = vmatpush1.bf16.xpose.msra.mxu0 0
        %1603 = vmatprep.subr.bf16.mxu0 0
        %1604 = vmatpush1.bf16.xpose.msra.mxu0 0
        %1605 = vmatprep.subr.bf16.mxu0 0
        %1606 = vmatpush1.bf16.xpose.msra.mxu0 0
        %1607 = vmatprep.subr.bf16.mxu0 0
        %1608 = vmatpush1.bf16.xpose.msra.mxu0 0
        %1609 = vmatprep.subr.bf16.mxu0 0
        %1610 = vmatpush1.bf16.xpose.msra.mxu0 0
        %1611 = vmatprep.subr.bf16.mxu0 0
        %1612 = vmatpush1.bf16.xpose.msra.mxu0 0
        %1613 = vmatprep.subr.bf16.mxu0 0
        %1614 = vmatpush1.bf16.xpose.msra.mxu0 0
        %1615 = vmatprep.mubr.bf16.mxu0 0
        %1616 = vmatmul.mubr.bf16.gmra.mrb[0].mxu0 %v1578
        %v1617 = vpop.f32.mrb[0].mxu0
        %v1618 = vadd.f32 0.0, %v1617
        %v1619 = vpop.f32.mrb[0].mxu0
        %v1620 = vpop.f32.mrb[0].mxu0
        %v1621 = vadd.f32 0.0, %v1620
        %v1622 = vpop.f32.mrb[0].mxu0
        %1623 = vdwg.mxu0
        %v1624 = vmul.f32 %v1571, 0.17677669
        %v1625 = vmul.f32 %v1574, 0.17677669
        %v1626 = vmul.f32 %v1618, 0.17677669
        %v1627 = vmul.f32 %v1621, 0.17677669
        %vm1628 = vcmask 130048
        %v1629 = vsel %vm1628, %v1624, -inf
        %1630 = vmax.xlane.f32.xlu0 %v1629
        %v1631 = vpop.xlane.xlu0 %1630
        %v1632 = vsel %vm1628, %v1625, -inf
        %1633 = vmax.xlane.f32.xlu0 %v1632
        %v1634 = vpop.xlane.xlu0 %1633
        %v1635 = vsel %vm1628, %v1626, -inf
        %1636 = vmax.xlane.f32.xlu0 %v1635
        %v1637 = vpop.xlane.xlu0 %1636
        %v1638 = vsel %vm1628, %v1627, -inf
        %1639 = vmax.xlane.f32.xlu0 %v1638
        %v1640 = vpop.xlane.xlu0 %1639
        %v1641 = vsub.f32 %v1624, %v1631
        %v1642 = vsub.f32 %v1625, %v1634
        %v1643 = vsub.f32 %v1626, %v1637
        %v1644 = vsub.f32 %v1627, %v1640
        %v1645 = vmul.f32 %v1641, 1.442695
        %v1646 = vpow.pop %v1645
        %v1647 = vmul.f32 %v1642, 1.442695
        %v1648 = vpow.pop %v1647
        %v1649 = vmul.f32 %v1643, 1.442695
        %v1650 = vpow.pop %v1649
        %v1651 = vmul.f32 %v1644, 1.442695
        %v1652 = vpow.pop %v1651
        %v1653 = vsel %vm1628, %v1646, 0.0
        %1654 = vadd.xlane.f32.xlu0 %v1653
        %v1655 = vpop.xlane.xlu0 %1654
        %v1656 = vsel %vm1628, %v1648, 0.0
        %1657 = vadd.xlane.f32.xlu0 %v1656
        %v1658 = vpop.xlane.xlu0 %1657
        %v1659 = vsel %vm1628, %v1650, 0.0
        %1660 = vadd.xlane.f32.xlu0 %v1659
        %v1661 = vpop.xlane.xlu0 %1660
        %v1662 = vsel %vm1628, %v1652, 0.0
        %1663 = vadd.xlane.f32.xlu0 %v1662
        %v1664 = vpop.xlane.xlu0 %1663
        %v1665 = vrcp.pop %v1655
        %v1666 = vrcp.pop %v1658
        %v1667 = vrcp.pop %v1661
        %v1668 = vrcp.pop %v1664
        %v1669 = vmul.f32 %v1646, %v1665
        %v1670 = vmul.f32 %v1648, %v1666
        %v1671 = vmul.f32 %v1650, %v1667
        %v1672 = vmul.f32 %v1652, %v1668
        %v1673 = vpack.c.bf16 %v1670, %v1669
        %v1674 = vpack.c.bf16 %v1672, %v1671
        %v1676 = vsel %vm1628, %v1673, 0
        %1678 = vmatprep.subr.bf16.mxu0 0
        %1679 = vmatpush1.bf16.msra.mxu0 %v1527
        %1680 = vmatprep.subr.bf16.mxu0 0
        %1681 = vmatpush1.bf16.msra.mxu0 0
        %1682 = vmatprep.subr.bf16.mxu0 0
        %1683 = vmatpush1.bf16.msra.mxu0 0
        %1684 = vmatprep.subr.bf16.mxu0 0
        %1685 = vmatpush1.bf16.msra.mxu0 0
        %1686 = vmatprep.subr.bf16.mxu0 0
        %1687 = vmatpush1.bf16.msra.mxu0 0
        %1688 = vmatprep.subr.bf16.mxu0 0
        %1689 = vmatpush1.bf16.msra.mxu0 0
        %1690 = vmatprep.subr.bf16.mxu0 0
        %1691 = vmatpush1.bf16.msra.mxu0 0
        %1692 = vmatprep.subr.bf16.mxu0 0
        %1693 = vmatpush1.bf16.msra.mxu0 0
        %1694 = vmatprep.subr.bf16.mxu0 0
        %1695 = vmatpush1.bf16.msra.mxu0 0
        %1696 = vmatprep.subr.bf16.mxu0 0
        %1697 = vmatpush1.bf16.msra.mxu0 0
        %1698 = vmatprep.subr.bf16.mxu0 0
        %1699 = vmatpush1.bf16.msra.mxu0 0
        %1700 = vmatprep.subr.bf16.mxu0 0
        %1701 = vmatpush1.bf16.msra.mxu0 0
        %1702 = vmatprep.subr.bf16.mxu0 0
        %1703 = vmatpush1.bf16.msra.mxu0 0
        %1704 = vmatprep.subr.bf16.mxu0 0
        %1705 = vmatpush1.bf16.msra.mxu0 0
        %1706 = vmatprep.subr.bf16.mxu0 0
        %1707 = vmatpush1.bf16.msra.mxu0 0
        %1708 = vmatprep.subr.bf16.mxu0 0
        %1709 = vmatpush1.bf16.msra.mxu0 0
        %1710 = vmatprep.mubr.bf16.mxu0 0
        %1711 = vmatmul.mubr.bf16.gmra.mrb[0].mxu0 %v1676
        %v1712 = vpop.f32.mrb[0].mxu0
        %v1713 = vadd.f32 0.0, %v1712
        %v1714 = vpop.f32.mrb[0].mxu0
        %v1715 = vpop.f32.mrb[0].mxu0
        %v1716 = vadd.f32 0.0, %v1715
        %v1717 = vpop.f32.mrb[0].mxu0
        %1718 = vdwg.mxu0
        %v1720 = vsel %vm1628, %v1674, 0
        %1722 = vmatprep.subr.bf16.mxu0 0
        %1723 = vmatpush1.bf16.msra.mxu0 %v1528
        %1724 = vmatprep.subr.bf16.mxu0 0
        %1725 = vmatpush1.bf16.msra.mxu0 0
        %1726 = vmatprep.subr.bf16.mxu0 0
        %1727 = vmatpush1.bf16.msra.mxu0 0
        %1728 = vmatprep.subr.bf16.mxu0 0
        %1729 = vmatpush1.bf16.msra.mxu0 0
        %1730 = vmatprep.subr.bf16.mxu0 0
        %1731 = vmatpush1.bf16.msra.mxu0 0
        %1732 = vmatprep.subr.bf16.mxu0 0
        %1733 = vmatpush1.bf16.msra.mxu0 0
        %1734 = vmatprep.subr.bf16.mxu0 0
        %1735 = vmatpush1.bf16.msra.mxu0 0
        %1736 = vmatprep.subr.bf16.mxu0 0
        %1737 = vmatpush1.bf16.msra.mxu0 0
        %1738 = vmatprep.subr.bf16.mxu0 0
        %1739 = vmatpush1.bf16.msra.mxu0 0
        %1740 = vmatprep.subr.bf16.mxu0 0
        %1741 = vmatpush1.bf16.msra.mxu0 0
        %1742 = vmatprep.subr.bf16.mxu0 0
        %1743 = vmatpush1.bf16.msra.mxu0 0
        %1744 = vmatprep.subr.bf16.mxu0 0
        %1745 = vmatpush1.bf16.msra.mxu0 0
        %1746 = vmatprep.subr.bf16.mxu0 0
        %1747 = vmatpush1.bf16.msra.mxu0 0
        %1748 = vmatprep.subr.bf16.mxu0 0
        %1749 = vmatpush1.bf16.msra.mxu0 0
        %1750 = vmatprep.subr.bf16.mxu0 0
        %1751 = vmatpush1.bf16.msra.mxu0 0
        %1752 = vmatprep.subr.bf16.mxu0 0
        %1753 = vmatpush1.bf16.msra.mxu0 0
        %1754 = vmatprep.mubr.bf16.mxu0 0
        %1755 = vmatmul.mubr.bf16.gmra.mrb[0].mxu0 %v1720
        %v1756 = vpop.f32.mrb[0].mxu0
        %v1757 = vadd.f32 0.0, %v1756
        %v1758 = vpop.f32.mrb[0].mxu0
        %v1759 = vpop.f32.mrb[0].mxu0
        %v1760 = vadd.f32 0.0, %v1759
        %v1761 = vpop.f32.mrb[0].mxu0
        %1762 = vdwg.mxu0
        %v1763 = vpack.c.bf16 %v1716, %v1713
        %v1764 = vpack.c.bf16 %v1760, %v1757
        %v1765 = vld [vmem:[%s889] sm:$0xf]
        %v1766 = vld [vmem:[%s889 + $0x4] sm:$0xf]
        %v1767 = vld [vmem:[%s889 + $0x8] sm:$0xf]
        %v1768 = vld [vmem:[%s889 + $0xc] sm:$0xf]
        %1770 = vrot.lane.b32.xlu0 %v1523, 96
        %v1771 = vpop.permute.xlu0 %1770
        %1773 = vrot.lane.b32.xlu0 %v1525, 96
        %v1774 = vpop.permute.xlu0 %1773
        %v1776 = vsel %vm1529, %v1771, 0
        %v1779 = vsel %vm1529, %v1774, 0
        %1781 = vmatprep.subr.bf16.mxu0 0
        %1782 = vmatpush1.bf16.xpose.msra.mxu0 %v1779
        %1783 = vmatprep.subr.bf16.mxu0 0
        %1784 = vmatpush1.bf16.xpose.msra.mxu0 0
        %1785 = vmatprep.subr.bf16.mxu0 0
        %1786 = vmatpush1.bf16.xpose.msra.mxu0 0
        %1787 = vmatprep.subr.bf16.mxu0 0
        %1788 = vmatpush1.bf16.xpose.msra.mxu0 0
        %1789 = vmatprep.subr.bf16.mxu0 0
        %1790 = vmatpush1.bf16.xpose.msra.mxu0 0
        %1791 = vmatprep.subr.bf16.mxu0 0
        %1792 = vmatpush1.bf16.xpose.msra.mxu0 0
        %1793 = vmatprep.subr.bf16.mxu0 0
        %1794 = vmatpush1.bf16.xpose.msra.mxu0 0
        %1795 = vmatprep.subr.bf16.mxu0 0
        %1796 = vmatpush1.bf16.xpose.msra.mxu0 0
        %1797 = vmatprep.subr.bf16.mxu0 0
        %1798 = vmatpush1.bf16.xpose.msra.mxu0 0
        %1799 = vmatprep.subr.bf16.mxu0 0
        %1800 = vmatpush1.bf16.xpose.msra.mxu0 0
        %1801 = vmatprep.subr.bf16.mxu0 0
        %1802 = vmatpush1.bf16.xpose.msra.mxu0 0
        %1803 = vmatprep.subr.bf16.mxu0 0
        %1804 = vmatpush1.bf16.xpose.msra.mxu0 0
        %1805 = vmatprep.subr.bf16.mxu0 0
        %1806 = vmatpush1.bf16.xpose.msra.mxu0 0
        %1807 = vmatprep.subr.bf16.mxu0 0
        %1808 = vmatpush1.bf16.xpose.msra.mxu0 0
        %1809 = vmatprep.subr.bf16.mxu0 0
        %1810 = vmatpush1.bf16.xpose.msra.mxu0 0
        %1811 = vmatprep.subr.bf16.mxu0 0
        %1812 = vmatpush1.bf16.xpose.msra.mxu0 0
        %1813 = vmatprep.mubr.bf16.mxu0 0
        %1814 = vmatmul.mubr.bf16.gmra.mrb[0].mxu0 %v1776
        %v1815 = vpop.f32.mrb[0].mxu0
        %v1816 = vadd.f32 0.0, %v1815
        %v1817 = vpop.f32.mrb[0].mxu0
        %v1818 = vpop.f32.mrb[0].mxu0
        %v1819 = vadd.f32 0.0, %v1818
        %v1820 = vpop.f32.mrb[0].mxu0
        %1821 = vdwg.mxu0
        %1823 = vrot.lane.b32.xlu0 %v1524, 96
        %v1824 = vpop.permute.xlu0 %1823
        %1826 = vrot.lane.b32.xlu0 %v1526, 96
        %v1827 = vpop.permute.xlu0 %1826
        %v1829 = vsel %vm1529, %v1824, 0
        %v1832 = vsel %vm1529, %v1827, 0
        %1834 = vmatprep.subr.bf16.mxu0 0
        %1835 = vmatpush1.bf16.xpose.msra.mxu0 %v1832
        %1836 = vmatprep.subr.bf16.mxu0 0
        %1837 = vmatpush1.bf16.xpose.msra.mxu0 0
        %1838 = vmatprep.subr.bf16.mxu0 0
        %1839 = vmatpush1.bf16.xpose.msra.mxu0 0
        %1840 = vmatprep.subr.bf16.mxu0 0
        %1841 = vmatpush1.bf16.xpose.msra.mxu0 0
        %1842 = vmatprep.subr.bf16.mxu0 0
        %1843 = vmatpush1.bf16.xpose.msra.mxu0 0
        %1844 = vmatprep.subr.bf16.mxu0 0
        %1845 = vmatpush1.bf16.xpose.msra.mxu0 0
        %1846 = vmatprep.subr.bf16.mxu0 0
        %1847 = vmatpush1.bf16.xpose.msra.mxu0 0
        %1848 = vmatprep.subr.bf16.mxu0 0
        %1849 = vmatpush1.bf16.xpose.msra.mxu0 0
        %1850 = vmatprep.subr.bf16.mxu0 0
        %1851 = vmatpush1.bf16.xpose.msra.mxu0 0
        %1852 = vmatprep.subr.bf16.mxu0 0
        %1853 = vmatpush1.bf16.xpose.msra.mxu0 0
        %1854 = vmatprep.subr.bf16.mxu0 0
        %1855 = vmatpush1.bf16.xpose.msra.mxu0 0
        %1856 = vmatprep.subr.bf16.mxu0 0
        %1857 = vmatpush1.bf16.xpose.msra.mxu0 0
        %1858 = vmatprep.subr.bf16.mxu0 0
        %1859 = vmatpush1.bf16.xpose.msra.mxu0 0
        %1860 = vmatprep.subr.bf16.mxu0 0
        %1861 = vmatpush1.bf16.xpose.msra.mxu0 0
        %1862 = vmatprep.subr.bf16.mxu0 0
        %1863 = vmatpush1.bf16.xpose.msra.mxu0 0
        %1864 = vmatprep.subr.bf16.mxu0 0
        %1865 = vmatpush1.bf16.xpose.msra.mxu0 0
        %1866 = vmatprep.mubr.bf16.mxu0 0
        %1867 = vmatmul.mubr.bf16.gmra.mrb[0].mxu0 %v1829
        %v1868 = vpop.f32.mrb[0].mxu0
        %v1869 = vadd.f32 0.0, %v1868
        %v1870 = vpop.f32.mrb[0].mxu0
        %v1871 = vpop.f32.mrb[0].mxu0
        %v1872 = vadd.f32 0.0, %v1871
        %v1873 = vpop.f32.mrb[0].mxu0
        %1874 = vdwg.mxu0
        %v1875 = vmul.f32 %v1816, 0.17677669
        %v1876 = vmul.f32 %v1819, 0.17677669
        %v1877 = vmul.f32 %v1869, 0.17677669
        %v1878 = vmul.f32 %v1872, 0.17677669
        %v1879 = vsel %vm1628, %v1875, -inf
        %1880 = vmax.xlane.f32.xlu0 %v1879
        %v1881 = vpop.xlane.xlu0 %1880
        %v1882 = vsel %vm1628, %v1876, -inf
        %1883 = vmax.xlane.f32.xlu0 %v1882
        %v1884 = vpop.xlane.xlu0 %1883
        %v1885 = vsel %vm1628, %v1877, -inf
        %1886 = vmax.xlane.f32.xlu0 %v1885
        %v1887 = vpop.xlane.xlu0 %1886
        %v1888 = vsel %vm1628, %v1878, -inf
        %1889 = vmax.xlane.f32.xlu0 %v1888
        %v1890 = vpop.xlane.xlu0 %1889
        %v1891 = vsub.f32 %v1875, %v1881
        %v1892 = vsub.f32 %v1876, %v1884
        %v1893 = vsub.f32 %v1877, %v1887
        %v1894 = vsub.f32 %v1878, %v1890
        %v1895 = vmul.f32 %v1891, 1.442695
        %v1896 = vpow.pop %v1895
        %v1897 = vmul.f32 %v1892, 1.442695
        %v1898 = vpow.pop %v1897
        %v1899 = vmul.f32 %v1893, 1.442695
        %v1900 = vpow.pop %v1899
        %v1901 = vmul.f32 %v1894, 1.442695
        %v1902 = vpow.pop %v1901
        %v1903 = vsel %vm1628, %v1896, 0.0
        %1904 = vadd.xlane.f32.xlu0 %v1903
        %v1905 = vpop.xlane.xlu0 %1904
        %v1906 = vsel %vm1628, %v1898, 0.0
        %1907 = vadd.xlane.f32.xlu0 %v1906
        %v1908 = vpop.xlane.xlu0 %1907
        %v1909 = vsel %vm1628, %v1900, 0.0
        %1910 = vadd.xlane.f32.xlu0 %v1909
        %v1911 = vpop.xlane.xlu0 %1910
        %v1912 = vsel %vm1628, %v1902, 0.0
        %1913 = vadd.xlane.f32.xlu0 %v1912
        %v1914 = vpop.xlane.xlu0 %1913
        %v1915 = vrcp.pop %v1905
        %v1916 = vrcp.pop %v1908
        %v1917 = vrcp.pop %v1911
        %v1918 = vrcp.pop %v1914
        %v1919 = vmul.f32 %v1896, %v1915
        %v1920 = vmul.f32 %v1898, %v1916
        %v1921 = vmul.f32 %v1900, %v1917
        %v1922 = vmul.f32 %v1902, %v1918
        %v1923 = vpack.c.bf16 %v1920, %v1919
        %v1924 = vpack.c.bf16 %v1922, %v1921
        %1926 = vrot.lane.b32.xlu0 %v1527, 96
        %v1927 = vpop.permute.xlu0 %1926
        %v1930 = vsel %vm1628, %v1923, 0
        %1932 = vmatprep.subr.bf16.mxu0 0
        %1933 = vmatpush1.bf16.msra.mxu0 %v1927
        %1934 = vmatprep.subr.bf16.mxu0 0
        %1935 = vmatpush1.bf16.msra.mxu0 0
        %1936 = vmatprep.subr.bf16.mxu0 0
        %1937 = vmatpush1.bf16.msra.mxu0 0
        %1938 = vmatprep.subr.bf16.mxu0 0
        %1939 = vmatpush1.bf16.msra.mxu0 0
        %1940 = vmatprep.subr.bf16.mxu0 0
        %1941 = vmatpush1.bf16.msra.mxu0 0
        %1942 = vmatprep.subr.bf16.mxu0 0
        %1943 = vmatpush1.bf16.msra.mxu0 0
        %1944 = vmatprep.subr.bf16.mxu0 0
        %1945 = vmatpush1.bf16.msra.mxu0 0
        %1946 = vmatprep.subr.bf16.mxu0 0
        %1947 = vmatpush1.bf16.msra.mxu0 0
        %1948 = vmatprep.subr.bf16.mxu0 0
        %1949 = vmatpush1.bf16.msra.mxu0 0
        %1950 = vmatprep.subr.bf16.mxu0 0
        %1951 = vmatpush1.bf16.msra.mxu0 0
        %1952 = vmatprep.subr.bf16.mxu0 0
        %1953 = vmatpush1.bf16.msra.mxu0 0
        %1954 = vmatprep.subr.bf16.mxu0 0
        %1955 = vmatpush1.bf16.msra.mxu0 0
        %1956 = vmatprep.subr.bf16.mxu0 0
        %1957 = vmatpush1.bf16.msra.mxu0 0
        %1958 = vmatprep.subr.bf16.mxu0 0
        %1959 = vmatpush1.bf16.msra.mxu0 0
        %1960 = vmatprep.subr.bf16.mxu0 0
        %1961 = vmatpush1.bf16.msra.mxu0 0
        %1962 = vmatprep.subr.bf16.mxu0 0
        %1963 = vmatpush1.bf16.msra.mxu0 0
        %1964 = vmatprep.mubr.bf16.mxu0 0
        %1965 = vmatmul.mubr.bf16.gmra.mrb[0].mxu0 %v1930
        %v1966 = vpop.f32.mrb[0].mxu0
        %v1967 = vadd.f32 0.0, %v1966
        %v1968 = vpop.f32.mrb[0].mxu0
        %v1969 = vpop.f32.mrb[0].mxu0
        %v1970 = vadd.f32 0.0, %v1969
        %v1971 = vpop.f32.mrb[0].mxu0
        %1972 = vdwg.mxu0
        %1974 = vrot.lane.b32.xlu0 %v1528, 96
        %v1975 = vpop.permute.xlu0 %1974
        %v1978 = vsel %vm1628, %v1924, 0
        %1980 = vmatprep.subr.bf16.mxu0 0
        %1981 = vmatpush1.bf16.msra.mxu0 %v1975
        %1982 = vmatprep.subr.bf16.mxu0 0
        %1983 = vmatpush1.bf16.msra.mxu0 0
        %1984 = vmatprep.subr.bf16.mxu0 0
        %1985 = vmatpush1.bf16.msra.mxu0 0
        %1986 = vmatprep.subr.bf16.mxu0 0
        %1987 = vmatpush1.bf16.msra.mxu0 0
        %1988 = vmatprep.subr.bf16.mxu0 0
        %1989 = vmatpush1.bf16.msra.mxu0 0
        %1990 = vmatprep.subr.bf16.mxu0 0
        %1991 = vmatpush1.bf16.msra.mxu0 0
        %1992 = vmatprep.subr.bf16.mxu0 0
        %1993 = vmatpush1.bf16.msra.mxu0 0
        %1994 = vmatprep.subr.bf16.mxu0 0
        %1995 = vmatpush1.bf16.msra.mxu0 0
        %1996 = vmatprep.subr.bf16.mxu0 0
        %1997 = vmatpush1.bf16.msra.mxu0 0
        %1998 = vmatprep.subr.bf16.mxu0 0
        %1999 = vmatpush1.bf16.msra.mxu0 0
        %2000 = vmatprep.subr.bf16.mxu0 0
        %2001 = vmatpush1.bf16.msra.mxu0 0
        %2002 = vmatprep.subr.bf16.mxu0 0
        %2003 = vmatpush1.bf16.msra.mxu0 0
        %2004 = vmatprep.subr.bf16.mxu0 0
        %2005 = vmatpush1.bf16.msra.mxu0 0
        %2006 = vmatprep.subr.bf16.mxu0 0
        %2007 = vmatpush1.bf16.msra.mxu0 0
        %2008 = vmatprep.subr.bf16.mxu0 0
        %2009 = vmatpush1.bf16.msra.mxu0 0
        %2010 = vmatprep.subr.bf16.mxu0 0
        %2011 = vmatpush1.bf16.msra.mxu0 0
        %2012 = vmatprep.mubr.bf16.mxu0 0
        %2013 = vmatmul.mubr.bf16.gmra.mrb[0].mxu0 %v1978
        %v2014 = vpop.f32.mrb[0].mxu0
        %v2015 = vadd.f32 0.0, %v2014
        %v2016 = vpop.f32.mrb[0].mxu0
        %v2017 = vpop.f32.mrb[0].mxu0
        %v2018 = vadd.f32 0.0, %v2017
        %v2019 = vpop.f32.mrb[0].mxu0
        %2020 = vdwg.mxu0
        %v2021 = vpack.c.bf16 %v1970, %v1967
        %v2022 = vpack.c.bf16 %v2018, %v2015
        %s2023 = scalar_lea.vmem %s889, 16 [#allocation14]
        %v2024 = vld [vmem:[%s2023] sm:$0xf]
        %v2025 = vld [vmem:[%s2023 + $0x4] sm:$0xf]
        %v2026 = vld [vmem:[%s2023 + $0x8] sm:$0xf]
        %v2027 = vld [vmem:[%s2023 + $0xc] sm:$0xf]
        %v2032 = vunpack.c.l.b16 %v2024
        %v2033 = vunpack.c.l.b16 %v2025
        %v2034 = vunpack.c.l.b16 %v2026
        %v2035 = vunpack.c.l.b16 %v2027
        %v2036 = vpack.c.b16 %v2033, %v2032
        %v2037 = vpack.c.b16 %v2035, %v2034
        %v2041 = vsel %vm1529, %v2021, 0
        %v2044 = vsel %vm1529, %v2022, 0
        %2046 = vmatprep.subr.bf16.mxu0 0
        %2047 = vmatpush1.bf16.msra.mxu0 %v2036
        %2048 = vmatprep.subr.bf16.mxu0 0
        %2049 = vmatpush1.bf16.msra.mxu0 %v2037
        %2050 = vmatprep.subr.bf16.mxu0 0
        %2051 = vmatpush1.bf16.msra.mxu0 0
        %2052 = vmatprep.subr.bf16.mxu0 0
        %2053 = vmatpush1.bf16.msra.mxu0 0
        %2054 = vmatprep.subr.bf16.mxu0 0
        %2055 = vmatpush1.bf16.msra.mxu0 0
        %2056 = vmatprep.subr.bf16.mxu0 0
        %2057 = vmatpush1.bf16.msra.mxu0 0
        %2058 = vmatprep.subr.bf16.mxu0 0
        %2059 = vmatpush1.bf16.msra.mxu0 0
        %2060 = vmatprep.subr.bf16.mxu0 0
        %2061 = vmatpush1.bf16.msra.mxu0 0
        %2062 = vmatprep.subr.bf16.mxu0 0
        %2063 = vmatpush1.bf16.msra.mxu0 0
        %2064 = vmatprep.subr.bf16.mxu0 0
        %2065 = vmatpush1.bf16.msra.mxu0 0
        %2066 = vmatprep.subr.bf16.mxu0 0
        %2067 = vmatpush1.bf16.msra.mxu0 0
        %2068 = vmatprep.subr.bf16.mxu0 0
        %2069 = vmatpush1.bf16.msra.mxu0 0
        %2070 = vmatprep.subr.bf16.mxu0 0
        %2071 = vmatpush1.bf16.msra.mxu0 0
        %2072 = vmatprep.subr.bf16.mxu0 0
        %2073 = vmatpush1.bf16.msra.mxu0 0
        %2074 = vmatprep.subr.bf16.mxu0 0
        %2075 = vmatpush1.bf16.msra.mxu0 0
        %2076 = vmatprep.subr.bf16.mxu0 0
        %2077 = vmatpush1.bf16.msra.mxu0 0
        %2078 = vmatprep.mubr.bf16.mxu0 0
        %2079 = vmatmul.mubr.bf16.gmra.mrb[0].mxu0 %v2041
        %v2080 = vpop.f32.mrb[0].mxu0
        %v2081 = vadd.f32 0.0, %v2080
        %v2082 = vpop.f32.mrb[0].mxu0
        %v2083 = vpop.f32.mrb[0].mxu0
        %v2084 = vadd.f32 0.0, %v2083
        %v2085 = vpop.f32.mrb[0].mxu0
        %2086 = vmatprep.mubr.bf16.mxu0 0
        %2087 = vmatmul.mubr.bf16.gmra.mrb[0].mxu0 %v2044
        %v2088 = vpop.f32.mrb[0].mxu0
        %v2089 = vadd.f32 0.0, %v2088
        %v2090 = vpop.f32.mrb[0].mxu0
        %v2091 = vpop.f32.mrb[0].mxu0
        %v2092 = vadd.f32 0.0, %v2091
        %v2093 = vpop.f32.mrb[0].mxu0
        %2094 = vdwg.mxu0
        %v2099 = vunpack.c.l.b16 %v1765
        %v2100 = vunpack.c.l.b16 %v1766
        %v2101 = vunpack.c.l.b16 %v1767
        %v2102 = vunpack.c.l.b16 %v1768
        %v2103 = vpack.c.b16 %v2100, %v2099
        %v2104 = vpack.c.b16 %v2102, %v2101
        %v2108 = vsel %vm1529, %v1763, 0
        %v2111 = vsel %vm1529, %v1764, 0
        %2113 = vmatprep.subr.bf16.mxu0 0
        %2114 = vmatpush1.bf16.msra.mxu0 %v2103
        %2115 = vmatprep.subr.bf16.mxu0 0
        %2116 = vmatpush1.bf16.msra.mxu0 %v2104
        %2117 = vmatprep.subr.bf16.mxu0 0
        %2118 = vmatpush1.bf16.msra.mxu0 0
        %2119 = vmatprep.subr.bf16.mxu0 0
        %2120 = vmatpush1.bf16.msra.mxu0 0
        %2121 = vmatprep.subr.bf16.mxu0 0
        %2122 = vmatpush1.bf16.msra.mxu0 0
        %2123 = vmatprep.subr.bf16.mxu0 0
        %2124 = vmatpush1.bf16.msra.mxu0 0
        %2125 = vmatprep.subr.bf16.mxu0 0
        %2126 = vmatpush1.bf16.msra.mxu0 0
        %2127 = vmatprep.subr.bf16.mxu0 0
        %2128 = vmatpush1.bf16.msra.mxu0 0
        %2129 = vmatprep.subr.bf16.mxu0 0
        %2130 = vmatpush1.bf16.msra.mxu0 0
        %2131 = vmatprep.subr.bf16.mxu0 0
        %2132 = vmatpush1.bf16.msra.mxu0 0
        %2133 = vmatprep.subr.bf16.mxu0 0
        %2134 = vmatpush1.bf16.msra.mxu0 0
        %2135 = vmatprep.subr.bf16.mxu0 0
        %2136 = vmatpush1.bf16.msra.mxu0 0
        %2137 = vmatprep.subr.bf16.mxu0 0
        %2138 = vmatpush1.bf16.msra.mxu0 0
        %2139 = vmatprep.subr.bf16.mxu0 0
        %2140 = vmatpush1.bf16.msra.mxu0 0
        %2141 = vmatprep.subr.bf16.mxu0 0
        %2142 = vmatpush1.bf16.msra.mxu0 0
        %2143 = vmatprep.subr.bf16.mxu0 0
        %2144 = vmatpush1.bf16.msra.mxu0 0
        %2145 = vmatprep.mubr.bf16.mxu0 0
        %2146 = vmatmul.mubr.bf16.gmra.mrb[0].mxu0 %v2108
        %v2147 = vpop.f32.mrb[0].mxu0
        %v2148 = vadd.f32 %v2081, %v2147
        %v2149 = vpop.f32.mrb[0].mxu0
        %v2150 = vpop.f32.mrb[0].mxu0
        %v2151 = vadd.f32 %v2084, %v2150
        %v2152 = vpop.f32.mrb[0].mxu0
        %2153 = vmatprep.mubr.bf16.mxu0 0
        %2154 = vmatmul.mubr.bf16.gmra.mrb[0].mxu0 %v2111
        %v2155 = vpop.f32.mrb[0].mxu0
        %v2156 = vadd.f32 %v2089, %v2155
        %v2157 = vpop.f32.mrb[0].mxu0
        %v2158 = vpop.f32.mrb[0].mxu0
        %v2159 = vadd.f32 %v2092, %v2158
        %v2160 = vpop.f32.mrb[0].mxu0
        %2161 = vdwg.mxu0
        %2162 = vrot.lane.b32.xlu0 %v1523, 64
        %v2163 = vpop.permute.xlu0 %2162
        %2164 = vrot.lane.b32.xlu0 %v1525, 64
        %v2165 = vpop.permute.xlu0 %2164
        %v2167 = vsel %vm1529, %v2163, 0
        %v2170 = vsel %vm1529, %v2165, 0
        %2172 = vmatprep.subr.bf16.mxu0 0
        %2173 = vmatpush1.bf16.xpose.msra.mxu0 %v2170
        %2174 = vmatprep.subr.bf16.mxu0 0
        %2175 = vmatpush1.bf16.xpose.msra.mxu0 0
        %2176 = vmatprep.subr.bf16.mxu0 0
        %2177 = vmatpush1.bf16.xpose.msra.mxu0 0
        %2178 = vmatprep.subr.bf16.mxu0 0
        %2179 = vmatpush1.bf16.xpose.msra.mxu0 0
        %2180 = vmatprep.subr.bf16.mxu0 0
        %2181 = vmatpush1.bf16.xpose.msra.mxu0 0
        %2182 = vmatprep.subr.bf16.mxu0 0
        %2183 = vmatpush1.bf16.xpose.msra.mxu0 0
        %2184 = vmatprep.subr.bf16.mxu0 0
        %2185 = vmatpush1.bf16.xpose.msra.mxu0 0
        %2186 = vmatprep.subr.bf16.mxu0 0
        %2187 = vmatpush1.bf16.xpose.msra.mxu0 0
        %2188 = vmatprep.subr.bf16.mxu0 0
        %2189 = vmatpush1.bf16.xpose.msra.mxu0 0
        %2190 = vmatprep.subr.bf16.mxu0 0
        %2191 = vmatpush1.bf16.xpose.msra.mxu0 0
        %2192 = vmatprep.subr.bf16.mxu0 0
        %2193 = vmatpush1.bf16.xpose.msra.mxu0 0
        %2194 = vmatprep.subr.bf16.mxu0 0
        %2195 = vmatpush1.bf16.xpose.msra.mxu0 0
        %2196 = vmatprep.subr.bf16.mxu0 0
        %2197 = vmatpush1.bf16.xpose.msra.mxu0 0
        %2198 = vmatprep.subr.bf16.mxu0 0
        %2199 = vmatpush1.bf16.xpose.msra.mxu0 0
        %2200 = vmatprep.subr.bf16.mxu0 0
        %2201 = vmatpush1.bf16.xpose.msra.mxu0 0
        %2202 = vmatprep.subr.bf16.mxu0 0
        %2203 = vmatpush1.bf16.xpose.msra.mxu0 0
        %2204 = vmatprep.mubr.bf16.mxu0 0
        %2205 = vmatmul.mubr.bf16.gmra.mrb[0].mxu0 %v2167
        %v2206 = vpop.f32.mrb[0].mxu0
        %v2207 = vadd.f32 0.0, %v2206
        %v2208 = vpop.f32.mrb[0].mxu0
        %v2209 = vpop.f32.mrb[0].mxu0
        %v2210 = vadd.f32 0.0, %v2209
        %v2211 = vpop.f32.mrb[0].mxu0
        %2212 = vdwg.mxu0
        %2213 = vrot.lane.b32.xlu0 %v1524, 64
        %v2214 = vpop.permute.xlu0 %2213
        %2215 = vrot.lane.b32.xlu0 %v1526, 64
        %v2216 = vpop.permute.xlu0 %2215
        %v2218 = vsel %vm1529, %v2214, 0
        %v2221 = vsel %vm1529, %v2216, 0
        %2223 = vmatprep.subr.bf16.mxu0 0
        %2224 = vmatpush1.bf16.xpose.msra.mxu0 %v2221
        %2225 = vmatprep.subr.bf16.mxu0 0
        %2226 = vmatpush1.bf16.xpose.msra.mxu0 0
        %2227 = vmatprep.subr.bf16.mxu0 0
        %2228 = vmatpush1.bf16.xpose.msra.mxu0 0
        %2229 = vmatprep.subr.bf16.mxu0 0
        %2230 = vmatpush1.bf16.xpose.msra.mxu0 0
        %2231 = vmatprep.subr.bf16.mxu0 0
        %2232 = vmatpush1.bf16.xpose.msra.mxu0 0
        %2233 = vmatprep.subr.bf16.mxu0 0
        %2234 = vmatpush1.bf16.xpose.msra.mxu0 0
        %2235 = vmatprep.subr.bf16.mxu0 0
        %2236 = vmatpush1.bf16.xpose.msra.mxu0 0
        %2237 = vmatprep.subr.bf16.mxu0 0
        %2238 = vmatpush1.bf16.xpose.msra.mxu0 0
        %2239 = vmatprep.subr.bf16.mxu0 0
        %2240 = vmatpush1.bf16.xpose.msra.mxu0 0
        %2241 = vmatprep.subr.bf16.mxu0 0
        %2242 = vmatpush1.bf16.xpose.msra.mxu0 0
        %2243 = vmatprep.subr.bf16.mxu0 0
        %2244 = vmatpush1.bf16.xpose.msra.mxu0 0
        %2245 = vmatprep.subr.bf16.mxu0 0
        %2246 = vmatpush1.bf16.xpose.msra.mxu0 0
        %2247 = vmatprep.subr.bf16.mxu0 0
        %2248 = vmatpush1.bf16.xpose.msra.mxu0 0
        %2249 = vmatprep.subr.bf16.mxu0 0
        %2250 = vmatpush1.bf16.xpose.msra.mxu0 0
        %2251 = vmatprep.subr.bf16.mxu0 0
        %2252 = vmatpush1.bf16.xpose.msra.mxu0 0
        %2253 = vmatprep.subr.bf16.mxu0 0
        %2254 = vmatpush1.bf16.xpose.msra.mxu0 0
        %2255 = vmatprep.mubr.bf16.mxu0 0
        %2256 = vmatmul.mubr.bf16.gmra.mrb[0].mxu0 %v2218
        %v2257 = vpop.f32.mrb[0].mxu0
        %v2258 = vadd.f32 0.0, %v2257
        %v2259 = vpop.f32.mrb[0].mxu0
        %v2260 = vpop.f32.mrb[0].mxu0
        %v2261 = vadd.f32 0.0, %v2260
        %v2262 = vpop.f32.mrb[0].mxu0
        %2263 = vdwg.mxu0
        %v2264 = vmul.f32 %v2207, 0.17677669
        %v2265 = vmul.f32 %v2210, 0.17677669
        %v2266 = vmul.f32 %v2258, 0.17677669
        %v2267 = vmul.f32 %v2261, 0.17677669
        %v2268 = vsel %vm1628, %v2264, -inf
        %2269 = vmax.xlane.f32.xlu0 %v2268
        %v2270 = vpop.xlane.xlu0 %2269
        %v2271 = vsel %vm1628, %v2265, -inf
        %2272 = vmax.xlane.f32.xlu0 %v2271
        %v2273 = vpop.xlane.xlu0 %2272
        %v2274 = vsel %vm1628, %v2266, -inf
        %2275 = vmax.xlane.f32.xlu0 %v2274
        %v2276 = vpop.xlane.xlu0 %2275
        %v2277 = vsel %vm1628, %v2267, -inf
        %2278 = vmax.xlane.f32.xlu0 %v2277
        %v2279 = vpop.xlane.xlu0 %2278
        %v2280 = vsub.f32 %v2264, %v2270
        %v2281 = vsub.f32 %v2265, %v2273
        %v2282 = vsub.f32 %v2266, %v2276
        %v2283 = vsub.f32 %v2267, %v2279
        %v2284 = vmul.f32 %v2280, 1.442695
        %v2285 = vpow.pop %v2284
        %v2286 = vmul.f32 %v2281, 1.442695
        %v2287 = vpow.pop %v2286
        %v2288 = vmul.f32 %v2282, 1.442695
        %v2289 = vpow.pop %v2288
        %v2290 = vmul.f32 %v2283, 1.442695
        %v2291 = vpow.pop %v2290
        %v2292 = vsel %vm1628, %v2285, 0.0
        %2293 = vadd.xlane.f32.xlu0 %v2292
        %v2294 = vpop.xlane.xlu0 %2293
        %v2295 = vsel %vm1628, %v2287, 0.0
        %2296 = vadd.xlane.f32.xlu0 %v2295
        %v2297 = vpop.xlane.xlu0 %2296
        %v2298 = vsel %vm1628, %v2289, 0.0
        %2299 = vadd.xlane.f32.xlu0 %v2298
        %v2300 = vpop.xlane.xlu0 %2299
        %v2301 = vsel %vm1628, %v2291, 0.0
        %2302 = vadd.xlane.f32.xlu0 %v2301
        %v2303 = vpop.xlane.xlu0 %2302
        %v2304 = vrcp.pop %v2294
        %v2305 = vrcp.pop %v2297
        %v2306 = vrcp.pop %v2300
        %v2307 = vrcp.pop %v2303
        %v2308 = vmul.f32 %v2285, %v2304
        %v2309 = vmul.f32 %v2287, %v2305
        %v2310 = vmul.f32 %v2289, %v2306
        %v2311 = vmul.f32 %v2291, %v2307
        %v2312 = vpack.c.bf16 %v2309, %v2308
        %v2313 = vpack.c.bf16 %v2311, %v2310
        %2314 = vrot.lane.b32.xlu0 %v1527, 64
        %v2315 = vpop.permute.xlu0 %2314
        %v2318 = vsel %vm1628, %v2312, 0
        %2320 = vmatprep.subr.bf16.mxu0 0
        %2321 = vmatpush1.bf16.msra.mxu0 %v2315
        %2322 = vmatprep.subr.bf16.mxu0 0
        %2323 = vmatpush1.bf16.msra.mxu0 0
        %2324 = vmatprep.subr.bf16.mxu0 0
        %2325 = vmatpush1.bf16.msra.mxu0 0
        %2326 = vmatprep.subr.bf16.mxu0 0
        %2327 = vmatpush1.bf16.msra.mxu0 0
        %2328 = vmatprep.subr.bf16.mxu0 0
        %2329 = vmatpush1.bf16.msra.mxu0 0
        %2330 = vmatprep.subr.bf16.mxu0 0
        %2331 = vmatpush1.bf16.msra.mxu0 0
        %2332 = vmatprep.subr.bf16.mxu0 0
        %2333 = vmatpush1.bf16.msra.mxu0 0
        %2334 = vmatprep.subr.bf16.mxu0 0
        %2335 = vmatpush1.bf16.msra.mxu0 0
        %2336 = vmatprep.subr.bf16.mxu0 0
        %2337 = vmatpush1.bf16.msra.mxu0 0
        %2338 = vmatprep.subr.bf16.mxu0 0
        %2339 = vmatpush1.bf16.msra.mxu0 0
        %2340 = vmatprep.subr.bf16.mxu0 0
        %2341 = vmatpush1.bf16.msra.mxu0 0
        %2342 = vmatprep.subr.bf16.mxu0 0
        %2343 = vmatpush1.bf16.msra.mxu0 0
        %2344 = vmatprep.subr.bf16.mxu0 0
        %2345 = vmatpush1.bf16.msra.mxu0 0
        %2346 = vmatprep.subr.bf16.mxu0 0
        %2347 = vmatpush1.bf16.msra.mxu0 0
        %2348 = vmatprep.subr.bf16.mxu0 0
        %2349 = vmatpush1.bf16.msra.mxu0 0
        %2350 = vmatprep.subr.bf16.mxu0 0
        %2351 = vmatpush1.bf16.msra.mxu0 0
        %2352 = vmatprep.mubr.bf16.mxu0 0
        %2353 = vmatmul.mubr.bf16.gmra.mrb[0].mxu0 %v2318
        %v2354 = vpop.f32.mrb[0].mxu0
        %v2355 = vadd.f32 0.0, %v2354
        %v2356 = vpop.f32.mrb[0].mxu0
        %v2357 = vpop.f32.mrb[0].mxu0
        %v2358 = vadd.f32 0.0, %v2357
        %v2359 = vpop.f32.mrb[0].mxu0
        %2360 = vdwg.mxu0
        %2361 = vrot.lane.b32.xlu0 %v1528, 64
        %v2362 = vpop.permute.xlu0 %2361
        %v2365 = vsel %vm1628, %v2313, 0
        %2367 = vmatprep.subr.bf16.mxu0 0
        %2368 = vmatpush1.bf16.msra.mxu0 %v2362
        %2369 = vmatprep.subr.bf16.mxu0 0
        %2370 = vmatpush1.bf16.msra.mxu0 0
        %2371 = vmatprep.subr.bf16.mxu0 0
        %2372 = vmatpush1.bf16.msra.mxu0 0
        %2373 = vmatprep.subr.bf16.mxu0 0
        %2374 = vmatpush1.bf16.msra.mxu0 0
        %2375 = vmatprep.subr.bf16.mxu0 0
        %2376 = vmatpush1.bf16.msra.mxu0 0
        %2377 = vmatprep.subr.bf16.mxu0 0
        %2378 = vmatpush1.bf16.msra.mxu0 0
        %2379 = vmatprep.subr.bf16.mxu0 0
        %2380 = vmatpush1.bf16.msra.mxu0 0
        %2381 = vmatprep.subr.bf16.mxu0 0
        %2382 = vmatpush1.bf16.msra.mxu0 0
        %2383 = vmatprep.subr.bf16.mxu0 0
        %2384 = vmatpush1.bf16.msra.mxu0 0
        %2385 = vmatprep.subr.bf16.mxu0 0
        %2386 = vmatpush1.bf16.msra.mxu0 0
        %2387 = vmatprep.subr.bf16.mxu0 0
        %2388 = vmatpush1.bf16.msra.mxu0 0
        %2389 = vmatprep.subr.bf16.mxu0 0
        %2390 = vmatpush1.bf16.msra.mxu0 0
        %2391 = vmatprep.subr.bf16.mxu0 0
        %2392 = vmatpush1.bf16.msra.mxu0 0
        %2393 = vmatprep.subr.bf16.mxu0 0
        %2394 = vmatpush1.bf16.msra.mxu0 0
        %2395 = vmatprep.subr.bf16.mxu0 0
        %2396 = vmatpush1.bf16.msra.mxu0 0
        %2397 = vmatprep.subr.bf16.mxu0 0
        %2398 = vmatpush1.bf16.msra.mxu0 0
        %2399 = vmatprep.mubr.bf16.mxu0 0
        %2400 = vmatmul.mubr.bf16.gmra.mrb[0].mxu0 %v2365
        %v2401 = vpop.f32.mrb[0].mxu0
        %v2402 = vadd.f32 0.0, %v2401
        %v2403 = vpop.f32.mrb[0].mxu0
        %v2404 = vpop.f32.mrb[0].mxu0
        %v2405 = vadd.f32 0.0, %v2404
        %v2406 = vpop.f32.mrb[0].mxu0
        %2407 = vdwg.mxu0
        %v2408 = vpack.c.bf16 %v2358, %v2355
        %v2409 = vpack.c.bf16 %v2405, %v2402
        %s2410 = scalar_lea.vmem %s889, 32 [#allocation14]
        %v2411 = vld [vmem:[%s2410] sm:$0xf]
        %v2412 = vld [vmem:[%s2410 + $0x4] sm:$0xf]
        %v2413 = vld [vmem:[%s2410 + $0x8] sm:$0xf]
        %v2414 = vld [vmem:[%s2410 + $0xc] sm:$0xf]
        %v2419 = vunpack.c.l.b16 %v2411
        %v2420 = vunpack.c.l.b16 %v2412
        %v2421 = vunpack.c.l.b16 %v2413
        %v2422 = vunpack.c.l.b16 %v2414
        %v2423 = vpack.c.b16 %v2420, %v2419
        %v2424 = vpack.c.b16 %v2422, %v2421
        %v2428 = vsel %vm1529, %v2408, 0
        %v2431 = vsel %vm1529, %v2409, 0
        %2433 = vmatprep.subr.bf16.mxu0 0
        %2434 = vmatpush1.bf16.msra.mxu0 %v2423
        %2435 = vmatprep.subr.bf16.mxu0 0
        %2436 = vmatpush1.bf16.msra.mxu0 %v2424
        %2437 = vmatprep.subr.bf16.mxu0 0
        %2438 = vmatpush1.bf16.msra.mxu0 0
        %2439 = vmatprep.subr.bf16.mxu0 0
        %2440 = vmatpush1.bf16.msra.mxu0 0
        %2441 = vmatprep.subr.bf16.mxu0 0
        %2442 = vmatpush1.bf16.msra.mxu0 0
        %2443 = vmatprep.subr.bf16.mxu0 0
        %2444 = vmatpush1.bf16.msra.mxu0 0
        %2445 = vmatprep.subr.bf16.mxu0 0
        %2446 = vmatpush1.bf16.msra.mxu0 0
        %2447 = vmatprep.subr.bf16.mxu0 0
        %2448 = vmatpush1.bf16.msra.mxu0 0
        %2449 = vmatprep.subr.bf16.mxu0 0
        %2450 = vmatpush1.bf16.msra.mxu0 0
        %2451 = vmatprep.subr.bf16.mxu0 0
        %2452 = vmatpush1.bf16.msra.mxu0 0
        %2453 = vmatprep.subr.bf16.mxu0 0
        %2454 = vmatpush1.bf16.msra.mxu0 0
        %2455 = vmatprep.subr.bf16.mxu0 0
        %2456 = vmatpush1.bf16.msra.mxu0 0
        %2457 = vmatprep.subr.bf16.mxu0 0
        %2458 = vmatpush1.bf16.msra.mxu0 0
        %2459 = vmatprep.subr.bf16.mxu0 0
        %2460 = vmatpush1.bf16.msra.mxu0 0
        %2461 = vmatprep.subr.bf16.mxu0 0
        %2462 = vmatpush1.bf16.msra.mxu0 0
        %2463 = vmatprep.subr.bf16.mxu0 0
        %2464 = vmatpush1.bf16.msra.mxu0 0
        %2465 = vmatprep.mubr.bf16.mxu0 0
        %2466 = vmatmul.mubr.bf16.gmra.mrb[0].mxu0 %v2428
        %v2467 = vpop.f32.mrb[0].mxu0
        %v2468 = vadd.f32 0.0, %v2467
        %v2469 = vpop.f32.mrb[0].mxu0
        %v2470 = vpop.f32.mrb[0].mxu0
        %v2471 = vadd.f32 0.0, %v2470
        %v2472 = vpop.f32.mrb[0].mxu0
        %2473 = vmatprep.mubr.bf16.mxu0 0
        %2474 = vmatmul.mubr.bf16.gmra.mrb[0].mxu0 %v2431
        %v2475 = vpop.f32.mrb[0].mxu0
        %v2476 = vadd.f32 0.0, %v2475
        %v2477 = vpop.f32.mrb[0].mxu0
        %v2478 = vpop.f32.mrb[0].mxu0
        %v2479 = vadd.f32 0.0, %v2478
        %v2480 = vpop.f32.mrb[0].mxu0
        %2481 = vdwg.mxu0
        %v2482 = vadd.f32 %v2148, %v2468
        %v2483 = vadd.f32 %v2151, %v2471
        %v2484 = vadd.f32 %v2156, %v2476
        %v2485 = vadd.f32 %v2159, %v2479
        %2486 = vrot.lane.b32.xlu0 %v1523, 32
        %v2487 = vpop.permute.xlu0 %2486
        %2488 = vrot.lane.b32.xlu0 %v1525, 32
        %v2489 = vpop.permute.xlu0 %2488
        %v2491 = vsel %vm1529, %v2487, 0
        %v2494 = vsel %vm1529, %v2489, 0
        %2496 = vmatprep.subr.bf16.mxu0 0
        %2497 = vmatpush1.bf16.xpose.msra.mxu0 %v2494
        %2498 = vmatprep.subr.bf16.mxu0 0
        %2499 = vmatpush1.bf16.xpose.msra.mxu0 0
        %2500 = vmatprep.subr.bf16.mxu0 0
        %2501 = vmatpush1.bf16.xpose.msra.mxu0 0
        %2502 = vmatprep.subr.bf16.mxu0 0
        %2503 = vmatpush1.bf16.xpose.msra.mxu0 0
        %2504 = vmatprep.subr.bf16.mxu0 0
        %2505 = vmatpush1.bf16.xpose.msra.mxu0 0
        %2506 = vmatprep.subr.bf16.mxu0 0
        %2507 = vmatpush1.bf16.xpose.msra.mxu0 0
        %2508 = vmatprep.subr.bf16.mxu0 0
        %2509 = vmatpush1.bf16.xpose.msra.mxu0 0
        %2510 = vmatprep.subr.bf16.mxu0 0
        %2511 = vmatpush1.bf16.xpose.msra.mxu0 0
        %2512 = vmatprep.subr.bf16.mxu0 0
        %2513 = vmatpush1.bf16.xpose.msra.mxu0 0
        %2514 = vmatprep.subr.bf16.mxu0 0
        %2515 = vmatpush1.bf16.xpose.msra.mxu0 0
        %2516 = vmatprep.subr.bf16.mxu0 0
        %2517 = vmatpush1.bf16.xpose.msra.mxu0 0
        %2518 = vmatprep.subr.bf16.mxu0 0
        %2519 = vmatpush1.bf16.xpose.msra.mxu0 0
        %2520 = vmatprep.subr.bf16.mxu0 0
        %2521 = vmatpush1.bf16.xpose.msra.mxu0 0
        %2522 = vmatprep.subr.bf16.mxu0 0
        %2523 = vmatpush1.bf16.xpose.msra.mxu0 0
        %2524 = vmatprep.subr.bf16.mxu0 0
        %2525 = vmatpush1.bf16.xpose.msra.mxu0 0
        %2526 = vmatprep.subr.bf16.mxu0 0
        %2527 = vmatpush1.bf16.xpose.msra.mxu0 0
        %2528 = vmatprep.mubr.bf16.mxu0 0
        %2529 = vmatmul.mubr.bf16.gmra.mrb[0].mxu0 %v2491
        %v2530 = vpop.f32.mrb[0].mxu0
        %v2531 = vadd.f32 0.0, %v2530
        %v2532 = vpop.f32.mrb[0].mxu0
        %v2533 = vpop.f32.mrb[0].mxu0
        %v2534 = vadd.f32 0.0, %v2533
        %v2535 = vpop.f32.mrb[0].mxu0
        %2536 = vdwg.mxu0
        %2537 = vrot.lane.b32.xlu0 %v1524, 32
        %v2538 = vpop.permute.xlu0 %2537
        %2539 = vrot.lane.b32.xlu0 %v1526, 32
        %v2540 = vpop.permute.xlu0 %2539
        %v2542 = vsel %vm1529, %v2538, 0
        %v2545 = vsel %vm1529, %v2540, 0
        %2547 = vmatprep.subr.bf16.mxu0 0
        %2548 = vmatpush1.bf16.xpose.msra.mxu0 %v2545
        %2549 = vmatprep.subr.bf16.mxu0 0
        %2550 = vmatpush1.bf16.xpose.msra.mxu0 0
        %2551 = vmatprep.subr.bf16.mxu0 0
        %2552 = vmatpush1.bf16.xpose.msra.mxu0 0
        %2553 = vmatprep.subr.bf16.mxu0 0
        %2554 = vmatpush1.bf16.xpose.msra.mxu0 0
        %2555 = vmatprep.subr.bf16.mxu0 0
        %2556 = vmatpush1.bf16.xpose.msra.mxu0 0
        %2557 = vmatprep.subr.bf16.mxu0 0
        %2558 = vmatpush1.bf16.xpose.msra.mxu0 0
        %2559 = vmatprep.subr.bf16.mxu0 0
        %2560 = vmatpush1.bf16.xpose.msra.mxu0 0
        %2561 = vmatprep.subr.bf16.mxu0 0
        %2562 = vmatpush1.bf16.xpose.msra.mxu0 0
        %2563 = vmatprep.subr.bf16.mxu0 0
        %2564 = vmatpush1.bf16.xpose.msra.mxu0 0
        %2565 = vmatprep.subr.bf16.mxu0 0
        %2566 = vmatpush1.bf16.xpose.msra.mxu0 0
        %2567 = vmatprep.subr.bf16.mxu0 0
        %2568 = vmatpush1.bf16.xpose.msra.mxu0 0
        %2569 = vmatprep.subr.bf16.mxu0 0
        %2570 = vmatpush1.bf16.xpose.msra.mxu0 0
        %2571 = vmatprep.subr.bf16.mxu0 0
        %2572 = vmatpush1.bf16.xpose.msra.mxu0 0
        %2573 = vmatprep.subr.bf16.mxu0 0
        %2574 = vmatpush1.bf16.xpose.msra.mxu0 0
        %2575 = vmatprep.subr.bf16.mxu0 0
        %2576 = vmatpush1.bf16.xpose.msra.mxu0 0
        %2577 = vmatprep.subr.bf16.mxu0 0
        %2578 = vmatpush1.bf16.xpose.msra.mxu0 0
        %2579 = vmatprep.mubr.bf16.mxu0 0
        %2580 = vmatmul.mubr.bf16.gmra.mrb[0].mxu0 %v2542
        %v2581 = vpop.f32.mrb[0].mxu0
        %v2582 = vadd.f32 0.0, %v2581
        %v2583 = vpop.f32.mrb[0].mxu0
        %v2584 = vpop.f32.mrb[0].mxu0
        %v2585 = vadd.f32 0.0, %v2584
        %v2586 = vpop.f32.mrb[0].mxu0
        %2587 = vdwg.mxu0
        %v2588 = vmul.f32 %v2531, 0.17677669
        %v2589 = vmul.f32 %v2534, 0.17677669
        %v2590 = vmul.f32 %v2582, 0.17677669
        %v2591 = vmul.f32 %v2585, 0.17677669
        %v2592 = vsel %vm1628, %v2588, -inf
        %2593 = vmax.xlane.f32.xlu0 %v2592
        %v2594 = vpop.xlane.xlu0 %2593
        %v2595 = vsel %vm1628, %v2589, -inf
        %2596 = vmax.xlane.f32.xlu0 %v2595
        %v2597 = vpop.xlane.xlu0 %2596
        %v2598 = vsel %vm1628, %v2590, -inf
        %2599 = vmax.xlane.f32.xlu0 %v2598
        %v2600 = vpop.xlane.xlu0 %2599
        %v2601 = vsel %vm1628, %v2591, -inf
        %2602 = vmax.xlane.f32.xlu0 %v2601
        %v2603 = vpop.xlane.xlu0 %2602
        %v2604 = vsub.f32 %v2588, %v2594
        %v2605 = vsub.f32 %v2589, %v2597
        %v2606 = vsub.f32 %v2590, %v2600
        %v2607 = vsub.f32 %v2591, %v2603
        %v2608 = vmul.f32 %v2604, 1.442695
        %v2609 = vpow.pop %v2608
        %v2610 = vmul.f32 %v2605, 1.442695
        %v2611 = vpow.pop %v2610
        %v2612 = vmul.f32 %v2606, 1.442695
        %v2613 = vpow.pop %v2612
        %v2614 = vmul.f32 %v2607, 1.442695
        %v2615 = vpow.pop %v2614
        %v2616 = vsel %vm1628, %v2609, 0.0
        %2617 = vadd.xlane.f32.xlu0 %v2616
        %v2618 = vpop.xlane.xlu0 %2617
        %v2619 = vsel %vm1628, %v2611, 0.0
        %2620 = vadd.xlane.f32.xlu0 %v2619
        %v2621 = vpop.xlane.xlu0 %2620
        %v2622 = vsel %vm1628, %v2613, 0.0
        %2623 = vadd.xlane.f32.xlu0 %v2622
        %v2624 = vpop.xlane.xlu0 %2623
        %v2625 = vsel %vm1628, %v2615, 0.0
        %2626 = vadd.xlane.f32.xlu0 %v2625
        %v2627 = vpop.xlane.xlu0 %2626
        %v2628 = vrcp.pop %v2618
        %v2629 = vrcp.pop %v2621
        %v2630 = vrcp.pop %v2624
        %v2631 = vrcp.pop %v2627
        %v2632 = vmul.f32 %v2609, %v2628
        %v2633 = vmul.f32 %v2611, %v2629
        %v2634 = vmul.f32 %v2613, %v2630
        %v2635 = vmul.f32 %v2615, %v2631
        %v2636 = vpack.c.bf16 %v2633, %v2632
        %v2637 = vpack.c.bf16 %v2635, %v2634
        %2638 = vrot.lane.b32.xlu0 %v1527, 32
        %v2639 = vpop.permute.xlu0 %2638
        %v2642 = vsel %vm1628, %v2636, 0
        %2644 = vmatprep.subr.bf16.mxu0 0
        %2645 = vmatpush1.bf16.msra.mxu0 %v2639
        %2646 = vmatprep.subr.bf16.mxu0 0
        %2647 = vmatpush1.bf16.msra.mxu0 0
        %2648 = vmatprep.subr.bf16.mxu0 0
        %2649 = vmatpush1.bf16.msra.mxu0 0
        %2650 = vmatprep.subr.bf16.mxu0 0
        %2651 = vmatpush1.bf16.msra.mxu0 0
        %2652 = vmatprep.subr.bf16.mxu0 0
        %2653 = vmatpush1.bf16.msra.mxu0 0
        %2654 = vmatprep.subr.bf16.mxu0 0
        %2655 = vmatpush1.bf16.msra.mxu0 0
        %2656 = vmatprep.subr.bf16.mxu0 0
        %2657 = vmatpush1.bf16.msra.mxu0 0
        %2658 = vmatprep.subr.bf16.mxu0 0
        %2659 = vmatpush1.bf16.msra.mxu0 0
        %2660 = vmatprep.subr.bf16.mxu0 0
        %2661 = vmatpush1.bf16.msra.mxu0 0
        %2662 = vmatprep.subr.bf16.mxu0 0
        %2663 = vmatpush1.bf16.msra.mxu0 0
        %2664 = vmatprep.subr.bf16.mxu0 0
        %2665 = vmatpush1.bf16.msra.mxu0 0
        %2666 = vmatprep.subr.bf16.mxu0 0
        %2667 = vmatpush1.bf16.msra.mxu0 0
        %2668 = vmatprep.subr.bf16.mxu0 0
        %2669 = vmatpush1.bf16.msra.mxu0 0
        %2670 = vmatprep.subr.bf16.mxu0 0
        %2671 = vmatpush1.bf16.msra.mxu0 0
        %2672 = vmatprep.subr.bf16.mxu0 0
        %2673 = vmatpush1.bf16.msra.mxu0 0
        %2674 = vmatprep.subr.bf16.mxu0 0
        %2675 = vmatpush1.bf16.msra.mxu0 0
        %2676 = vmatprep.mubr.bf16.mxu0 0
        %2677 = vmatmul.mubr.bf16.gmra.mrb[0].mxu0 %v2642
        %v2678 = vpop.f32.mrb[0].mxu0
        %v2679 = vadd.f32 0.0, %v2678
        %v2680 = vpop.f32.mrb[0].mxu0
        %v2681 = vpop.f32.mrb[0].mxu0
        %v2682 = vadd.f32 0.0, %v2681
        %v2683 = vpop.f32.mrb[0].mxu0
        %2684 = vdwg.mxu0
        %2685 = vrot.lane.b32.xlu0 %v1528, 32
        %v2686 = vpop.permute.xlu0 %2685
        %v2689 = vsel %vm1628, %v2637, 0
        %2691 = vmatprep.subr.bf16.mxu0 0
        %2692 = vmatpush1.bf16.msra.mxu0 %v2686
        %2693 = vmatprep.subr.bf16.mxu0 0
        %2694 = vmatpush1.bf16.msra.mxu0 0
        %2695 = vmatprep.subr.bf16.mxu0 0
        %2696 = vmatpush1.bf16.msra.mxu0 0
        %2697 = vmatprep.subr.bf16.mxu0 0
        %2698 = vmatpush1.bf16.msra.mxu0 0
        %2699 = vmatprep.subr.bf16.mxu0 0
        %2700 = vmatpush1.bf16.msra.mxu0 0
        %2701 = vmatprep.subr.bf16.mxu0 0
        %2702 = vmatpush1.bf16.msra.mxu0 0
        %2703 = vmatprep.subr.bf16.mxu0 0
        %2704 = vmatpush1.bf16.msra.mxu0 0
        %2705 = vmatprep.subr.bf16.mxu0 0
        %2706 = vmatpush1.bf16.msra.mxu0 0
        %2707 = vmatprep.subr.bf16.mxu0 0
        %2708 = vmatpush1.bf16.msra.mxu0 0
        %2709 = vmatprep.subr.bf16.mxu0 0
        %2710 = vmatpush1.bf16.msra.mxu0 0
        %2711 = vmatprep.subr.bf16.mxu0 0
        %2712 = vmatpush1.bf16.msra.mxu0 0
        %2713 = vmatprep.subr.bf16.mxu0 0
        %2714 = vmatpush1.bf16.msra.mxu0 0
        %2715 = vmatprep.subr.bf16.mxu0 0
        %2716 = vmatpush1.bf16.msra.mxu0 0
        %2717 = vmatprep.subr.bf16.mxu0 0
        %2718 = vmatpush1.bf16.msra.mxu0 0
        %2719 = vmatprep.subr.bf16.mxu0 0
        %2720 = vmatpush1.bf16.msra.mxu0 0
        %2721 = vmatprep.subr.bf16.mxu0 0
        %2722 = vmatpush1.bf16.msra.mxu0 0
        %2723 = vmatprep.mubr.bf16.mxu0 0
        %2724 = vmatmul.mubr.bf16.gmra.mrb[0].mxu0 %v2689
        %v2725 = vpop.f32.mrb[0].mxu0
        %v2726 = vadd.f32 0.0, %v2725
        %v2727 = vpop.f32.mrb[0].mxu0
        %v2728 = vpop.f32.mrb[0].mxu0
        %v2729 = vadd.f32 0.0, %v2728
        %v2730 = vpop.f32.mrb[0].mxu0
        %2731 = vdwg.mxu0
        %v2732 = vpack.c.bf16 %v2682, %v2679
        %v2733 = vpack.c.bf16 %v2729, %v2726
        %s2734 = scalar_lea.vmem %s889, 48 [#allocation14]
        %v2735 = vld [vmem:[%s2734] sm:$0xf]
        %v2736 = vld [vmem:[%s2734 + $0x4] sm:$0xf]
        %v2737 = vld [vmem:[%s2734 + $0x8] sm:$0xf]
        %v2738 = vld [vmem:[%s2734 + $0xc] sm:$0xf]
        %v2743 = vunpack.c.l.b16 %v2735
        %v2744 = vunpack.c.l.b16 %v2736
        %v2745 = vunpack.c.l.b16 %v2737
        %v2746 = vunpack.c.l.b16 %v2738
        %v2747 = vpack.c.b16 %v2744, %v2743
        %v2748 = vpack.c.b16 %v2746, %v2745
        %v2752 = vsel %vm1529, %v2732, 0
        %v2755 = vsel %vm1529, %v2733, 0
        %2757 = vmatprep.subr.bf16.mxu0 0
        %2758 = vmatpush1.bf16.msra.mxu0 %v2747
        %2759 = vmatprep.subr.bf16.mxu0 0
        %2760 = vmatpush1.bf16.msra.mxu0 %v2748
        %2761 = vmatprep.subr.bf16.mxu0 0
        %2762 = vmatpush1.bf16.msra.mxu0 0
        %2763 = vmatprep.subr.bf16.mxu0 0
        %2764 = vmatpush1.bf16.msra.mxu0 0
        %2765 = vmatprep.subr.bf16.mxu0 0
        %2766 = vmatpush1.bf16.msra.mxu0 0
        %2767 = vmatprep.subr.bf16.mxu0 0
        %2768 = vmatpush1.bf16.msra.mxu0 0
        %2769 = vmatprep.subr.bf16.mxu0 0
        %2770 = vmatpush1.bf16.msra.mxu0 0
        %2771 = vmatprep.subr.bf16.mxu0 0
        %2772 = vmatpush1.bf16.msra.mxu0 0
        %2773 = vmatprep.subr.bf16.mxu0 0
        %2774 = vmatpush1.bf16.msra.mxu0 0
        %2775 = vmatprep.subr.bf16.mxu0 0
        %2776 = vmatpush1.bf16.msra.mxu0 0
        %2777 = vmatprep.subr.bf16.mxu0 0
        %2778 = vmatpush1.bf16.msra.mxu0 0
        %2779 = vmatprep.subr.bf16.mxu0 0
        %2780 = vmatpush1.bf16.msra.mxu0 0
        %2781 = vmatprep.subr.bf16.mxu0 0
        %2782 = vmatpush1.bf16.msra.mxu0 0
        %2783 = vmatprep.subr.bf16.mxu0 0
        %2784 = vmatpush1.bf16.msra.mxu0 0
        %2785 = vmatprep.subr.bf16.mxu0 0
        %2786 = vmatpush1.bf16.msra.mxu0 0
        %2787 = vmatprep.subr.bf16.mxu0 0
        %2788 = vmatpush1.bf16.msra.mxu0 0
        %2789 = vmatprep.mubr.bf16.mxu0 0
        %2790 = vmatmul.mubr.bf16.gmra.mrb[0].mxu0 %v2752
        %v2791 = vpop.f32.mrb[0].mxu0
        %v2792 = vadd.f32 0.0, %v2791
        %v2793 = vpop.f32.mrb[0].mxu0
        %v2794 = vpop.f32.mrb[0].mxu0
        %v2795 = vadd.f32 0.0, %v2794
        %v2796 = vpop.f32.mrb[0].mxu0
        %2797 = vmatprep.mubr.bf16.mxu0 0
        %2798 = vmatmul.mubr.bf16.gmra.mrb[0].mxu0 %v2755
        %v2799 = vpop.f32.mrb[0].mxu0
        %v2800 = vadd.f32 0.0, %v2799
        %v2801 = vpop.f32.mrb[0].mxu0
        %v2802 = vpop.f32.mrb[0].mxu0
        %v2803 = vadd.f32 0.0, %v2802
        %v2804 = vpop.f32.mrb[0].mxu0
        %2805 = vdwg.mxu0
        %v2806 = vadd.f32 %v2482, %v2792
        %v2807 = vadd.f32 %v2483, %v2795
        %v2808 = vadd.f32 %v2484, %v2800
        %v2809 = vadd.f32 %v2485, %v2803
        %v2810 = vadd.f32 %v1171, %v2806
        %v2811 = vadd.f32 %v1172, %v2807
        %v2812 = vadd.f32 %v1173, %v2808
        %v2813 = vadd.f32 %v1174, %v2809
        %v2814 = vld [vmem:[%s897] sm:$0x1]
        %v2816 = vlaneseq
        %v2817 = vshrl.u32 %v2816, 7
        %v2818 = vsub.s32 0, %v2817
        %v2819 = vrot.slane %v2814, %v2818
        %v2821 = vadd.f32 %v2810, %v2819
        %v2822 = vadd.f32 %v2811, %v2819
        %v2823 = vadd.f32 %v2812, %v2819
        %v2824 = vadd.f32 %v2813, %v2819
        %v2825 = vld [vmem:[%s905] sm:$0x1]
        %v2826 = vld [vmem:[%s913] sm:$0x1]
        %2827 = vadd.xlane.f32.xlu0 %v2821
        %v2828 = vpop.xlane.xlu0 %2827
        %2829 = vadd.xlane.f32.xlu0 %v2822
        %v2830 = vpop.xlane.xlu0 %2829
        %2831 = vadd.xlane.f32.xlu0 %v2823
        %v2832 = vpop.xlane.xlu0 %2831
        %2833 = vadd.xlane.f32.xlu0 %v2824
        %v2834 = vpop.xlane.xlu0 %2833
        %v2835 = vmul.f32 %v2828, %v1185
        %v2836 = vmul.f32 %v2830, %v1185
        %v2837 = vmul.f32 %v2832, %v1185
        %v2838 = vmul.f32 %v2834, %v1185
        %v2839 = vsub.f32 %v2821, %v2835
        %v2840 = vsub.f32 %v2822, %v2836
        %v2841 = vsub.f32 %v2823, %v2837
        %v2842 = vsub.f32 %v2824, %v2838
        %v2843 = vmul.f32 %v2839, %v2839
        %v2844 = vmul.f32 %v2840, %v2840
        %v2845 = vmul.f32 %v2841, %v2841
        %v2846 = vmul.f32 %v2842, %v2842
        %2847 = vadd.xlane.f32.xlu0 %v2843
        %v2848 = vpop.xlane.xlu0 %2847
        %2849 = vadd.xlane.f32.xlu0 %v2844
        %v2850 = vpop.xlane.xlu0 %2849
        %2851 = vadd.xlane.f32.xlu0 %v2845
        %v2852 = vpop.xlane.xlu0 %2851
        %2853 = vadd.xlane.f32.xlu0 %v2846
        %v2854 = vpop.xlane.xlu0 %2853
        %v2855 = vmul.f32 %v2848, %v1185
        %v2856 = vmul.f32 %v2850, %v1185
        %v2857 = vmul.f32 %v2852, %v1185
        %v2858 = vmul.f32 %v2854, %v1185
        %v2859 = vadd.f32 %v2855, 1e-05
        %v2860 = vadd.f32 %v2856, 1e-05
        %v2861 = vadd.f32 %v2857, 1e-05
        %v2862 = vadd.f32 %v2858, 1e-05
        %v2863 = vrsqrt.pop %v2859
        %v2864 = vrsqrt.pop %v2860
        %v2865 = vrsqrt.pop %v2861
        %v2866 = vrsqrt.pop %v2862
        %v2867 = vmul.f32 %v2839, %v2863
        %v2868 = vmul.f32 %v2840, %v2864
        %v2869 = vmul.f32 %v2841, %v2865
        %v2870 = vmul.f32 %v2842, %v2866
        %v2872 = vlaneseq
        %v2873 = vshrl.u32 %v2872, 7
        %v2874 = vsub.s32 0, %v2873
        %v2875 = vrot.slane %v2825, %v2874
        %v2877 = vmul.f32 %v2867, %v2875
        %v2878 = vmul.f32 %v2868, %v2875
        %v2879 = vmul.f32 %v2869, %v2875
        %v2880 = vmul.f32 %v2870, %v2875
        %v2882 = vlaneseq
        %v2883 = vshrl.u32 %v2882, 7
        %v2884 = vsub.s32 0, %v2883
        %v2885 = vrot.slane %v2826, %v2884
        %v2887 = vadd.f32 %v2877, %v2885
        %v2888 = vadd.f32 %v2878, %v2885
        %v2889 = vadd.f32 %v2879, %v2885
        %v2890 = vadd.f32 %v2880, %v2885
        %v2891 = vpack.c.bf16 %v2888, %v2887
        %v2892 = vpack.c.bf16 %v2890, %v2889
        %v2893 = vld [vmem:[%s922] sm:$0xff]
        %v2894 = vld [vmem:[%s922 + $0x8] sm:$0xff]
        %v2895 = vld [vmem:[%s922 + $0x10] sm:$0xff]
        %v2896 = vld [vmem:[%s922 + $0x18] sm:$0xff]
        %v2897 = vld [vmem:[%s922 + $0x20] sm:$0xff]
        %v2898 = vld [vmem:[%s922 + $0x28] sm:$0xff]
        %v2899 = vld [vmem:[%s922 + $0x30] sm:$0xff]
        %v2900 = vld [vmem:[%s922 + $0x38] sm:$0xff]
        %v2901 = vld [vmem:[%s922 + $0x40] sm:$0xff]
        %v2902 = vld [vmem:[%s922 + $0x48] sm:$0xff]
        %v2903 = vld [vmem:[%s922 + $0x50] sm:$0xff]
        %v2904 = vld [vmem:[%s922 + $0x58] sm:$0xff]
        %v2905 = vld [vmem:[%s922 + $0x60] sm:$0xff]
        %v2906 = vld [vmem:[%s922 + $0x68] sm:$0xff]
        %v2907 = vld [vmem:[%s922 + $0x70] sm:$0xff]
        %v2908 = vld [vmem:[%s922 + $0x78] sm:$0xff]
        %v2909 = vld [vmem:[%s922 + $0x80] sm:$0xff]
        %v2910 = vld [vmem:[%s922 + $0x88] sm:$0xff]
        %v2911 = vld [vmem:[%s922 + $0x90] sm:$0xff]
        %v2912 = vld [vmem:[%s922 + $0x98] sm:$0xff]
        %v2913 = vld [vmem:[%s922 + $0xa0] sm:$0xff]
        %v2914 = vld [vmem:[%s922 + $0xa8] sm:$0xff]
        %v2915 = vld [vmem:[%s922 + $0xb0] sm:$0xff]
        %v2916 = vld [vmem:[%s922 + $0xb8] sm:$0xff]
        %v2917 = vld [vmem:[%s922 + $0xc0] sm:$0xff]
        %v2918 = vld [vmem:[%s922 + $0xc8] sm:$0xff]
        %v2919 = vld [vmem:[%s922 + $0xd0] sm:$0xff]
        %v2920 = vld [vmem:[%s922 + $0xd8] sm:$0xff]
        %v2921 = vld [vmem:[%s922 + $0xe0] sm:$0xff]
        %v2922 = vld [vmem:[%s922 + $0xe8] sm:$0xff]
        %v2923 = vld [vmem:[%s922 + $0xf0] sm:$0xff]
        %v2924 = vld [vmem:[%s922 + $0xf8] sm:$0xff]
        %v2925 = vld [vmem:[%s931] sm:$0xf]
        %v2927 = vlaneseq
        %v2928 = vshrl.u32 %v2927, 7
        %v2929 = vsub.s32 0, %v2928
        %v2930 = vrot.slane %v2925, %v2929
        %v2931 = vlaneseq
        %v2932 = vshrl.u32 %v2931, 7
        %v2933 = vsub.s32 1, %v2932
        %v2934 = vrot.slane %v2925, %v2933
        %v2935 = vlaneseq
        %v2936 = vshrl.u32 %v2935, 7
        %v2937 = vsub.s32 2, %v2936
        %v2938 = vrot.slane %v2925, %v2937
        %v2939 = vlaneseq
        %v2940 = vshrl.u32 %v2939, 7
        %v2941 = vsub.s32 3, %v2940
        %v2942 = vrot.slane %v2925, %v2941
        %v2979 = vunpack.c.l.b16 %v2893
        %v2980 = vunpack.c.h.b16 %v2893
        %v2981 = vunpack.c.l.b16 %v2894
        %v2982 = vunpack.c.h.b16 %v2894
        %v2983 = vunpack.c.l.b16 %v2895
        %v2984 = vunpack.c.h.b16 %v2895
        %v2985 = vunpack.c.l.b16 %v2896
        %v2986 = vunpack.c.h.b16 %v2896
        %v2987 = vunpack.c.l.b16 %v2897
        %v2988 = vunpack.c.h.b16 %v2897
        %v2989 = vunpack.c.l.b16 %v2898
        %v2990 = vunpack.c.h.b16 %v2898
        %v2991 = vunpack.c.l.b16 %v2899
        %v2992 = vunpack.c.h.b16 %v2899
        %v2993 = vunpack.c.l.b16 %v2900
        %v2994 = vunpack.c.h.b16 %v2900
        %v2995 = vunpack.c.l.b16 %v2901
        %v2996 = vunpack.c.h.b16 %v2901
        %v2997 = vunpack.c.l.b16 %v2902
        %v2998 = vunpack.c.h.b16 %v2902
        %v2999 = vunpack.c.l.b16 %v2903
        %v3000 = vunpack.c.h.b16 %v2903
        %v3001 = vunpack.c.l.b16 %v2904
        %v3002 = vunpack.c.h.b16 %v2904
        %v3003 = vunpack.c.l.b16 %v2905
        %v3004 = vunpack.c.h.b16 %v2905
        %v3005 = vunpack.c.l.b16 %v2906
        %v3006 = vunpack.c.h.b16 %v2906
        %v3007 = vunpack.c.l.b16 %v2907
        %v3008 = vunpack.c.h.b16 %v2907
        %v3009 = vunpack.c.l.b16 %v2908
        %v3010 = vunpack.c.h.b16 %v2908
        %v3011 = vunpack.c.l.b16 %v2909
        %v3012 = vunpack.c.h.b16 %v2909
        %v3013 = vunpack.c.l.b16 %v2910
        %v3014 = vunpack.c.h.b16 %v2910
        %v3015 = vunpack.c.l.b16 %v2911
        %v3016 = vunpack.c.h.b16 %v2911
        %v3017 = vunpack.c.l.b16 %v2912
        %v3018 = vunpack.c.h.b16 %v2912
        %v3019 = vunpack.c.l.b16 %v2913
        %v3020 = vunpack.c.h.b16 %v2913
        %v3021 = vunpack.c.l.b16 %v2914
        %v3022 = vunpack.c.h.b16 %v2914
        %v3023 = vunpack.c.l.b16 %v2915
        %v3024 = vunpack.c.h.b16 %v2915
        %v3025 = vunpack.c.l.b16 %v2916
        %v3026 = vunpack.c.h.b16 %v2916
        %v3027 = vunpack.c.l.b16 %v2917
        %v3028 = vunpack.c.h.b16 %v2917
        %v3029 = vunpack.c.l.b16 %v2918
        %v3030 = vunpack.c.h.b16 %v2918
        %v3031 = vunpack.c.l.b16 %v2919
        %v3032 = vunpack.c.h.b16 %v2919
        %v3033 = vunpack.c.l.b16 %v2920
        %v3034 = vunpack.c.h.b16 %v2920
        %v3035 = vunpack.c.l.b16 %v2921
        %v3036 = vunpack.c.h.b16 %v2921
        %v3037 = vunpack.c.l.b16 %v2922
        %v3038 = vunpack.c.h.b16 %v2922
        %v3039 = vunpack.c.l.b16 %v2923
        %v3040 = vunpack.c.h.b16 %v2923
        %v3041 = vunpack.c.l.b16 %v2924
        %v3042 = vunpack.c.h.b16 %v2924
        %v3043 = vpack.c.b16 %v2983, %v2979
        %v3044 = vpack.c.b16 %v2984, %v2980
        %v3045 = vpack.c.b16 %v2985, %v2981
        %v3046 = vpack.c.b16 %v2986, %v2982
        %v3047 = vpack.c.b16 %v2991, %v2987
        %v3048 = vpack.c.b16 %v2992, %v2988
        %v3049 = vpack.c.b16 %v2993, %v2989
        %v3050 = vpack.c.b16 %v2994, %v2990
        %v3051 = vpack.c.b16 %v2999, %v2995
        %v3052 = vpack.c.b16 %v3000, %v2996
        %v3053 = vpack.c.b16 %v3001, %v2997
        %v3054 = vpack.c.b16 %v3002, %v2998
        %v3055 = vpack.c.b16 %v3007, %v3003
        %v3056 = vpack.c.b16 %v3008, %v3004
        %v3057 = vpack.c.b16 %v3009, %v3005
        %v3058 = vpack.c.b16 %v3010, %v3006
        %v3059 = vpack.c.b16 %v3015, %v3011
        %v3060 = vpack.c.b16 %v3016, %v3012
        %v3061 = vpack.c.b16 %v3017, %v3013
        %v3062 = vpack.c.b16 %v3018, %v3014
        %v3063 = vpack.c.b16 %v3023, %v3019
        %v3064 = vpack.c.b16 %v3024, %v3020
        %v3065 = vpack.c.b16 %v3025, %v3021
        %v3066 = vpack.c.b16 %v3026, %v3022
        %v3067 = vpack.c.b16 %v3031, %v3027
        %v3068 = vpack.c.b16 %v3032, %v3028
        %v3069 = vpack.c.b16 %v3033, %v3029
        %v3070 = vpack.c.b16 %v3034, %v3030
        %v3071 = vpack.c.b16 %v3039, %v3035
        %v3072 = vpack.c.b16 %v3040, %v3036
        %v3073 = vpack.c.b16 %v3041, %v3037
        %v3074 = vpack.c.b16 %v3042, %v3038
        %3107 = vmatprep.subr.bf16.mxu0 %v3044
        %3108 = vmatpush1.bf16.msra.mxu0 %v3043
        %3109 = vmatprep.subr.bf16.mxu0 %v3048
        %3110 = vmatpush1.bf16.msra.mxu0 %v3047
        %3111 = vmatprep.subr.bf16.mxu0 %v3052
        %3112 = vmatpush1.bf16.msra.mxu0 %v3051
        %3113 = vmatprep.subr.bf16.mxu0 %v3056
        %3114 = vmatpush1.bf16.msra.mxu0 %v3055
        %3115 = vmatprep.subr.bf16.mxu0 %v3060
        %3116 = vmatpush1.bf16.msra.mxu0 %v3059
        %3117 = vmatprep.subr.bf16.mxu0 %v3064
        %3118 = vmatpush1.bf16.msra.mxu0 %v3063
        %3119 = vmatprep.subr.bf16.mxu0 %v3068
        %3120 = vmatpush1.bf16.msra.mxu0 %v3067
        %3121 = vmatprep.subr.bf16.mxu0 %v3072
        %3122 = vmatpush1.bf16.msra.mxu0 %v3071
        %3123 = vmatprep.subr.bf16.mxu0 0
        %3124 = vmatpush1.bf16.msra.mxu0 0
        %3125 = vmatprep.subr.bf16.mxu0 0
        %3126 = vmatpush1.bf16.msra.mxu0 0
        %3127 = vmatprep.subr.bf16.mxu0 0
        %3128 = vmatpush1.bf16.msra.mxu0 0
        %3129 = vmatprep.subr.bf16.mxu0 0
        %3130 = vmatpush1.bf16.msra.mxu0 0
        %3131 = vmatprep.subr.bf16.mxu0 0
        %3132 = vmatpush1.bf16.msra.mxu0 0
        %3133 = vmatprep.subr.bf16.mxu0 0
        %3134 = vmatpush1.bf16.msra.mxu0 0
        %3135 = vmatprep.subr.bf16.mxu0 0
        %3136 = vmatpush1.bf16.msra.mxu0 0
        %3137 = vmatprep.subr.bf16.mxu0 0
        %3138 = vmatpush1.bf16.msra.mxu0 0
        %3139 = vmatprep.mubr.bf16.mxu0 0
        %3140 = vmatmul.mubr.bf16.gmra.mrb[0].mxu0 %v2891
        %v3141 = vpop.f32.mrb[0].mxu0
        %v3142 = vadd.f32 %v2930, %v3141
        %v3143 = vpop.f32.mrb[0].mxu0
        %v3144 = vadd.f32 %v2934, %v3143
        %v3145 = vpop.f32.mrb[0].mxu0
        %v3146 = vadd.f32 %v2930, %v3145
        %v3147 = vpop.f32.mrb[0].mxu0
        %v3148 = vadd.f32 %v2934, %v3147
        %3149 = vmatprep.mubr.bf16.mxu0 0
        %3150 = vmatmul.mubr.bf16.gmra.mrb[0].mxu0 %v2892
        %v3151 = vpop.f32.mrb[0].mxu0
        %v3152 = vadd.f32 %v2930, %v3151
        %v3153 = vpop.f32.mrb[0].mxu0
        %v3154 = vadd.f32 %v2934, %v3153
        %v3155 = vpop.f32.mrb[0].mxu0
        %v3156 = vadd.f32 %v2930, %v3155
        %v3157 = vpop.f32.mrb[0].mxu0
        %v3158 = vadd.f32 %v2934, %v3157
        %3159 = vdwg.mxu0
        %3160 = vmatprep.subr.bf16.mxu0 %v3046
        %3161 = vmatpush1.bf16.msra.mxu0 %v3045
        %3162 = vmatprep.subr.bf16.mxu0 %v3050
        %3163 = vmatpush1.bf16.msra.mxu0 %v3049
        %3164 = vmatprep.subr.bf16.mxu0 %v3054
        %3165 = vmatpush1.bf16.msra.mxu0 %v3053
        %3166 = vmatprep.subr.bf16.mxu0 %v3058
        %3167 = vmatpush1.bf16.msra.mxu0 %v3057
        %3168 = vmatprep.subr.bf16.mxu0 %v3062
        %3169 = vmatpush1.bf16.msra.mxu0 %v3061
        %3170 = vmatprep.subr.bf16.mxu0 %v3066
        %3171 = vmatpush1.bf16.msra.mxu0 %v3065
        %3172 = vmatprep.subr.bf16.mxu0 %v3070
        %3173 = vmatpush1.bf16.msra.mxu0 %v3069
        %3174 = vmatprep.subr.bf16.mxu0 %v3074
        %3175 = vmatpush1.bf16.msra.mxu0 %v3073
        %3176 = vmatprep.subr.bf16.mxu0 0
        %3177 = vmatpush1.bf16.msra.mxu0 0
        %3178 = vmatprep.subr.bf16.mxu0 0
        %3179 = vmatpush1.bf16.msra.mxu0 0
        %3180 = vmatprep.subr.bf16.mxu0 0
        %3181 = vmatpush1.bf16.msra.mxu0 0
        %3182 = vmatprep.subr.bf16.mxu0 0
        %3183 = vmatpush1.bf16.msra.mxu0 0
        %3184 = vmatprep.subr.bf16.mxu0 0
        %3185 = vmatpush1.bf16.msra.mxu0 0
        %3186 = vmatprep.subr.bf16.mxu0 0
        %3187 = vmatpush1.bf16.msra.mxu0 0
        %3188 = vmatprep.subr.bf16.mxu0 0
        %3189 = vmatpush1.bf16.msra.mxu0 0
        %3190 = vmatprep.subr.bf16.mxu0 0
        %3191 = vmatpush1.bf16.msra.mxu0 0
        %3192 = vmatprep.mubr.bf16.mxu0 0
        %3193 = vmatmul.mubr.bf16.gmra.mrb[0].mxu0 %v2891
        %v3194 = vpop.f32.mrb[0].mxu0
        %v3195 = vadd.f32 %v2938, %v3194
        %v3196 = vpop.f32.mrb[0].mxu0
        %v3197 = vadd.f32 %v2942, %v3196
        %v3198 = vpop.f32.mrb[0].mxu0
        %v3199 = vadd.f32 %v2938, %v3198
        %v3200 = vpop.f32.mrb[0].mxu0
        %v3201 = vadd.f32 %v2942, %v3200
        %3202 = vmatprep.mubr.bf16.mxu0 0
        %3203 = vmatmul.mubr.bf16.gmra.mrb[0].mxu0 %v2892
        %v3204 = vpop.f32.mrb[0].mxu0
        %v3205 = vadd.f32 %v2938, %v3204
        %v3206 = vpop.f32.mrb[0].mxu0
        %v3207 = vadd.f32 %v2942, %v3206
        %v3208 = vpop.f32.mrb[0].mxu0
        %v3209 = vadd.f32 %v2938, %v3208
        %v3210 = vpop.f32.mrb[0].mxu0
        %v3211 = vadd.f32 %v2942, %v3210
        %3212 = vdwg.mxu0
        %v3213 = vmul.f32 %v3142, %v3142
        %v3214 = vmul.f32 %v3144, %v3144
        %v3215 = vmul.f32 %v3195, %v3195
        %v3216 = vmul.f32 %v3197, %v3197
        %v3217 = vmul.f32 %v3146, %v3146
        %v3218 = vmul.f32 %v3148, %v3148
        %v3219 = vmul.f32 %v3199, %v3199
        %v3220 = vmul.f32 %v3201, %v3201
        %v3221 = vmul.f32 %v3152, %v3152
        %v3222 = vmul.f32 %v3154, %v3154
        %v3223 = vmul.f32 %v3205, %v3205
        %v3224 = vmul.f32 %v3207, %v3207
        %v3225 = vmul.f32 %v3156, %v3156
        %v3226 = vmul.f32 %v3158, %v3158
        %v3227 = vmul.f32 %v3209, %v3209
        %v3228 = vmul.f32 %v3211, %v3211
        %v3229 = vmul.f32 %v3142, %v3213
        %v3230 = vmul.f32 %v3144, %v3214
        %v3231 = vmul.f32 %v3195, %v3215
        %v3232 = vmul.f32 %v3197, %v3216
        %v3233 = vmul.f32 %v3146, %v3217
        %v3234 = vmul.f32 %v3148, %v3218
        %v3235 = vmul.f32 %v3199, %v3219
        %v3236 = vmul.f32 %v3201, %v3220
        %v3237 = vmul.f32 %v3152, %v3221
        %v3238 = vmul.f32 %v3154, %v3222
        %v3239 = vmul.f32 %v3205, %v3223
        %v3240 = vmul.f32 %v3207, %v3224
        %v3241 = vmul.f32 %v3156, %v3225
        %v3242 = vmul.f32 %v3158, %v3226
        %v3243 = vmul.f32 %v3209, %v3227
        %v3244 = vmul.f32 %v3211, %v3228
        %v3245 = vmul.f32 %v3229, 0.044715
        %v3246 = vmul.f32 %v3230, 0.044715
        %v3247 = vmul.f32 %v3231, 0.044715
        %v3248 = vmul.f32 %v3232, 0.044715
        %v3249 = vmul.f32 %v3233, 0.044715
        %v3250 = vmul.f32 %v3234, 0.044715
        %v3251 = vmul.f32 %v3235, 0.044715
        %v3252 = vmul.f32 %v3236, 0.044715
        %v3253 = vmul.f32 %v3237, 0.044715
        %v3254 = vmul.f32 %v3238, 0.044715
        %v3255 = vmul.f32 %v3239, 0.044715
        %v3256 = vmul.f32 %v3240, 0.044715
        %v3257 = vmul.f32 %v3241, 0.044715
        %v3258 = vmul.f32 %v3242, 0.044715
        %v3259 = vmul.f32 %v3243, 0.044715
        %v3260 = vmul.f32 %v3244, 0.044715
        %v3261 = vadd.f32 %v3142, %v3245
        %v3262 = vadd.f32 %v3144, %v3246
        %v3263 = vadd.f32 %v3195, %v3247
        %v3264 = vadd.f32 %v3197, %v3248
        %v3265 = vadd.f32 %v3146, %v3249
        %v3266 = vadd.f32 %v3148, %v3250
        %v3267 = vadd.f32 %v3199, %v3251
        %v3268 = vadd.f32 %v3201, %v3252
        %v3269 = vadd.f32 %v3152, %v3253
        %v3270 = vadd.f32 %v3154, %v3254
        %v3271 = vadd.f32 %v3205, %v3255
        %v3272 = vadd.f32 %v3207, %v3256
        %v3273 = vadd.f32 %v3156, %v3257
        %v3274 = vadd.f32 %v3158, %v3258
        %v3275 = vadd.f32 %v3209, %v3259
        %v3276 = vadd.f32 %v3211, %v3260
        %v3277 = vmul.f32 %v3261, 0.7978846
        %v3278 = vmul.f32 %v3262, 0.7978846
        %v3279 = vmul.f32 %v3263, 0.7978846
        %v3280 = vmul.f32 %v3264, 0.7978846
        %v3281 = vmul.f32 %v3265, 0.7978846
        %v3282 = vmul.f32 %v3266, 0.7978846
        %v3283 = vmul.f32 %v3267, 0.7978846
        %v3284 = vmul.f32 %v3268, 0.7978846
        %v3285 = vmul.f32 %v3269, 0.7978846
        %v3286 = vmul.f32 %v3270, 0.7978846
        %v3287 = vmul.f32 %v3271, 0.7978846
        %v3288 = vmul.f32 %v3272, 0.7978846
        %v3289 = vmul.f32 %v3273, 0.7978846
        %v3290 = vmul.f32 %v3274, 0.7978846
        %v3291 = vmul.f32 %v3275, 0.7978846
        %v3292 = vmul.f32 %v3276, 0.7978846
        %v3293 = vtanh.pop %v3277
        %v3294 = vtanh.pop %v3278
        %v3295 = vtanh.pop %v3279
        %v3296 = vtanh.pop %v3280
        %v3297 = vtanh.pop %v3281
        %v3298 = vtanh.pop %v3282
        %v3299 = vtanh.pop %v3283
        %v3300 = vtanh.pop %v3284
        %v3301 = vtanh.pop %v3285
        %v3302 = vtanh.pop %v3286
        %v3303 = vtanh.pop %v3287
        %v3304 = vtanh.pop %v3288
        %v3305 = vtanh.pop %v3289
        %v3306 = vtanh.pop %v3290
        %v3307 = vtanh.pop %v3291
        %v3308 = vtanh.pop %v3292
        %v3309 = vadd.f32 %v3293, 1.0
        %v3310 = vadd.f32 %v3294, 1.0
        %v3311 = vadd.f32 %v3295, 1.0
        %v3312 = vadd.f32 %v3296, 1.0
        %v3313 = vadd.f32 %v3297, 1.0
        %v3314 = vadd.f32 %v3298, 1.0
        %v3315 = vadd.f32 %v3299, 1.0
        %v3316 = vadd.f32 %v3300, 1.0
        %v3317 = vadd.f32 %v3301, 1.0
        %v3318 = vadd.f32 %v3302, 1.0
        %v3319 = vadd.f32 %v3303, 1.0
        %v3320 = vadd.f32 %v3304, 1.0
        %v3321 = vadd.f32 %v3305, 1.0
        %v3322 = vadd.f32 %v3306, 1.0
        %v3323 = vadd.f32 %v3307, 1.0
        %v3324 = vadd.f32 %v3308, 1.0
        %v3325 = vmul.f32 %v3309, 0.5
        %v3326 = vmul.f32 %v3310, 0.5
        %v3327 = vmul.f32 %v3311, 0.5
        %v3328 = vmul.f32 %v3312, 0.5
        %v3329 = vmul.f32 %v3313, 0.5
        %v3330 = vmul.f32 %v3314, 0.5
        %v3331 = vmul.f32 %v3315, 0.5
        %v3332 = vmul.f32 %v3316, 0.5
        %v3333 = vmul.f32 %v3317, 0.5
        %v3334 = vmul.f32 %v3318, 0.5
        %v3335 = vmul.f32 %v3319, 0.5
        %v3336 = vmul.f32 %v3320, 0.5
        %v3337 = vmul.f32 %v3321, 0.5
        %v3338 = vmul.f32 %v3322, 0.5
        %v3339 = vmul.f32 %v3323, 0.5
        %v3340 = vmul.f32 %v3324, 0.5
        %v3341 = vmul.f32 %v3142, %v3325
        %v3342 = vmul.f32 %v3144, %v3326
        %v3343 = vmul.f32 %v3195, %v3327
        %v3344 = vmul.f32 %v3197, %v3328
        %v3345 = vmul.f32 %v3146, %v3329
        %v3346 = vmul.f32 %v3148, %v3330
        %v3347 = vmul.f32 %v3199, %v3331
        %v3348 = vmul.f32 %v3201, %v3332
        %v3349 = vmul.f32 %v3152, %v3333
        %v3350 = vmul.f32 %v3154, %v3334
        %v3351 = vmul.f32 %v3205, %v3335
        %v3352 = vmul.f32 %v3207, %v3336
        %v3353 = vmul.f32 %v3156, %v3337
        %v3354 = vmul.f32 %v3158, %v3338
        %v3355 = vmul.f32 %v3209, %v3339
        %v3356 = vmul.f32 %v3211, %v3340
        %v3357 = vpack.c.bf16 %v3345, %v3341
        %v3358 = vpack.c.bf16 %v3346, %v3342
        %v3359 = vpack.c.bf16 %v3347, %v3343
        %v3360 = vpack.c.bf16 %v3348, %v3344
        %v3361 = vpack.c.bf16 %v3353, %v3349
        %v3362 = vpack.c.bf16 %v3354, %v3350
        %v3363 = vpack.c.bf16 %v3355, %v3351
        %v3364 = vpack.c.bf16 %v3356, %v3352
        %v3365 = vld [vmem:[%s940] sm:$0xf]
        %v3366 = vld [vmem:[%s940 + $0x4] sm:$0xf]
        %v3367 = vld [vmem:[%s940 + $0x8] sm:$0xf]
        %v3368 = vld [vmem:[%s940 + $0xc] sm:$0xf]
        %v3369 = vld [vmem:[%s940 + $0x10] sm:$0xf]
        %v3370 = vld [vmem:[%s940 + $0x14] sm:$0xf]
        %v3371 = vld [vmem:[%s940 + $0x18] sm:$0xf]
        %v3372 = vld [vmem:[%s940 + $0x1c] sm:$0xf]
        %v3373 = vld [vmem:[%s940 + $0x20] sm:$0xf]
        %v3374 = vld [vmem:[%s940 + $0x24] sm:$0xf]
        %v3375 = vld [vmem:[%s940 + $0x28] sm:$0xf]
        %v3376 = vld [vmem:[%s940 + $0x2c] sm:$0xf]
        %v3377 = vld [vmem:[%s940 + $0x30] sm:$0xf]
        %v3378 = vld [vmem:[%s940 + $0x34] sm:$0xf]
        %v3379 = vld [vmem:[%s940 + $0x38] sm:$0xf]
        %v3380 = vld [vmem:[%s940 + $0x3c] sm:$0xf]
        %v3381 = vld [vmem:[%s940 + $0x40] sm:$0xf]
        %v3382 = vld [vmem:[%s940 + $0x44] sm:$0xf]
        %v3383 = vld [vmem:[%s940 + $0x48] sm:$0xf]
        %v3384 = vld [vmem:[%s940 + $0x4c] sm:$0xf]
        %v3385 = vld [vmem:[%s940 + $0x50] sm:$0xf]
        %v3386 = vld [vmem:[%s940 + $0x54] sm:$0xf]
        %v3387 = vld [vmem:[%s940 + $0x58] sm:$0xf]
        %v3388 = vld [vmem:[%s940 + $0x5c] sm:$0xf]
        %v3389 = vld [vmem:[%s940 + $0x60] sm:$0xf]
        %v3390 = vld [vmem:[%s940 + $0x64] sm:$0xf]
        %v3391 = vld [vmem:[%s940 + $0x68] sm:$0xf]
        %v3392 = vld [vmem:[%s940 + $0x6c] sm:$0xf]
        %v3393 = vld [vmem:[%s940 + $0x70] sm:$0xf]
        %v3394 = vld [vmem:[%s940 + $0x74] sm:$0xf]
        %v3395 = vld [vmem:[%s940 + $0x78] sm:$0xf]
        %v3396 = vld [vmem:[%s940 + $0x7c] sm:$0xf]
        %v3397 = vld [vmem:[%s940 + $0x80] sm:$0xf]
        %v3398 = vld [vmem:[%s940 + $0x84] sm:$0xf]
        %v3399 = vld [vmem:[%s940 + $0x88] sm:$0xf]
        %v3400 = vld [vmem:[%s940 + $0x8c] sm:$0xf]
        %v3401 = vld [vmem:[%s940 + $0x90] sm:$0xf]
        %v3402 = vld [vmem:[%s940 + $0x94] sm:$0xf]
        %v3403 = vld [vmem:[%s940 + $0x98] sm:$0xf]
        %v3404 = vld [vmem:[%s940 + $0x9c] sm:$0xf]
        %v3405 = vld [vmem:[%s940 + $0xa0] sm:$0xf]
        %v3406 = vld [vmem:[%s940 + $0xa4] sm:$0xf]
        %v3407 = vld [vmem:[%s940 + $0xa8] sm:$0xf]
        %v3408 = vld [vmem:[%s940 + $0xac] sm:$0xf]
        %v3409 = vld [vmem:[%s940 + $0xb0] sm:$0xf]
        %v3410 = vld [vmem:[%s940 + $0xb4] sm:$0xf]
        %v3411 = vld [vmem:[%s940 + $0xb8] sm:$0xf]
        %v3412 = vld [vmem:[%s940 + $0xbc] sm:$0xf]
        %v3413 = vld [vmem:[%s940 + $0xc0] sm:$0xf]
        %v3414 = vld [vmem:[%s940 + $0xc4] sm:$0xf]
        %v3415 = vld [vmem:[%s940 + $0xc8] sm:$0xf]
        %v3416 = vld [vmem:[%s940 + $0xcc] sm:$0xf]
        %v3417 = vld [vmem:[%s940 + $0xd0] sm:$0xf]
        %v3418 = vld [vmem:[%s940 + $0xd4] sm:$0xf]
        %v3419 = vld [vmem:[%s940 + $0xd8] sm:$0xf]
        %v3420 = vld [vmem:[%s940 + $0xdc] sm:$0xf]
        %v3421 = vld [vmem:[%s940 + $0xe0] sm:$0xf]
        %v3422 = vld [vmem:[%s940 + $0xe4] sm:$0xf]
        %v3423 = vld [vmem:[%s940 + $0xe8] sm:$0xf]
        %v3424 = vld [vmem:[%s940 + $0xec] sm:$0xf]
        %v3425 = vld [vmem:[%s940 + $0xf0] sm:$0xf]
        %v3426 = vld [vmem:[%s940 + $0xf4] sm:$0xf]
        %v3427 = vld [vmem:[%s940 + $0xf8] sm:$0xf]
        %v3428 = vld [vmem:[%s940 + $0xfc] sm:$0xf]
        %v3429 = vld [vmem:[%s948] sm:$0x1]
        %v3431 = vlaneseq
        %v3432 = vshrl.u32 %v3431, 7
        %v3433 = vsub.s32 0, %v3432
        %v3434 = vrot.slane %v3429, %v3433
        %v3500 = vunpack.c.l.b16 %v3365
        %v3501 = vunpack.c.l.b16 %v3366
        %v3502 = vunpack.c.l.b16 %v3367
        %v3503 = vunpack.c.l.b16 %v3368
        %v3504 = vunpack.c.l.b16 %v3369
        %v3505 = vunpack.c.l.b16 %v3370
        %v3506 = vunpack.c.l.b16 %v3371
        %v3507 = vunpack.c.l.b16 %v3372
        %v3508 = vunpack.c.l.b16 %v3373
        %v3509 = vunpack.c.l.b16 %v3374
        %v3510 = vunpack.c.l.b16 %v3375
        %v3511 = vunpack.c.l.b16 %v3376
        %v3512 = vunpack.c.l.b16 %v3377
        %v3513 = vunpack.c.l.b16 %v3378
        %v3514 = vunpack.c.l.b16 %v3379
        %v3515 = vunpack.c.l.b16 %v3380
        %v3516 = vunpack.c.l.b16 %v3381
        %v3517 = vunpack.c.l.b16 %v3382
        %v3518 = vunpack.c.l.b16 %v3383
        %v3519 = vunpack.c.l.b16 %v3384
        %v3520 = vunpack.c.l.b16 %v3385
        %v3521 = vunpack.c.l.b16 %v3386
        %v3522 = vunpack.c.l.b16 %v3387
        %v3523 = vunpack.c.l.b16 %v3388
        %v3524 = vunpack.c.l.b16 %v3389
        %v3525 = vunpack.c.l.b16 %v3390
        %v3526 = vunpack.c.l.b16 %v3391
        %v3527 = vunpack.c.l.b16 %v3392
        %v3528 = vunpack.c.l.b16 %v3393
        %v3529 = vunpack.c.l.b16 %v3394
        %v3530 = vunpack.c.l.b16 %v3395
        %v3531 = vunpack.c.l.b16 %v3396
        %v3532 = vunpack.c.l.b16 %v3397
        %v3533 = vunpack.c.l.b16 %v3398
        %v3534 = vunpack.c.l.b16 %v3399
        %v3535 = vunpack.c.l.b16 %v3400
        %v3536 = vunpack.c.l.b16 %v3401
        %v3537 = vunpack.c.l.b16 %v3402
        %v3538 = vunpack.c.l.b16 %v3403
        %v3539 = vunpack.c.l.b16 %v3404
        %v3540 = vunpack.c.l.b16 %v3405
        %v3541 = vunpack.c.l.b16 %v3406
        %v3542 = vunpack.c.l.b16 %v3407
        %v3543 = vunpack.c.l.b16 %v3408
        %v3544 = vunpack.c.l.b16 %v3409
        %v3545 = vunpack.c.l.b16 %v3410
        %v3546 = vunpack.c.l.b16 %v3411
        %v3547 = vunpack.c.l.b16 %v3412
        %v3548 = vunpack.c.l.b16 %v3413
        %v3549 = vunpack.c.l.b16 %v3414
        %v3550 = vunpack.c.l.b16 %v3415
        %v3551 = vunpack.c.l.b16 %v3416
        %v3552 = vunpack.c.l.b16 %v3417
        %v3553 = vunpack.c.l.b16 %v3418
        %v3554 = vunpack.c.l.b16 %v3419
        %v3555 = vunpack.c.l.b16 %v3420
        %v3556 = vunpack.c.l.b16 %v3421
        %v3557 = vunpack.c.l.b16 %v3422
        %v3558 = vunpack.c.l.b16 %v3423
        %v3559 = vunpack.c.l.b16 %v3424
        %v3560 = vunpack.c.l.b16 %v3425
        %v3561 = vunpack.c.l.b16 %v3426
        %v3562 = vunpack.c.l.b16 %v3427
        %v3563 = vunpack.c.l.b16 %v3428
        %v3564 = vpack.c.b16 %v3501, %v3500
        %v3565 = vpack.c.b16 %v3503, %v3502
        %v3566 = vpack.c.b16 %v3505, %v3504
        %v3567 = vpack.c.b16 %v3507, %v3506
        %v3568 = vpack.c.b16 %v3509, %v3508
        %v3569 = vpack.c.b16 %v3511, %v3510
        %v3570 = vpack.c.b16 %v3513, %v3512
        %v3571 = vpack.c.b16 %v3515, %v3514
        %v3572 = vpack.c.b16 %v3517, %v3516
        %v3573 = vpack.c.b16 %v3519, %v3518
        %v3574 = vpack.c.b16 %v3521, %v3520
        %v3575 = vpack.c.b16 %v3523, %v3522
        %v3576 = vpack.c.b16 %v3525, %v3524
        %v3577 = vpack.c.b16 %v3527, %v3526
        %v3578 = vpack.c.b16 %v3529, %v3528
        %v3579 = vpack.c.b16 %v3531, %v3530
        %v3580 = vpack.c.b16 %v3533, %v3532
        %v3581 = vpack.c.b16 %v3535, %v3534
        %v3582 = vpack.c.b16 %v3537, %v3536
        %v3583 = vpack.c.b16 %v3539, %v3538
        %v3584 = vpack.c.b16 %v3541, %v3540
        %v3585 = vpack.c.b16 %v3543, %v3542
        %v3586 = vpack.c.b16 %v3545, %v3544
        %v3587 = vpack.c.b16 %v3547, %v3546
        %v3588 = vpack.c.b16 %v3549, %v3548
        %v3589 = vpack.c.b16 %v3551, %v3550
        %v3590 = vpack.c.b16 %v3553, %v3552
        %v3591 = vpack.c.b16 %v3555, %v3554
        %v3592 = vpack.c.b16 %v3557, %v3556
        %v3593 = vpack.c.b16 %v3559, %v3558
        %v3594 = vpack.c.b16 %v3561, %v3560
        %v3595 = vpack.c.b16 %v3563, %v3562
        %3628 = vmatprep.subr.bf16.mxu0 0
        %3629 = vmatpush1.bf16.msra.mxu0 %v3564
        %3630 = vmatprep.subr.bf16.mxu0 0
        %3631 = vmatpush1.bf16.msra.mxu0 %v3565
        %3632 = vmatprep.subr.bf16.mxu0 0
        %3633 = vmatpush1.bf16.msra.mxu0 %v3566
        %3634 = vmatprep.subr.bf16.mxu0 0
        %3635 = vmatpush1.bf16.msra.mxu0 %v3567
        %3636 = vmatprep.subr.bf16.mxu0 0
        %3637 = vmatpush1.bf16.msra.mxu0 %v3568
        %3638 = vmatprep.subr.bf16.mxu0 0
        %3639 = vmatpush1.bf16.msra.mxu0 %v3569
        %3640 = vmatprep.subr.bf16.mxu0 0
        %3641 = vmatpush1.bf16.msra.mxu0 %v3570
        %3642 = vmatprep.subr.bf16.mxu0 0
        %3643 = vmatpush1.bf16.msra.mxu0 %v3571
        %3644 = vmatprep.subr.bf16.mxu0 0
        %3645 = vmatpush1.bf16.msra.mxu0 %v3572
        %3646 = vmatprep.subr.bf16.mxu0 0
        %3647 = vmatpush1.bf16.msra.mxu0 %v3573
        %3648 = vmatprep.subr.bf16.mxu0 0
        %3649 = vmatpush1.bf16.msra.mxu0 %v3574
        %3650 = vmatprep.subr.bf16.mxu0 0
        %3651 = vmatpush1.bf16.msra.mxu0 %v3575
        %3652 = vmatprep.subr.bf16.mxu0 0
        %3653 = vmatpush1.bf16.msra.mxu0 %v3576
        %3654 = vmatprep.subr.bf16.mxu0 0
        %3655 = vmatpush1.bf16.msra.mxu0 %v3577
        %3656 = vmatprep.subr.bf16.mxu0 0
        %3657 = vmatpush1.bf16.msra.mxu0 %v3578
        %3658 = vmatprep.subr.bf16.mxu0 0
        %3659 = vmatpush1.bf16.msra.mxu0 %v3579
        %3660 = vmatprep.mubr.bf16.mxu0 %v3358
        %3661 = vmatmul.mubr.bf16.gmra.mrb[0].mxu0 %v3357
        %v3662 = vpop.f32.mrb[0].mxu0
        %v3663 = vadd.f32 %v3434, %v3662
        %v3664 = vpop.f32.mrb[0].mxu0
        %v3665 = vpop.f32.mrb[0].mxu0
        %v3666 = vadd.f32 %v3434, %v3665
        %v3667 = vpop.f32.mrb[0].mxu0
        %3668 = vmatprep.mubr.bf16.mxu0 %v3362
        %3669 = vmatmul.mubr.bf16.gmra.mrb[0].mxu0 %v3361
        %v3670 = vpop.f32.mrb[0].mxu0
        %v3671 = vadd.f32 %v3434, %v3670
        %v3672 = vpop.f32.mrb[0].mxu0
        %v3673 = vpop.f32.mrb[0].mxu0
        %v3674 = vadd.f32 %v3434, %v3673
        %v3675 = vpop.f32.mrb[0].mxu0
        %3676 = vdwg.mxu0
        %3677 = vmatprep.subr.bf16.mxu0 0
        %3678 = vmatpush1.bf16.msra.mxu0 %v3580
        %3679 = vmatprep.subr.bf16.mxu0 0
        %3680 = vmatpush1.bf16.msra.mxu0 %v3581
        %3681 = vmatprep.subr.bf16.mxu0 0
        %3682 = vmatpush1.bf16.msra.mxu0 %v3582
        %3683 = vmatprep.subr.bf16.mxu0 0
        %3684 = vmatpush1.bf16.msra.mxu0 %v3583
        %3685 = vmatprep.subr.bf16.mxu0 0
        %3686 = vmatpush1.bf16.msra.mxu0 %v3584
        %3687 = vmatprep.subr.bf16.mxu0 0
        %3688 = vmatpush1.bf16.msra.mxu0 %v3585
        %3689 = vmatprep.subr.bf16.mxu0 0
        %3690 = vmatpush1.bf16.msra.mxu0 %v3586
        %3691 = vmatprep.subr.bf16.mxu0 0
        %3692 = vmatpush1.bf16.msra.mxu0 %v3587
        %3693 = vmatprep.subr.bf16.mxu0 0
        %3694 = vmatpush1.bf16.msra.mxu0 %v3588
        %3695 = vmatprep.subr.bf16.mxu0 0
        %3696 = vmatpush1.bf16.msra.mxu0 %v3589
        %3697 = vmatprep.subr.bf16.mxu0 0
        %3698 = vmatpush1.bf16.msra.mxu0 %v3590
        %3699 = vmatprep.subr.bf16.mxu0 0
        %3700 = vmatpush1.bf16.msra.mxu0 %v3591
        %3701 = vmatprep.subr.bf16.mxu0 0
        %3702 = vmatpush1.bf16.msra.mxu0 %v3592
        %3703 = vmatprep.subr.bf16.mxu0 0
        %3704 = vmatpush1.bf16.msra.mxu0 %v3593
        %3705 = vmatprep.subr.bf16.mxu0 0
        %3706 = vmatpush1.bf16.msra.mxu0 %v3594
        %3707 = vmatprep.subr.bf16.mxu0 0
        %3708 = vmatpush1.bf16.msra.mxu0 %v3595
        %3709 = vmatprep.mubr.bf16.mxu0 %v3360
        %3710 = vmatmul.mubr.bf16.gmra.mrb[0].mxu0 %v3359
        %v3711 = vpop.f32.mrb[0].mxu0
        %v3712 = vadd.f32 %v3663, %v3711
        %v3713 = vpop.f32.mrb[0].mxu0
        %v3714 = vpop.f32.mrb[0].mxu0
        %v3715 = vadd.f32 %v3666, %v3714
        %v3716 = vpop.f32.mrb[0].mxu0
        %3717 = vmatprep.mubr.bf16.mxu0 %v3364
        %3718 = vmatmul.mubr.bf16.gmra.mrb[0].mxu0 %v3363
        %v3719 = vpop.f32.mrb[0].mxu0
        %v3720 = vadd.f32 %v3671, %v3719
        %v3721 = vpop.f32.mrb[0].mxu0
        %v3722 = vpop.f32.mrb[0].mxu0
        %v3723 = vadd.f32 %v3674, %v3722
        %v3724 = vpop.f32.mrb[0].mxu0
        %3725 = vdwg.mxu0
        %v3726 = vadd.f32 %v2821, %v3712
        %v3727 = vadd.f32 %v2822, %v3715
        %v3728 = vadd.f32 %v2823, %v3720
        %v3729 = vadd.f32 %v2824, %v3723
        %p3730 = scmp.lt.s32.totalorder %s38, 1
        // Predicated region
        $region169: #{tpu_custom_call.1} parent=91 // pred_check
          %p3731 = pneg %p3730
        $region170: #{tpu_custom_call.1} parent=91 // pred_check_branch
          %3733 = sbr.rel (%p3731) target = $region172
        $region171: #{tpu_custom_call.1} parent=91 // pred_region
          %3734 = vst [vmem:[#allocation24] sm:$0xff] %v3726
          %3735 = vst [vmem:[#allocation24 + $0x8] sm:$0xff] %v3727
          %3736 = vst [vmem:[#allocation24 + $0x10] sm:$0xff] %v3728
          %3737 = vst [vmem:[#allocation24 + $0x18] sm:$0xff] %v3729
        $region172: #{tpu_custom_call.1} parent=91 // pred_fallthru
          _
        %p3738 = scmp.eq.s32.totalorder %s38, 1
        // Predicated region
        $region173: #{tpu_custom_call.1} parent=91 // pred_check
          %p3739 = pneg %p3738
        $region174: #{tpu_custom_call.1} parent=91 // pred_check_branch
          %3741 = sbr.rel (%p3739) target = $region176
        $region175: #{tpu_custom_call.1} parent=91 // pred_region
          %v3742 = vld [vmem:[#allocation22] sm:$0x1]
          %v3743 = vld [vmem:[#allocation23] sm:$0x1]
          %3744 = vadd.xlane.f32.xlu0 %v3726
          %v3745 = vpop.xlane.xlu0 %3744
          %3746 = vadd.xlane.f32.xlu0 %v3727
          %v3747 = vpop.xlane.xlu0 %3746
          %3748 = vadd.xlane.f32.xlu0 %v3728
          %v3749 = vpop.xlane.xlu0 %3748
          %3750 = vadd.xlane.f32.xlu0 %v3729
          %v3751 = vpop.xlane.xlu0 %3750
          %v3752 = vmul.f32 %v3745, %v1185
          %v3753 = vmul.f32 %v3747, %v1185
          %v3754 = vmul.f32 %v3749, %v1185
          %v3755 = vmul.f32 %v3751, %v1185
          %v3756 = vsub.f32 %v3726, %v3752
          %v3757 = vsub.f32 %v3727, %v3753
          %v3758 = vsub.f32 %v3728, %v3754
          %v3759 = vsub.f32 %v3729, %v3755
          %v3760 = vmul.f32 %v3756, %v3756
          %v3761 = vmul.f32 %v3757, %v3757
          %v3762 = vmul.f32 %v3758, %v3758
          %v3763 = vmul.f32 %v3759, %v3759
          %3764 = vadd.xlane.f32.xlu0 %v3760
          %v3765 = vpop.xlane.xlu0 %3764
          %3766 = vadd.xlane.f32.xlu0 %v3761
          %v3767 = vpop.xlane.xlu0 %3766
          %3768 = vadd.xlane.f32.xlu0 %v3762
          %v3769 = vpop.xlane.xlu0 %3768
          %3770 = vadd.xlane.f32.xlu0 %v3763
          %v3771 = vpop.xlane.xlu0 %3770
          %v3772 = vmul.f32 %v3765, %v1185
          %v3773 = vmul.f32 %v3767, %v1185
          %v3774 = vmul.f32 %v3769, %v1185
          %v3775 = vmul.f32 %v3771, %v1185
          %v3776 = vadd.f32 %v3772, 1e-05
          %v3777 = vadd.f32 %v3773, 1e-05
          %v3778 = vadd.f32 %v3774, 1e-05
          %v3779 = vadd.f32 %v3775, 1e-05
          %v3780 = vrsqrt.pop %v3776
          %v3781 = vrsqrt.pop %v3777
          %v3782 = vrsqrt.pop %v3778
          %v3783 = vrsqrt.pop %v3779
          %v3784 = vmul.f32 %v3756, %v3780
          %v3785 = vmul.f32 %v3757, %v3781
          %v3786 = vmul.f32 %v3758, %v3782
          %v3787 = vmul.f32 %v3759, %v3783
          %v3789 = vlaneseq
          %v3790 = vshrl.u32 %v3789, 7
          %v3791 = vsub.s32 0, %v3790
          %v3792 = vrot.slane %v3742, %v3791
          %v3794 = vmul.f32 %v3784, %v3792
          %v3795 = vmul.f32 %v3785, %v3792
          %v3796 = vmul.f32 %v3786, %v3792
          %v3797 = vmul.f32 %v3787, %v3792
          %v3799 = vlaneseq
          %v3800 = vshrl.u32 %v3799, 7
          %v3801 = vsub.s32 0, %v3800
          %v3802 = vrot.slane %v3743, %v3801
          %v3804 = vadd.f32 %v3794, %v3802
          %v3805 = vadd.f32 %v3795, %v3802
          %v3806 = vadd.f32 %v3796, %v3802
          %v3807 = vadd.f32 %v3797, %v3802
          %3808 = vst [vmem:[#allocation24] sm:$0xff] %v3804
          %3809 = vst [vmem:[#allocation24 + $0x8] sm:$0xff] %v3805
          %3810 = vst [vmem:[#allocation24 + $0x10] sm:$0xff] %v3806
          %3811 = vst [vmem:[#allocation24 + $0x18] sm:$0xff] %v3807
        $region176: #{tpu_custom_call.1} parent=91 // pred_fallthru
          _
        // Predicated region
        $region177: #{tpu_custom_call.1} parent=91 // pred_check
          %p3812 = pneg %p506
        $region178: #{tpu_custom_call.1} parent=91 // pred_check_branch
          %3814 = sbr.rel (%p3812) target = $region180
        $region179: #{tpu_custom_call.1} parent=91 // pred_region
          %s3815 = smul.u32 2, %s37
          %s3817 = ssub.s32 512, 512
          %3818 = vsyncadd [#allocation4], %s3817
          %s3819 = smul.addr %s3815, 2
          %s3820 = smul.addr %s3819, 128
          %s3821 = scalar_lea.hbm %s18, %s3820
          %s3822 = sshll.u32 [#allocation24], 4
          %s3823 = int_to_ptr.vmem [resolvable:$true] %s3822
          %3828 = dma.vmem_to_hbm [thread:$0]  %s3823, 512, %s3821, [#allocation4], 128, 128, 8
        $region180: #{tpu_custom_call.1} parent=91 // pred_fallthru
          _
        // Predicated region
        $region181: #{tpu_custom_call.1} parent=91 // pred_check
          %p3829 = pneg %p506
        $region182: #{tpu_custom_call.1} parent=91 // pred_check_branch
          %3831 = sbr.rel (%p3829) target = $region184
        $region183: #{tpu_custom_call.1} parent=91 // pred_region
          %3832 = dma.done [#allocation4], 512
        $region184: #{tpu_custom_call.1} parent=91 // pred_fallthru
          _
      $region92: #{tpu_custom_call.1} parent=5 // pred_fallthru
        _
      %p3833 = scmp.le.s32.totalorder 2, %s28
      // Predicated region
      $region185: #{tpu_custom_call.1} parent=5 // pred_check
        %p3834 = pneg %p3833
      $region186: #{tpu_custom_call.1} parent=5 // pred_check_branch
        %3836 = sbr.rel (%p3834) target = $region188
      $region187: #{tpu_custom_call.1} parent=5 // pred_region
        %s3837 = ssub.s32 %s28, 2
      $region188: #{tpu_custom_call.1} parent=5 // pred_fallthru
        _
    $region6: #{tpu_custom_call.1} parent=1 // loop_footer
      %s32 = sadd.s32 1, %s28
    $region7: #{tpu_custom_call.1} parent=1 // loop_footer_branch
      %27 = sbr.rel target = $region3
    $region8: #{tpu_custom_call.1} parent=1 // loop_exit
      _
    %3838 = vsyncpa [#allocation3], 1
    %s3839 = scalar_lea.sflag [#allocation3], 1
    %3840 = vsyncpa %s3839, 1
    %3841 = vsyncpa [#allocation6], 1
    %3842 = vsyncpa [#allocation9], 1
    %3843 = vsyncpa [#allocation4], 1
    %s3844 = scalar_lea.sflag [#allocation4], 1
    %3845 = vsyncpa %s3844, 1

</llo_original>
